<compile_context>
chip_gen: v5e
topology: v5e:2x2
jax: 0.10.0
libtpu: 0.0.40
codegen_flags: <defaults>
</compile_context>

<pallas_src>
import functools
import math

import jax
import jax.numpy as jnp
from jax.experimental import pallas as pl
from jax.experimental.pallas import tpu as pltpu

EPS = 1e-5           # nn.LayerNorm default
_NEG_INF = -1e20     # matches the PyTorch masked_fill value


# ----------------------------- in-kernel helpers -----------------------------

def _softmax(x):
    m = jnp.max(x, axis=-1, keepdims=True)
    e = jnp.exp(x - m)
    s = jnp.sum(e, axis=-1, keepdims=True)
    # approx reciprocal runs on the EUP slot (off the VALU); use approx=False if
    # exact parity with the f32 reference is ever required.
    return e * pl.reciprocal(s, approx=True)


def _layer_norm(x, g, b):
    mu = jnp.mean(x, axis=-1, keepdims=True)
    xc = x - mu
    var = jnp.mean(xc * xc, axis=-1, keepdims=True)
    return xc * jax.lax.rsqrt(var + EPS) * g + b


# --------------------------------- kernel ------------------------------------

def encoder_block_kernel(heads, label_heads,
                         value_ref, key_ref, query_ref, label_ref,
                         bias_row_ref, mask_col_ref,
                         wq1_ref, wk1_ref, wv1_ref, wo1_ref, bo1_ref, g1_ref, b1_ref,
                         wq2_ref, wk2_ref, wv2_ref, wo2_ref, bo2_ref, gl_ref, bl_ref,
                         wff1_ref, bff1_ref, wff2_ref, bff2_ref, g2_ref, b2_ref,
                         out_ref):
    bb, S, E = query_ref.shape
    L = label_ref.shape[1]
    d1 = E // heads
    d2 = E // label_heads
    M = bb * S
    bf16 = jnp.bfloat16
    f32 = jnp.float32

    # ---- shared weights / params: loaded once per grid step ----
    wq1 = wq1_ref[...]; wk1 = wk1_ref[...]; wv1 = wv1_ref[...]; wo1 = wo1_ref[...]
    bo1 = bo1_ref[...]; g1 = g1_ref[...]; b1 = b1_ref[...]
    wq2 = wq2_ref[...]; wk2 = wk2_ref[...]; wv2 = wv2_ref[...]; wo2 = wo2_ref[...]
    bo2 = bo2_ref[...]; gl = gl_ref[...]; bl = bl_ref[...]
    wff1 = wff1_ref[...]; bff1 = bff1_ref[...]
    wff2 = wff2_ref[...]; bff2 = bff2_ref[...]
    g2 = g2_ref[...]; b2 = b2_ref[...]

    # ---- per-step activations, flattened to (bb*S, E): every matmul below sees
    #      M = bb*S rows (no per-sample Python loop). ----
    q = query_ref[...].reshape(M, E)            # f32 (kept for the residual)
    v_in = value_ref[...].reshape(M, E)         # bf16
    k_in = key_ref[...].reshape(M, E)           # bf16
    lab = label_ref[...].reshape(bb * L, E)     # bf16
    bias_row = bias_row_ref[...]                # (bb, 1, S) additive {0, -1e20}
    mask_col = mask_col_ref[...]                # (bb, S, 1) {0., 1.}

    def split_heads(x, n_heads, dh, seq):
        # (bb*seq, E) concatenated-head -> (n_heads*bb, seq, dh) head-major.
        # Lane-dim split via static lane slices (robust Mosaic lowering); all
        # compute below stays batched over the leading (head*batch) axis.
        parts = [x[:, h * dh:(h + 1) * dh].astype(bf16).reshape(bb, seq, dh)
                 for h in range(n_heads)]
        return jnp.concatenate(parts, axis=0)        # g = h*bb + b

    def merge_heads(x, n_heads, dh, seq):
        # (n_heads*bb, seq, dh) -> (bb*seq, n_heads*dh) concatenated-head
        # (lane-dense), so the output projection is one (M,E)@(E,E) dot whose
        # E contraction also performs the sum over heads (fused head-sum).
        parts = [x[h * bb:(h + 1) * bb].astype(bf16).reshape(bb * seq, dh)
                 for h in range(n_heads)]
        return jnp.concatenate(parts, axis=-1)

    def tile_heads(m, n_heads):
        return jnp.concatenate([m] * n_heads, axis=0)

    # ================= self attention (mask over key positions) =================
    qp = jnp.dot(q.astype(bf16), wq1, preferred_element_type=f32)  # 1/sqrt(E) folded in
    kp = jnp.dot(k_in, wk1, preferred_element_type=f32)
    vp = jnp.dot(v_in, wv1, preferred_element_type=f32)
    qh = split_heads(qp, heads, d1, S)                              # (H*bb, S, d1)
    kh = split_heads(kp, heads, d1, S)
    vh = split_heads(vp, heads, d1, S)
    energy = jnp.einsum("gqd,gkd->gqk", qh, kh, preferred_element_type=f32)
    energy = energy + tile_heads(bias_row, heads)                   # additive key mask
    attn = _softmax(energy)
    ctx = jnp.einsum("gqk,gkd->gqd", attn.astype(bf16), vh, preferred_element_type=f32)
    attn_out = jnp.dot(merge_heads(ctx, heads, d1, S), wo1,
                       preferred_element_type=f32) + bo1            # fused head-sum

    x = _layer_norm(attn_out + q, g1, b1)                           # dropout == identity

    # ============ label attention (keys/values = label embeddings) ============
    # The permuted mask zeroes whole QUERY rows; keep masked_fill (where)
    # semantics so fully-masked rows degenerate to a uniform softmax exactly as
    # in PyTorch (an additive bias would be shift-invariant there).
    qp2 = jnp.dot(x.astype(bf16), wq2, preferred_element_type=f32)
    kp2 = jnp.dot(lab, wk2, preferred_element_type=f32)
    vp2 = jnp.dot(lab, wv2, preferred_element_type=f32)
    qh2 = split_heads(qp2, label_heads, d2, S)                      # (H2*bb, S, d2)
    kh2 = split_heads(kp2, label_heads, d2, L)
    vh2 = split_heads(vp2, label_heads, d2, L)
    energy2 = jnp.einsum("gsd,gld->gsl", qh2, kh2, preferred_element_type=f32)
    energy2 = jnp.where(tile_heads(mask_col, label_heads) == 0.0, _NEG_INF, energy2)
    attn2 = _softmax(energy2)
    ctx2 = jnp.einsum("gsl,gld->gsd", attn2.astype(bf16), vh2, preferred_element_type=f32)
    label_out = jnp.dot(merge_heads(ctx2, label_heads, d2, S), wo2,
                        preferred_element_type=f32) + bo2

    x = _layer_norm(x + label_out, gl, bl)

    # ---------------- feed forward: Linear -> ReLU -> Linear --------------
    hid = jnp.dot(x.astype(bf16), wff1, preferred_element_type=f32) + bff1
    hid = jnp.maximum(hid, 0.0)
    ff = jnp.dot(hid.astype(bf16), wff2, preferred_element_type=f32) + bff2
    y = _layer_norm(ff + x, g2, b2)

    out_ref[...] = y.reshape(bb, S, E)


# --------------------------------- wrapper -----------------------------------

def _block_diag(w, heads):
    """Shared per-head (d,d) weight -> block-diagonal (E,E) weight so the
    per-head projection is a single full-width matmul producing the
    concatenated-head layout."""
    return jnp.kron(jnp.eye(heads, dtype=w.dtype), w)


def _pick_bb(N, S, L):
    """Batch-block size: require >= 2 grid steps (v7x has two TensorCores and the
    pipeline needs >= 2 steps to overlap DMA), prefer >= 4; fold the remaining
    batch into the matmul M dimension only when the in-kernel (bb, seq)
    merges/splits stay sublane-aligned."""
    if S % 8 != 0 or L % 8 != 0:
        return 1
    divisors = [d for d in range(1, min(N, 8) + 1) if N % d == 0]
    for min_grid in (4, 2):
        cands = [d for d in divisors if N // d >= min_grid]
        if cands:
            return max(cands)
    return 1


def _vmem_cap():
    # Never request more scoped VMEM than the chip physically has
    # (v7x: 64 MiB / TensorCore); leave headroom for double buffers.
    try:
        cap = int(pltpu.get_tpu_info().vmem_capacity_bytes)
    except Exception:
        cap = 64 * 1024 * 1024
    return min(cap - 8 * 1024 * 1024, 100 * 1024 * 1024)


def encoder_transformer_block(value, key, query, label_embed, mask, params,
                              heads, label_heads):
    N, S, E = query.shape
    L = label_embed.shape[1]
    F = params["wff1"].shape[1]
    bf16 = jnp.bfloat16
    scale = 1.0 / math.sqrt(E)

    bb = _pick_bb(N, S, L)
    grid = (N // bb,)

    # Masks: self-attention masks KEY positions -> precomputed additive bias
    # (single vadd on the energy tensor).  Label attention masks QUERY rows ->
    # shipped as a tiny (N,S,1) fill-mask (see kernel comment).
    mask_f = mask.astype(jnp.float32)
    bias_row = jnp.where(mask_f == 0.0, _NEG_INF, 0.0).reshape(N, 1, S)
    mask_col = mask_f.reshape(N, S, 1)

    tensors = [value.astype(bf16), key.astype(bf16), query.astype(jnp.float32),
               label_embed.astype(bf16), bias_row, mask_col]

    p = params
    weights = [
        _block_diag(p["wq1"] * scale, heads).astype(bf16),   # fold 1/sqrt(E)
        _block_diag(p["wk1"], heads).astype(bf16),
        _block_diag(p["wv1"], heads).astype(bf16),
        p["wo1"].astype(bf16), p["bo1"], p["g1"], p["b1"],
        _block_diag(p["wq2"] * scale, label_heads).astype(bf16),
        _block_diag(p["wk2"], label_heads).astype(bf16),
        _block_diag(p["wv2"], label_heads).astype(bf16),
        p["wo2"].astype(bf16), p["bo2"], p["gl"], p["bl"],
        p["wff1"].astype(bf16), p["bff1"],
        p["wff2"].astype(bf16), p["bff2"],
        p["g2"], p["b2"],
    ]

    def batched_spec(t):
        shp = tuple(t.shape)
        rest = (0,) * (len(shp) - 1)
        return pl.BlockSpec((bb,) + shp[1:], lambda i, rest=rest: (i,) + rest)

    def shared_spec(w, single_buffer):
        shp = tuple(w.shape)
        zeros = (0,) * len(shp)
        if single_buffer:
            # Weights never change across the grid: single-buffer them to halve
            # their VMEM residency (matters most on v7x's 64 MiB VMEM).
            return pl.BlockSpec(shp, lambda i, z=zeros: z,
                                pipeline_mode=pl.Buffered(1))
        return pl.BlockSpec(shp, lambda i, z=zeros: z)

    kernel = functools.partial(encoder_block_kernel, heads, label_heads)
    out_shape = jax.ShapeDtypeStruct((N, S, E), jnp.float32)
    out_spec = pl.BlockSpec((bb, S, E), lambda i: (i, 0, 0))

    def run(single_buffer_weights):
        in_specs = ([batched_spec(t) for t in tensors]
                    + [shared_spec(w, single_buffer_weights) for w in weights])

        # Scoped-VMEM estimate: double-buffered activation blocks, single- or
        # double-buffered weights, plus f32 intermediates incl. the S^2 energy.
        block_bytes = sum(bb * math.prod(t.shape[1:]) * t.dtype.itemsize
                          for t in tensors)
        block_bytes += bb * S * E * 4                              # output block
        weight_bytes = sum(int(w.size) * w.dtype.itemsize for w in weights)
        scratch_bytes = (6 * bb * S * E * 4                        # qp/kp/vp/ctx/x/ff
                         + 2 * bb * heads * S * S * 4              # energy + attn
                         + 2 * bb * label_heads * S * L * 4        # label energy + attn
                         + 2 * bb * S * F * 4)                     # FFN hidden
        weight_mult = 1 if single_buffer_weights else 2
        vmem_est = 2 * block_bytes + weight_mult * weight_bytes + scratch_bytes

        cparams = {"dimension_semantics": ("parallel",)}
        if vmem_est > 12 * 1024 * 1024:
            cparams["vmem_limit_bytes"] = int(min(max(vmem_est * 3 // 2, 16 << 20),
                                                  _vmem_cap()))

        fn = pl.pallas_call(
            kernel,
            out_shape=out_shape,
            grid=grid,
            in_specs=in_specs,
            out_specs=out_spec,
            compiler_params=pltpu.CompilerParams(**cparams),
        )
        return fn(*tensors, *weights)

    try:
        return run(single_buffer_weights=True)
    except Exception:
        # pl.Buffered(1) not supported by this jax/Pallas version: fall back to
        # the default (double-buffered) weight specs.
        return run(single_buffer_weights=False)


# ----------------------- deterministic parameter init ------------------------

def init_params(rng, embed_size, heads, label_heads, forward_expansion):
    E = embed_size
    d1 = E // heads
    d2 = E // label_heads
    F = forward_expansion * E
    ks = jax.random.split(rng, 16)

    def w(k, shape, scale=0.1):
        return jax.random.normal(k, shape, jnp.float32) * scale

    return {
        # attention #1
        "wv1": w(ks[0], (d1, d1)), "wk1": w(ks[1], (d1, d1)), "wq1": w(ks[2], (d1, d1)),
        "wo1": w(ks[3], (E, E)),   "bo1": w(ks[4], (1, E), 0.02),
        "g1": jnp.ones((1, E), jnp.float32), "b1": jnp.zeros((1, E), jnp.float32),
        # label attention
        "wv2": w(ks[5], (d2, d2)), "wk2": w(ks[6], (d2, d2)), "wq2": w(ks[7], (d2, d2)),
        "wo2": w(ks[8], (E, E)),   "bo2": w(ks[9], (1, E), 0.02),
        "gl": jnp.ones((1, E), jnp.float32), "bl": jnp.zeros((1, E), jnp.float32),
        # feed forward
        "wff1": w(ks[10], (E, F)), "bff1": w(ks[11], (1, F), 0.02),
        "wff2": w(ks[12], (F, E)), "bff2": w(ks[13], (1, E), 0.02),
        "g2": jnp.ones((1, E), jnp.float32), "b2": jnp.zeros((1, E), jnp.float32),
    }


# ------------------------------ pure-JAX reference ---------------------------

def reference(value, key, query, label_embed, mask, p, heads, label_heads):
    N, S, E = query.shape
    mask_row = mask.reshape(N, 1, 1, S).astype(jnp.float32)  # (N,1,1,S)
    mask_col = mask.reshape(N, 1, S, 1).astype(jnp.float32)  # (N,1,S,1)

    def attn(v, k, q, m4, H, wv, wk, wq, wo, bo):
        n, lq, _ = q.shape
        lk = k.shape[1]
        d = E // H
        vh = jnp.einsum("nlhd,de->nlhe", v.reshape(n, -1, H, d), wv)
        kh = jnp.einsum("nlhd,de->nlhe", k.reshape(n, lk, H, d), wk)
        qh = jnp.einsum("nlhd,de->nlhe", q.reshape(n, lq, H, d), wq)
        energy = jnp.einsum("nqhd,nkhd->nhqk", qh, kh)
        energy = jnp.where(m4 == 0.0, _NEG_INF, energy)
        a = jax.nn.softmax(energy / math.sqrt(E), axis=-1)
        o = jnp.einsum("nhqk,nkhd->nqhd", a, vh).reshape(n, lq, E)
        return o @ wo + bo

    def ln(x, g, b):
        mu = x.mean(-1, keepdims=True)
        var = ((x - mu) ** 2).mean(-1, keepdims=True)
        return (x - mu) / jnp.sqrt(var + EPS) * g + b

    a1 = attn(value, key, query, mask_row, heads,
              p["wv1"], p["wk1"], p["wq1"], p["wo1"], p["bo1"])
    x = ln(a1 + query, p["g1"], p["b1"])
    a2 = attn(label_embed, label_embed, x, mask_col, label_heads,
              p["wv2"], p["wk2"], p["wq2"], p["wo2"], p["bo2"])
    x = ln(x + a2, p["gl"], p["bl"])
    ff = jnp.maximum(x @ p["wff1"] + p["bff1"], 0.0) @ p["wff2"] + p["bff2"]
    return ln(ff + x, p["g2"], p["b2"])


# ----------------------------------- main -------------------------------------

if __name__ == "__main__":
    N, S, E = 2, 8, 32
    heads = 4
    labels = ["pos", "neg"]            # len(labels) == label_heads == 2
    label_heads = len(labels)
    L = label_heads                    # label_embed has one row per label
    forward_expansion = 4

    root = jax.random.PRNGKey(0)
    k_v, k_k, k_q, k_l, k_m, k_p = jax.random.split(root, 6)

    value = jax.random.normal(k_v, (N, S, E), jnp.float32)
    key = jax.random.normal(k_k, (N, S, E), jnp.float32)
    query = jax.random.normal(k_q, (N, S, E), jnp.float32)
    label_embed = jax.random.normal(k_l, (N, L, E), jnp.float32)
    mask = (jax.random.uniform(k_m, (N, S)) > 0.3).astype(jnp.float32)

    params = init_params(k_p, E, heads, label_heads, forward_expansion)

    out = encoder_transformer_block(value, key, query, label_embed, mask,
                                    params, heads, label_heads)
    out = jax.block_until_ready(out)

    ref = reference(value, key, query, label_embed, mask, params,
                    heads, label_heads)
    assert out.shape == (N, S, E)
    # bf16 MXU inputs + approx reciprocal => looser tolerance than pure-f32 ref.
    assert jnp.allclose(out, ref, atol=5e-2, rtol=5e-2), \
        f"max abs err {jnp.max(jnp.abs(out - ref))}"

    print("KERNEL_OK")
</pallas_src>

<mosaic_0001>
module attributes {stable_mosaic.version = 11 : i64} {
  func.func @encoder_block_kernel(%arg0: i32, %arg1: memref<1x8x32xbf16, #tpu.memory_space<vmem>>, %arg2: memref<1x8x32xbf16, #tpu.memory_space<vmem>>, %arg3: memref<1x8x32xf32, #tpu.memory_space<vmem>>, %arg4: memref<1x2x32xbf16, #tpu.memory_space<vmem>>, %arg5: memref<1x1x8xf32, #tpu.memory_space<vmem>>, %arg6: memref<1x8x1xf32, #tpu.memory_space<vmem>>, %arg7: memref<32x32xbf16, #tpu.memory_space<vmem>>, %arg8: memref<32x32xbf16, #tpu.memory_space<vmem>>, %arg9: memref<32x32xbf16, #tpu.memory_space<vmem>>, %arg10: memref<32x32xbf16, #tpu.memory_space<vmem>>, %arg11: memref<1x32xf32, #tpu.memory_space<vmem>>, %arg12: memref<1x32xf32, #tpu.memory_space<vmem>>, %arg13: memref<1x32xf32, #tpu.memory_space<vmem>>, %arg14: memref<32x32xbf16, #tpu.memory_space<vmem>>, %arg15: memref<32x32xbf16, #tpu.memory_space<vmem>>, %arg16: memref<32x32xbf16, #tpu.memory_space<vmem>>, %arg17: memref<32x32xbf16, #tpu.memory_space<vmem>>, %arg18: memref<1x32xf32, #tpu.memory_space<vmem>>, %arg19: memref<1x32xf32, #tpu.memory_space<vmem>>, %arg20: memref<1x32xf32, #tpu.memory_space<vmem>>, %arg21: memref<32x128xbf16, #tpu.memory_space<vmem>>, %arg22: memref<1x128xf32, #tpu.memory_space<vmem>>, %arg23: memref<128x32xbf16, #tpu.memory_space<vmem>>, %arg24: memref<1x32xf32, #tpu.memory_space<vmem>>, %arg25: memref<1x32xf32, #tpu.memory_space<vmem>>, %arg26: memref<1x32xf32, #tpu.memory_space<vmem>>, %arg27: memref<1x8x32xf32, #tpu.memory_space<vmem>>) attributes {dimension_semantics = [#tpu.dimension_semantics<parallel>], iteration_bounds = array<i64: 2>, scalar_prefetch = 0 : i64, scratch_operands = 0 : i64, tpu.core_type = #tpu.core_type<tc>, window_params = [{transform_indices = @transform_0, window_bounds = array<i64: 1, 8, 32>}, {transform_indices = @transform_1, window_bounds = array<i64: 1, 8, 32>}, {transform_indices = @transform_2, window_bounds = array<i64: 1, 8, 32>}, {transform_indices = @transform_3, window_bounds = array<i64: 1, 2, 32>}, {transform_indices = @transform_4, window_bounds = array<i64: 1, 1, 8>}, {transform_indices = @transform_5, window_bounds = array<i64: 1, 8, 1>}, {pipeline_mode = #tpu.pipeline_mode<synchronous>, transform_indices = @transform_6, window_bounds = array<i64: 32, 32>}, {pipeline_mode = #tpu.pipeline_mode<synchronous>, transform_indices = @transform_7, window_bounds = array<i64: 32, 32>}, {pipeline_mode = #tpu.pipeline_mode<synchronous>, transform_indices = @transform_8, window_bounds = array<i64: 32, 32>}, {pipeline_mode = #tpu.pipeline_mode<synchronous>, transform_indices = @transform_9, window_bounds = array<i64: 32, 32>}, {pipeline_mode = #tpu.pipeline_mode<synchronous>, transform_indices = @transform_10, window_bounds = array<i64: 1, 32>}, {pipeline_mode = #tpu.pipeline_mode<synchronous>, transform_indices = @transform_11, window_bounds = array<i64: 1, 32>}, {pipeline_mode = #tpu.pipeline_mode<synchronous>, transform_indices = @transform_12, window_bounds = array<i64: 1, 32>}, {pipeline_mode = #tpu.pipeline_mode<synchronous>, transform_indices = @transform_13, window_bounds = array<i64: 32, 32>}, {pipeline_mode = #tpu.pipeline_mode<synchronous>, transform_indices = @transform_14, window_bounds = array<i64: 32, 32>}, {pipeline_mode = #tpu.pipeline_mode<synchronous>, transform_indices = @transform_15, window_bounds = array<i64: 32, 32>}, {pipeline_mode = #tpu.pipeline_mode<synchronous>, transform_indices = @transform_16, window_bounds = array<i64: 32, 32>}, {pipeline_mode = #tpu.pipeline_mode<synchronous>, transform_indices = @transform_17, window_bounds = array<i64: 1, 32>}, {pipeline_mode = #tpu.pipeline_mode<synchronous>, transform_indices = @transform_18, window_bounds = array<i64: 1, 32>}, {pipeline_mode = #tpu.pipeline_mode<synchronous>, transform_indices = @transform_19, window_bounds = array<i64: 1, 32>}, {pipeline_mode = #tpu.pipeline_mode<synchronous>, transform_indices = @transform_20, window_bounds = array<i64: 32, 128>}, {pipeline_mode = #tpu.pipeline_mode<synchronous>, transform_indices = @transform_21, window_bounds = array<i64: 1, 128>}, {pipeline_mode = #tpu.pipeline_mode<synchronous>, transform_indices = @transform_22, window_bounds = array<i64: 128, 32>}, {pipeline_mode = #tpu.pipeline_mode<synchronous>, transform_indices = @transform_23, window_bounds = array<i64: 1, 32>}, {pipeline_mode = #tpu.pipeline_mode<synchronous>, transform_indices = @transform_24, window_bounds = array<i64: 1, 32>}, {pipeline_mode = #tpu.pipeline_mode<synchronous>, transform_indices = @transform_25, window_bounds = array<i64: 1, 32>}, {transform_indices = @transform_26, window_bounds = array<i64: 1, 8, 32>}]} {
    %c0 = arith.constant 0 : index
    %c0_0 = arith.constant 0 : index
    %0 = vector.load %arg7[%c0, %c0_0] : memref<32x32xbf16, #tpu.memory_space<vmem>>, vector<32x32xbf16>
    %c0_1 = arith.constant 0 : index
    %c0_2 = arith.constant 0 : index
    %1 = vector.load %arg8[%c0_1, %c0_2] : memref<32x32xbf16, #tpu.memory_space<vmem>>, vector<32x32xbf16>
    %c0_3 = arith.constant 0 : index
    %c0_4 = arith.constant 0 : index
    %2 = vector.load %arg9[%c0_3, %c0_4] : memref<32x32xbf16, #tpu.memory_space<vmem>>, vector<32x32xbf16>
    %c0_5 = arith.constant 0 : index
    %c0_6 = arith.constant 0 : index
    %3 = vector.load %arg10[%c0_5, %c0_6] : memref<32x32xbf16, #tpu.memory_space<vmem>>, vector<32x32xbf16>
    %c0_7 = arith.constant 0 : index
    %c0_8 = arith.constant 0 : index
    %4 = vector.load %arg11[%c0_7, %c0_8] : memref<1x32xf32, #tpu.memory_space<vmem>>, vector<1x32xf32>
    %c0_9 = arith.constant 0 : index
    %c0_10 = arith.constant 0 : index
    %5 = vector.load %arg12[%c0_9, %c0_10] : memref<1x32xf32, #tpu.memory_space<vmem>>, vector<1x32xf32>
    %c0_11 = arith.constant 0 : index
    %c0_12 = arith.constant 0 : index
    %6 = vector.load %arg13[%c0_11, %c0_12] : memref<1x32xf32, #tpu.memory_space<vmem>>, vector<1x32xf32>
    %c0_13 = arith.constant 0 : index
    %c0_14 = arith.constant 0 : index
    %7 = vector.load %arg14[%c0_13, %c0_14] : memref<32x32xbf16, #tpu.memory_space<vmem>>, vector<32x32xbf16>
    %c0_15 = arith.constant 0 : index
    %c0_16 = arith.constant 0 : index
    %8 = vector.load %arg15[%c0_15, %c0_16] : memref<32x32xbf16, #tpu.memory_space<vmem>>, vector<32x32xbf16>
    %c0_17 = arith.constant 0 : index
    %c0_18 = arith.constant 0 : index
    %9 = vector.load %arg16[%c0_17, %c0_18] : memref<32x32xbf16, #tpu.memory_space<vmem>>, vector<32x32xbf16>
    %c0_19 = arith.constant 0 : index
    %c0_20 = arith.constant 0 : index
    %10 = vector.load %arg17[%c0_19, %c0_20] : memref<32x32xbf16, #tpu.memory_space<vmem>>, vector<32x32xbf16>
    %c0_21 = arith.constant 0 : index
    %c0_22 = arith.constant 0 : index
    %11 = vector.load %arg18[%c0_21, %c0_22] : memref<1x32xf32, #tpu.memory_space<vmem>>, vector<1x32xf32>
    %c0_23 = arith.constant 0 : index
    %c0_24 = arith.constant 0 : index
    %12 = vector.load %arg19[%c0_23, %c0_24] : memref<1x32xf32, #tpu.memory_space<vmem>>, vector<1x32xf32>
    %c0_25 = arith.constant 0 : index
    %c0_26 = arith.constant 0 : index
    %13 = vector.load %arg20[%c0_25, %c0_26] : memref<1x32xf32, #tpu.memory_space<vmem>>, vector<1x32xf32>
    %c0_27 = arith.constant 0 : index
    %c0_28 = arith.constant 0 : index
    %14 = vector.load %arg21[%c0_27, %c0_28] : memref<32x128xbf16, #tpu.memory_space<vmem>>, vector<32x128xbf16>
    %c0_29 = arith.constant 0 : index
    %c0_30 = arith.constant 0 : index
    %15 = vector.load %arg22[%c0_29, %c0_30] : memref<1x128xf32, #tpu.memory_space<vmem>>, vector<1x128xf32>
    %c0_31 = arith.constant 0 : index
    %c0_32 = arith.constant 0 : index
    %16 = vector.load %arg23[%c0_31, %c0_32] : memref<128x32xbf16, #tpu.memory_space<vmem>>, vector<128x32xbf16>
    %c0_33 = arith.constant 0 : index
    %c0_34 = arith.constant 0 : index
    %17 = vector.load %arg24[%c0_33, %c0_34] : memref<1x32xf32, #tpu.memory_space<vmem>>, vector<1x32xf32>
    %c0_35 = arith.constant 0 : index
    %c0_36 = arith.constant 0 : index
    %18 = vector.load %arg25[%c0_35, %c0_36] : memref<1x32xf32, #tpu.memory_space<vmem>>, vector<1x32xf32>
    %c0_37 = arith.constant 0 : index
    %c0_38 = arith.constant 0 : index
    %19 = vector.load %arg26[%c0_37, %c0_38] : memref<1x32xf32, #tpu.memory_space<vmem>>, vector<1x32xf32>
    %c0_39 = arith.constant 0 : index
    %c0_40 = arith.constant 0 : index
    %c0_41 = arith.constant 0 : index
    %20 = vector.load %arg3[%c0_39, %c0_40, %c0_41] : memref<1x8x32xf32, #tpu.memory_space<vmem>>, vector<1x8x32xf32>
    %21 = vector.shape_cast %20 : vector<1x8x32xf32> to vector<8x32xf32>
    %c0_42 = arith.constant 0 : index
    %c0_43 = arith.constant 0 : index
    %c0_44 = arith.constant 0 : index
    %22 = vector.load %arg1[%c0_42, %c0_43, %c0_44] : memref<1x8x32xbf16, #tpu.memory_space<vmem>>, vector<1x8x32xbf16>
    %23 = vector.shape_cast %22 : vector<1x8x32xbf16> to vector<8x32xbf16>
    %c0_45 = arith.constant 0 : index
    %c0_46 = arith.constant 0 : index
    %c0_47 = arith.constant 0 : index
    %24 = vector.load %arg2[%c0_45, %c0_46, %c0_47] : memref<1x8x32xbf16, #tpu.memory_space<vmem>>, vector<1x8x32xbf16>
    %25 = vector.shape_cast %24 : vector<1x8x32xbf16> to vector<8x32xbf16>
    %c0_48 = arith.constant 0 : index
    %c0_49 = arith.constant 0 : index
    %c0_50 = arith.constant 0 : index
    %26 = vector.load %arg4[%c0_48, %c0_49, %c0_50] : memref<1x2x32xbf16, #tpu.memory_space<vmem>>, vector<1x2x32xbf16>
    %27 = vector.shape_cast %26 : vector<1x2x32xbf16> to vector<2x32xbf16>
    %c0_51 = arith.constant 0 : index
    %c0_52 = arith.constant 0 : index
    %c0_53 = arith.constant 0 : index
    %28 = vector.load %arg5[%c0_51, %c0_52, %c0_53] : memref<1x1x8xf32, #tpu.memory_space<vmem>>, vector<1x1x8xf32>
    %c0_54 = arith.constant 0 : index
    %c0_55 = arith.constant 0 : index
    %c0_56 = arith.constant 0 : index
    %29 = vector.load %arg6[%c0_54, %c0_55, %c0_56] : memref<1x8x1xf32, #tpu.memory_space<vmem>>, vector<1x8x1xf32>
    %30 = arith.truncf %21 : vector<8x32xf32> to vector<8x32xbf16>
    %cst = arith.constant dense<0.000000e+00> : vector<8x32xf32>
    %31 = tpu.matmul %30, %0, %cst {dimension_numbers = #tpu.dot_dimension_numbers<[1], [0], [0], [1], [0, 0, 1, 1], [], []>} : vector<8x32xbf16>, vector<32x32xbf16>, vector<8x32xf32> -> vector<8x32xf32>
    %cst_57 = arith.constant dense<0.000000e+00> : vector<8x32xf32>
    %32 = tpu.matmul %25, %1, %cst_57 {dimension_numbers = #tpu.dot_dimension_numbers<[1], [0], [0], [1], [0, 0, 1, 1], [], []>} : vector<8x32xbf16>, vector<32x32xbf16>, vector<8x32xf32> -> vector<8x32xf32>
    %cst_58 = arith.constant dense<0.000000e+00> : vector<8x32xf32>
    %33 = tpu.matmul %23, %2, %cst_58 {dimension_numbers = #tpu.dot_dimension_numbers<[1], [0], [0], [1], [0, 0, 1, 1], [], []>} : vector<8x32xbf16>, vector<32x32xbf16>, vector<8x32xf32> -> vector<8x32xf32>
    %34 = vector.extract_strided_slice %31 {offsets = [0, 0], sizes = [8, 8], strides = [1, 1]} : vector<8x32xf32> to vector<8x8xf32>
    %35 = arith.truncf %34 : vector<8x8xf32> to vector<8x8xbf16>
    %36 = vector.shape_cast %35 : vector<8x8xbf16> to vector<1x8x8xbf16>
    %37 = vector.extract_strided_slice %31 {offsets = [0, 8], sizes = [8, 8], strides = [1, 1]} : vector<8x32xf32> to vector<8x8xf32>
    %38 = arith.truncf %37 : vector<8x8xf32> to vector<8x8xbf16>
    %39 = vector.shape_cast %38 : vector<8x8xbf16> to vector<1x8x8xbf16>
    %40 = vector.extract_strided_slice %31 {offsets = [0, 16], sizes = [8, 8], strides = [1, 1]} : vector<8x32xf32> to vector<8x8xf32>
    %41 = arith.truncf %40 : vector<8x8xf32> to vector<8x8xbf16>
    %42 = vector.shape_cast %41 : vector<8x8xbf16> to vector<1x8x8xbf16>
    %43 = vector.extract_strided_slice %31 {offsets = [0, 24], sizes = [8, 8], strides = [1, 1]} : vector<8x32xf32> to vector<8x8xf32>
    %44 = arith.truncf %43 : vector<8x8xf32> to vector<8x8xbf16>
    %45 = vector.shape_cast %44 : vector<8x8xbf16> to vector<1x8x8xbf16>
    %46 = tpu.concatenate %36, %39, %42, %45 in 0 : vector<1x8x8xbf16>, vector<1x8x8xbf16>, vector<1x8x8xbf16>, vector<1x8x8xbf16> -> vector<4x8x8xbf16>
    %47 = vector.extract_strided_slice %32 {offsets = [0, 0], sizes = [8, 8], strides = [1, 1]} : vector<8x32xf32> to vector<8x8xf32>
    %48 = arith.truncf %47 : vector<8x8xf32> to vector<8x8xbf16>
    %49 = vector.shape_cast %48 : vector<8x8xbf16> to vector<1x8x8xbf16>
    %50 = vector.extract_strided_slice %32 {offsets = [0, 8], sizes = [8, 8], strides = [1, 1]} : vector<8x32xf32> to vector<8x8xf32>
    %51 = arith.truncf %50 : vector<8x8xf32> to vector<8x8xbf16>
    %52 = vector.shape_cast %51 : vector<8x8xbf16> to vector<1x8x8xbf16>
    %53 = vector.extract_strided_slice %32 {offsets = [0, 16], sizes = [8, 8], strides = [1, 1]} : vector<8x32xf32> to vector<8x8xf32>
    %54 = arith.truncf %53 : vector<8x8xf32> to vector<8x8xbf16>
    %55 = vector.shape_cast %54 : vector<8x8xbf16> to vector<1x8x8xbf16>
    %56 = vector.extract_strided_slice %32 {offsets = [0, 24], sizes = [8, 8], strides = [1, 1]} : vector<8x32xf32> to vector<8x8xf32>
    %57 = arith.truncf %56 : vector<8x8xf32> to vector<8x8xbf16>
    %58 = vector.shape_cast %57 : vector<8x8xbf16> to vector<1x8x8xbf16>
    %59 = tpu.concatenate %49, %52, %55, %58 in 0 : vector<1x8x8xbf16>, vector<1x8x8xbf16>, vector<1x8x8xbf16>, vector<1x8x8xbf16> -> vector<4x8x8xbf16>
    %60 = vector.extract_strided_slice %33 {offsets = [0, 0], sizes = [8, 8], strides = [1, 1]} : vector<8x32xf32> to vector<8x8xf32>
    %61 = arith.truncf %60 : vector<8x8xf32> to vector<8x8xbf16>
    %62 = vector.shape_cast %61 : vector<8x8xbf16> to vector<1x8x8xbf16>
    %63 = vector.extract_strided_slice %33 {offsets = [0, 8], sizes = [8, 8], strides = [1, 1]} : vector<8x32xf32> to vector<8x8xf32>
    %64 = arith.truncf %63 : vector<8x8xf32> to vector<8x8xbf16>
    %65 = vector.shape_cast %64 : vector<8x8xbf16> to vector<1x8x8xbf16>
    %66 = vector.extract_strided_slice %33 {offsets = [0, 16], sizes = [8, 8], strides = [1, 1]} : vector<8x32xf32> to vector<8x8xf32>
    %67 = arith.truncf %66 : vector<8x8xf32> to vector<8x8xbf16>
    %68 = vector.shape_cast %67 : vector<8x8xbf16> to vector<1x8x8xbf16>
    %69 = vector.extract_strided_slice %33 {offsets = [0, 24], sizes = [8, 8], strides = [1, 1]} : vector<8x32xf32> to vector<8x8xf32>
    %70 = arith.truncf %69 : vector<8x8xf32> to vector<8x8xbf16>
    %71 = vector.shape_cast %70 : vector<8x8xbf16> to vector<1x8x8xbf16>
    %72 = tpu.concatenate %62, %65, %68, %71 in 0 : vector<1x8x8xbf16>, vector<1x8x8xbf16>, vector<1x8x8xbf16>, vector<1x8x8xbf16> -> vector<4x8x8xbf16>
    "tpu.trace_start"() <{level = 10 : i32, message = "gqd,gkd->gqk"}> : () -> ()
    %cst_59 = arith.constant dense<0.000000e+00> : vector<4x8x8xf32>
    %73 = tpu.matmul %46, %59, %cst_59 {dimension_numbers = #tpu.dot_dimension_numbers<[2], [2], [1], [1], [0, 0, 0, 1, 1, 1], [0], [0]>} : vector<4x8x8xbf16>, vector<4x8x8xbf16>, vector<4x8x8xf32> -> vector<4x8x8xf32>
    "tpu.trace_stop"() : () -> ()
    %74 = tpu.concatenate %28, %28, %28, %28 in 0 : vector<1x1x8xf32>, vector<1x1x8xf32>, vector<1x1x8xf32>, vector<1x1x8xf32> -> vector<4x1x8xf32>
    %75 = vector.broadcast %74 : vector<4x1x8xf32> to vector<4x8x8xf32>
    %76 = arith.addf %73, %75 : vector<4x8x8xf32>
    %cst_60 = arith.constant dense<0xFF800000> : vector<4x8xf32>
    %77 = vector.multi_reduction <maximumf>, %76, %cst_60 [2] : vector<4x8x8xf32> to vector<4x8xf32>
    %78 = vector.shape_cast %77 : vector<4x8xf32> to vector<4x8x1xf32>
    %79 = vector.broadcast %78 : vector<4x8x1xf32> to vector<4x8x8xf32>
    %80 = arith.subf %76, %79 : vector<4x8x8xf32>
    %81 = math.exp %80 : vector<4x8x8xf32>
    %cst_61 = arith.constant dense<0.000000e+00> : vector<4x8xf32>
    %82 = vector.multi_reduction <add>, %81, %cst_61 [2] : vector<4x8x8xf32> to vector<4x8xf32>
    %83 = vector.shape_cast %82 : vector<4x8xf32> to vector<4x8x1xf32>
    %84 = tpu.reciprocal %83 {approx = true} : vector<4x8x1xf32> -> vector<4x8x1xf32>
    %85 = vector.broadcast %84 : vector<4x8x1xf32> to vector<4x8x8xf32>
    %86 = arith.mulf %81, %85 : vector<4x8x8xf32>
    %87 = arith.truncf %86 : vector<4x8x8xf32> to vector<4x8x8xbf16>
    "tpu.trace_start"() <{level = 10 : i32, message = "gqk,gkd->gqd"}> : () -> ()
    %cst_62 = arith.constant dense<0.000000e+00> : vector<4x8x8xf32>
    %88 = tpu.matmul %87, %72, %cst_62 {dimension_numbers = #tpu.dot_dimension_numbers<[2], [1], [1], [2], [0, 0, 0, 1, 1, 2], [0], [0]>} : vector<4x8x8xbf16>, vector<4x8x8xbf16>, vector<4x8x8xf32> -> vector<4x8x8xf32>
    "tpu.trace_stop"() : () -> ()
    %89 = vector.extract_strided_slice %88 {offsets = [0, 0, 0], sizes = [1, 8, 8], strides = [1, 1, 1]} : vector<4x8x8xf32> to vector<1x8x8xf32>
    %90 = arith.truncf %89 : vector<1x8x8xf32> to vector<1x8x8xbf16>
    %91 = vector.shape_cast %90 : vector<1x8x8xbf16> to vector<8x8xbf16>
    %92 = vector.extract_strided_slice %88 {offsets = [1, 0, 0], sizes = [1, 8, 8], strides = [1, 1, 1]} : vector<4x8x8xf32> to vector<1x8x8xf32>
    %93 = arith.truncf %92 : vector<1x8x8xf32> to vector<1x8x8xbf16>
    %94 = vector.shape_cast %93 : vector<1x8x8xbf16> to vector<8x8xbf16>
    %95 = vector.extract_strided_slice %88 {offsets = [2, 0, 0], sizes = [1, 8, 8], strides = [1, 1, 1]} : vector<4x8x8xf32> to vector<1x8x8xf32>
    %96 = arith.truncf %95 : vector<1x8x8xf32> to vector<1x8x8xbf16>
    %97 = vector.shape_cast %96 : vector<1x8x8xbf16> to vector<8x8xbf16>
    %98 = vector.extract_strided_slice %88 {offsets = [3, 0, 0], sizes = [1, 8, 8], strides = [1, 1, 1]} : vector<4x8x8xf32> to vector<1x8x8xf32>
    %99 = arith.truncf %98 : vector<1x8x8xf32> to vector<1x8x8xbf16>
    %100 = vector.shape_cast %99 : vector<1x8x8xbf16> to vector<8x8xbf16>
    %101 = tpu.concatenate %91, %94, %97, %100 in 1 : vector<8x8xbf16>, vector<8x8xbf16>, vector<8x8xbf16>, vector<8x8xbf16> -> vector<8x32xbf16>
    %cst_63 = arith.constant dense<0.000000e+00> : vector<8x32xf32>
    %102 = tpu.matmul %101, %3, %cst_63 {dimension_numbers = #tpu.dot_dimension_numbers<[1], [0], [0], [1], [0, 0, 1, 1], [], []>} : vector<8x32xbf16>, vector<32x32xbf16>, vector<8x32xf32> -> vector<8x32xf32>
    %103 = vector.broadcast %4 : vector<1x32xf32> to vector<8x32xf32>
    %104 = arith.addf %102, %103 : vector<8x32xf32>
    %105 = arith.addf %104, %21 : vector<8x32xf32>
    %cst_64 = arith.constant dense<0.000000e+00> : vector<8xf32>
    %106 = vector.multi_reduction <add>, %105, %cst_64 [1] : vector<8x32xf32> to vector<8xf32>
    %107 = vector.shape_cast %106 : vector<8xf32> to vector<8x1xf32>
    %cst_65 = arith.constant 3.200000e+01 : f32
    %108 = vector.broadcast %cst_65 : f32 to vector<8x1xf32>
    %109 = arith.divf %107, %108 : vector<8x1xf32>
    %110 = vector.broadcast %109 : vector<8x1xf32> to vector<8x32xf32>
    %111 = arith.subf %105, %110 : vector<8x32xf32>
    %112 = arith.mulf %111, %111 : vector<8x32xf32>
    %cst_66 = arith.constant dense<0.000000e+00> : vector<8xf32>
    %113 = vector.multi_reduction <add>, %112, %cst_66 [1] : vector<8x32xf32> to vector<8xf32>
    %114 = vector.shape_cast %113 : vector<8xf32> to vector<8x1xf32>
    %cst_67 = arith.constant 3.200000e+01 : f32
    %115 = vector.broadcast %cst_67 : f32 to vector<8x1xf32>
    %116 = arith.divf %114, %115 : vector<8x1xf32>
    %cst_68 = arith.constant 9.99999974E-6 : f32
    %117 = vector.broadcast %cst_68 : f32 to vector<8x1xf32>
    %118 = arith.addf %116, %117 : vector<8x1xf32>
    %119 = math.rsqrt %118 : vector<8x1xf32>
    %120 = vector.broadcast %119 : vector<8x1xf32> to vector<8x32xf32>
    %121 = arith.mulf %111, %120 : vector<8x32xf32>
    %122 = vector.broadcast %5 : vector<1x32xf32> to vector<8x32xf32>
    %123 = arith.mulf %121, %122 : vector<8x32xf32>
    %124 = vector.broadcast %6 : vector<1x32xf32> to vector<8x32xf32>
    %125 = arith.addf %123, %124 : vector<8x32xf32>
    %126 = arith.truncf %125 : vector<8x32xf32> to vector<8x32xbf16>
    %cst_69 = arith.constant dense<0.000000e+00> : vector<8x32xf32>
    %127 = tpu.matmul %126, %7, %cst_69 {dimension_numbers = #tpu.dot_dimension_numbers<[1], [0], [0], [1], [0, 0, 1, 1], [], []>} : vector<8x32xbf16>, vector<32x32xbf16>, vector<8x32xf32> -> vector<8x32xf32>
    %cst_70 = arith.constant dense<0.000000e+00> : vector<2x32xf32>
    %128 = tpu.matmul %27, %8, %cst_70 {dimension_numbers = #tpu.dot_dimension_numbers<[1], [0], [0], [1], [0, 0, 1, 1], [], []>} : vector<2x32xbf16>, vector<32x32xbf16>, vector<2x32xf32> -> vector<2x32xf32>
    %cst_71 = arith.constant dense<0.000000e+00> : vector<2x32xf32>
    %129 = tpu.matmul %27, %9, %cst_71 {dimension_numbers = #tpu.dot_dimension_numbers<[1], [0], [0], [1], [0, 0, 1, 1], [], []>} : vector<2x32xbf16>, vector<32x32xbf16>, vector<2x32xf32> -> vector<2x32xf32>
    %130 = vector.extract_strided_slice %127 {offsets = [0, 0], sizes = [8, 16], strides = [1, 1]} : vector<8x32xf32> to vector<8x16xf32>
    %131 = arith.truncf %130 : vector<8x16xf32> to vector<8x16xbf16>
    %132 = vector.shape_cast %131 : vector<8x16xbf16> to vector<1x8x16xbf16>
    %133 = vector.extract_strided_slice %127 {offsets = [0, 16], sizes = [8, 16], strides = [1, 1]} : vector<8x32xf32> to vector<8x16xf32>
    %134 = arith.truncf %133 : vector<8x16xf32> to vector<8x16xbf16>
    %135 = vector.shape_cast %134 : vector<8x16xbf16> to vector<1x8x16xbf16>
    %136 = tpu.concatenate %132, %135 in 0 : vector<1x8x16xbf16>, vector<1x8x16xbf16> -> vector<2x8x16xbf16>
    %137 = vector.extract_strided_slice %128 {offsets = [0, 0], sizes = [2, 16], strides = [1, 1]} : vector<2x32xf32> to vector<2x16xf32>
    %138 = arith.truncf %137 : vector<2x16xf32> to vector<2x16xbf16>
    %139 = vector.shape_cast %138 : vector<2x16xbf16> to vector<1x2x16xbf16>
    %140 = vector.extract_strided_slice %128 {offsets = [0, 16], sizes = [2, 16], strides = [1, 1]} : vector<2x32xf32> to vector<2x16xf32>
    %141 = arith.truncf %140 : vector<2x16xf32> to vector<2x16xbf16>
    %142 = vector.shape_cast %141 : vector<2x16xbf16> to vector<1x2x16xbf16>
    %143 = tpu.concatenate %139, %142 in 0 : vector<1x2x16xbf16>, vector<1x2x16xbf16> -> vector<2x2x16xbf16>
    %144 = vector.extract_strided_slice %129 {offsets = [0, 0], sizes = [2, 16], strides = [1, 1]} : vector<2x32xf32> to vector<2x16xf32>
    %145 = arith.truncf %144 : vector<2x16xf32> to vector<2x16xbf16>
    %146 = vector.shape_cast %145 : vector<2x16xbf16> to vector<1x2x16xbf16>
    %147 = vector.extract_strided_slice %129 {offsets = [0, 16], sizes = [2, 16], strides = [1, 1]} : vector<2x32xf32> to vector<2x16xf32>
    %148 = arith.truncf %147 : vector<2x16xf32> to vector<2x16xbf16>
    %149 = vector.shape_cast %148 : vector<2x16xbf16> to vector<1x2x16xbf16>
    %150 = tpu.concatenate %146, %149 in 0 : vector<1x2x16xbf16>, vector<1x2x16xbf16> -> vector<2x2x16xbf16>
    "tpu.trace_start"() <{level = 10 : i32, message = "gsd,gld->gsl"}> : () -> ()
    %cst_72 = arith.constant dense<0.000000e+00> : vector<2x8x2xf32>
    %151 = tpu.matmul %136, %143, %cst_72 {dimension_numbers = #tpu.dot_dimension_numbers<[2], [2], [1], [1], [0, 0, 0, 1, 1, 1], [0], [0]>} : vector<2x8x16xbf16>, vector<2x2x16xbf16>, vector<2x8x2xf32> -> vector<2x8x2xf32>
    "tpu.trace_stop"() : () -> ()
    %152 = tpu.concatenate %29, %29 in 0 : vector<1x8x1xf32>, vector<1x8x1xf32> -> vector<2x8x1xf32>
    %cst_73 = arith.constant 0.000000e+00 : f32
    %153 = vector.broadcast %cst_73 : f32 to vector<2x8x1xf32>
    %154 = arith.cmpf oeq, %152, %153 : vector<2x8x1xf32>
    %cst_74 = arith.constant -1.000000e+20 : f32
    %155 = vector.shape_cast %154 : vector<2x8x1xi1> to vector<2x8x1xi1>
    %156 = vector.broadcast %155 : vector<2x8x1xi1> to vector<2x8x2xi1>
    %157 = vector.broadcast %cst_74 : f32 to vector<2x8x2xf32>
    %158 = arith.select %156, %157, %151 : vector<2x8x2xi1>, vector<2x8x2xf32>
    %cst_75 = arith.constant dense<0xFF800000> : vector<2x8xf32>
    %159 = vector.multi_reduction <maximumf>, %158, %cst_75 [2] : vector<2x8x2xf32> to vector<2x8xf32>
    %160 = vector.shape_cast %159 : vector<2x8xf32> to vector<2x8x1xf32>
    %161 = vector.broadcast %160 : vector<2x8x1xf32> to vector<2x8x2xf32>
    %162 = arith.subf %158, %161 : vector<2x8x2xf32>
    %163 = math.exp %162 : vector<2x8x2xf32>
    %cst_76 = arith.constant dense<0.000000e+00> : vector<2x8xf32>
    %164 = vector.multi_reduction <add>, %163, %cst_76 [2] : vector<2x8x2xf32> to vector<2x8xf32>
    %165 = vector.shape_cast %164 : vector<2x8xf32> to vector<2x8x1xf32>
    %166 = tpu.reciprocal %165 {approx = true} : vector<2x8x1xf32> -> vector<2x8x1xf32>
    %167 = vector.broadcast %166 : vector<2x8x1xf32> to vector<2x8x2xf32>
    %168 = arith.mulf %163, %167 : vector<2x8x2xf32>
    %169 = arith.truncf %168 : vector<2x8x2xf32> to vector<2x8x2xbf16>
    "tpu.trace_start"() <{level = 10 : i32, message = "gsl,gld->gsd"}> : () -> ()
    %cst_77 = arith.constant dense<0.000000e+00> : vector<2x8x16xf32>
    %170 = tpu.matmul %169, %150, %cst_77 {dimension_numbers = #tpu.dot_dimension_numbers<[2], [1], [1], [2], [0, 0, 0, 1, 1, 2], [0], [0]>} : vector<2x8x2xbf16>, vector<2x2x16xbf16>, vector<2x8x16xf32> -> vector<2x8x16xf32>
    "tpu.trace_stop"() : () -> ()
    %171 = vector.extract_strided_slice %170 {offsets = [0, 0, 0], sizes = [1, 8, 16], strides = [1, 1, 1]} : vector<2x8x16xf32> to vector<1x8x16xf32>
    %172 = arith.truncf %171 : vector<1x8x16xf32> to vector<1x8x16xbf16>
    %173 = vector.shape_cast %172 : vector<1x8x16xbf16> to vector<8x16xbf16>
    %174 = vector.extract_strided_slice %170 {offsets = [1, 0, 0], sizes = [1, 8, 16], strides = [1, 1, 1]} : vector<2x8x16xf32> to vector<1x8x16xf32>
    %175 = arith.truncf %174 : vector<1x8x16xf32> to vector<1x8x16xbf16>
    %176 = vector.shape_cast %175 : vector<1x8x16xbf16> to vector<8x16xbf16>
    %177 = tpu.concatenate %173, %176 in 1 : vector<8x16xbf16>, vector<8x16xbf16> -> vector<8x32xbf16>
    %cst_78 = arith.constant dense<0.000000e+00> : vector<8x32xf32>
    %178 = tpu.matmul %177, %10, %cst_78 {dimension_numbers = #tpu.dot_dimension_numbers<[1], [0], [0], [1], [0, 0, 1, 1], [], []>} : vector<8x32xbf16>, vector<32x32xbf16>, vector<8x32xf32> -> vector<8x32xf32>
    %179 = vector.broadcast %11 : vector<1x32xf32> to vector<8x32xf32>
    %180 = arith.addf %178, %179 : vector<8x32xf32>
    %181 = arith.addf %125, %180 : vector<8x32xf32>
    %cst_79 = arith.constant dense<0.000000e+00> : vector<8xf32>
    %182 = vector.multi_reduction <add>, %181, %cst_79 [1] : vector<8x32xf32> to vector<8xf32>
    %183 = vector.shape_cast %182 : vector<8xf32> to vector<8x1xf32>
    %cst_80 = arith.constant 3.200000e+01 : f32
    %184 = vector.broadcast %cst_80 : f32 to vector<8x1xf32>
    %185 = arith.divf %183, %184 : vector<8x1xf32>
    %186 = vector.broadcast %185 : vector<8x1xf32> to vector<8x32xf32>
    %187 = arith.subf %181, %186 : vector<8x32xf32>
    %188 = arith.mulf %187, %187 : vector<8x32xf32>
    %cst_81 = arith.constant dense<0.000000e+00> : vector<8xf32>
    %189 = vector.multi_reduction <add>, %188, %cst_81 [1] : vector<8x32xf32> to vector<8xf32>
    %190 = vector.shape_cast %189 : vector<8xf32> to vector<8x1xf32>
    %cst_82 = arith.constant 3.200000e+01 : f32
    %191 = vector.broadcast %cst_82 : f32 to vector<8x1xf32>
    %192 = arith.divf %190, %191 : vector<8x1xf32>
    %cst_83 = arith.constant 9.99999974E-6 : f32
    %193 = vector.broadcast %cst_83 : f32 to vector<8x1xf32>
    %194 = arith.addf %192, %193 : vector<8x1xf32>
    %195 = math.rsqrt %194 : vector<8x1xf32>
    %196 = vector.broadcast %195 : vector<8x1xf32> to vector<8x32xf32>
    %197 = arith.mulf %187, %196 : vector<8x32xf32>
    %198 = vector.broadcast %12 : vector<1x32xf32> to vector<8x32xf32>
    %199 = arith.mulf %197, %198 : vector<8x32xf32>
    %200 = vector.broadcast %13 : vector<1x32xf32> to vector<8x32xf32>
    %201 = arith.addf %199, %200 : vector<8x32xf32>
    %202 = arith.truncf %201 : vector<8x32xf32> to vector<8x32xbf16>
    %cst_84 = arith.constant dense<0.000000e+00> : vector<8x128xf32>
    %203 = tpu.matmul %202, %14, %cst_84 {dimension_numbers = #tpu.dot_dimension_numbers<[1], [0], [0], [1], [0, 0, 1, 1], [], []>} : vector<8x32xbf16>, vector<32x128xbf16>, vector<8x128xf32> -> vector<8x128xf32>
    %204 = vector.broadcast %15 : vector<1x128xf32> to vector<8x128xf32>
    %205 = arith.addf %203, %204 : vector<8x128xf32>
    %cst_85 = arith.constant 0.000000e+00 : f32
    %206 = vector.broadcast %cst_85 : f32 to vector<8x128xf32>
    %207 = arith.maximumf %205, %206 : vector<8x128xf32>
    %208 = arith.truncf %207 : vector<8x128xf32> to vector<8x128xbf16>
    %cst_86 = arith.constant dense<0.000000e+00> : vector<8x32xf32>
    %209 = tpu.matmul %208, %16, %cst_86 {dimension_numbers = #tpu.dot_dimension_numbers<[1], [0], [0], [1], [0, 0, 1, 1], [], []>} : vector<8x128xbf16>, vector<128x32xbf16>, vector<8x32xf32> -> vector<8x32xf32>
    %210 = vector.broadcast %17 : vector<1x32xf32> to vector<8x32xf32>
    %211 = arith.addf %209, %210 : vector<8x32xf32>
    %212 = arith.addf %211, %201 : vector<8x32xf32>
    %cst_87 = arith.constant dense<0.000000e+00> : vector<8xf32>
    %213 = vector.multi_reduction <add>, %212, %cst_87 [1] : vector<8x32xf32> to vector<8xf32>
    %214 = vector.shape_cast %213 : vector<8xf32> to vector<8x1xf32>
    %cst_88 = arith.constant 3.200000e+01 : f32
    %215 = vector.broadcast %cst_88 : f32 to vector<8x1xf32>
    %216 = arith.divf %214, %215 : vector<8x1xf32>
    %217 = vector.broadcast %216 : vector<8x1xf32> to vector<8x32xf32>
    %218 = arith.subf %212, %217 : vector<8x32xf32>
    %219 = arith.mulf %218, %218 : vector<8x32xf32>
    %cst_89 = arith.constant dense<0.000000e+00> : vector<8xf32>
    %220 = vector.multi_reduction <add>, %219, %cst_89 [1] : vector<8x32xf32> to vector<8xf32>
    %221 = vector.shape_cast %220 : vector<8xf32> to vector<8x1xf32>
    %cst_90 = arith.constant 3.200000e+01 : f32
    %222 = vector.broadcast %cst_90 : f32 to vector<8x1xf32>
    %223 = arith.divf %221, %222 : vector<8x1xf32>
    %cst_91 = arith.constant 9.99999974E-6 : f32
    %224 = vector.broadcast %cst_91 : f32 to vector<8x1xf32>
    %225 = arith.addf %223, %224 : vector<8x1xf32>
    %226 = math.rsqrt %225 : vector<8x1xf32>
    %227 = vector.broadcast %226 : vector<8x1xf32> to vector<8x32xf32>
    %228 = arith.mulf %218, %227 : vector<8x32xf32>
    %229 = vector.broadcast %18 : vector<1x32xf32> to vector<8x32xf32>
    %230 = arith.mulf %228, %229 : vector<8x32xf32>
    %231 = vector.broadcast %19 : vector<1x32xf32> to vector<8x32xf32>
    %232 = arith.addf %230, %231 : vector<8x32xf32>
    %233 = vector.shape_cast %232 : vector<8x32xf32> to vector<1x8x32xf32>
    %c0_92 = arith.constant 0 : index
    %c0_93 = arith.constant 0 : index
    %c0_94 = arith.constant 0 : index
    %234 = vector.load %arg27[%c0_92, %c0_93, %c0_94] : memref<1x8x32xf32, #tpu.memory_space<vmem>>, vector<1x8x32xf32>
    tpu.vector_store %arg27[%c0_92, %c0_93, %c0_94], %233 {strides = array<i32>} : memref<1x8x32xf32, #tpu.memory_space<vmem>>, vector<1x8x32xf32>,
    return
  }
  func.func @transform_0(%arg0: i32) -> (i32, i32, i32) {
    %c0_i32 = arith.constant 0 : i32
    %c0_i32_0 = arith.constant 0 : i32
    %c0_i32_1 = arith.constant 0 : i32
    return %arg0, %c0_i32, %c0_i32_0 : i32, i32, i32
  }
  func.func @transform_1(%arg0: i32) -> (i32, i32, i32) {
    %c0_i32 = arith.constant 0 : i32
    %c0_i32_0 = arith.constant 0 : i32
    %c0_i32_1 = arith.constant 0 : i32
    return %arg0, %c0_i32, %c0_i32_0 : i32, i32, i32
  }
  func.func @transform_2(%arg0: i32) -> (i32, i32, i32) {
    %c0_i32 = arith.constant 0 : i32
    %c0_i32_0 = arith.constant 0 : i32
    %c0_i32_1 = arith.constant 0 : i32
    return %arg0, %c0_i32, %c0_i32_0 : i32, i32, i32
  }
  func.func @transform_3(%arg0: i32) -> (i32, i32, i32) {
    %c0_i32 = arith.constant 0 : i32
    %c0_i32_0 = arith.constant 0 : i32
    %c0_i32_1 = arith.constant 0 : i32
    return %arg0, %c0_i32, %c0_i32_0 : i32, i32, i32
  }
  func.func @transform_4(%arg0: i32) -> (i32, i32, i32) {
    %c0_i32 = arith.constant 0 : i32
    %c0_i32_0 = arith.constant 0 : i32
    %c0_i32_1 = arith.constant 0 : i32
    return %arg0, %c0_i32, %c0_i32_0 : i32, i32, i32
  }
  func.func @transform_5(%arg0: i32) -> (i32, i32, i32) {
    %c0_i32 = arith.constant 0 : i32
    %c0_i32_0 = arith.constant 0 : i32
    %c0_i32_1 = arith.constant 0 : i32
    return %arg0, %c0_i32, %c0_i32_0 : i32, i32, i32
  }
  func.func @transform_6(%arg0: i32) -> (i32, i32) {
    %c0_i32 = arith.constant 0 : i32
    %c0_i32_0 = arith.constant 0 : i32
    %c0_i32_1 = arith.constant 0 : i32
    return %c0_i32, %c0_i32_0 : i32, i32
  }
  func.func @transform_7(%arg0: i32) -> (i32, i32) {
    %c0_i32 = arith.constant 0 : i32
    %c0_i32_0 = arith.constant 0 : i32
    %c0_i32_1 = arith.constant 0 : i32
    return %c0_i32, %c0_i32_0 : i32, i32
  }
  func.func @transform_8(%arg0: i32) -> (i32, i32) {
    %c0_i32 = arith.constant 0 : i32
    %c0_i32_0 = arith.constant 0 : i32
    %c0_i32_1 = arith.constant 0 : i32
    return %c0_i32, %c0_i32_0 : i32, i32
  }
  func.func @transform_9(%arg0: i32) -> (i32, i32) {
    %c0_i32 = arith.constant 0 : i32
    %c0_i32_0 = arith.constant 0 : i32
    %c0_i32_1 = arith.constant 0 : i32
    return %c0_i32, %c0_i32_0 : i32, i32
  }
  func.func @transform_10(%arg0: i32) -> (i32, i32) {
    %c0_i32 = arith.constant 0 : i32
    %c0_i32_0 = arith.constant 0 : i32
    %c0_i32_1 = arith.constant 0 : i32
    return %c0_i32, %c0_i32_0 : i32, i32
  }
  func.func @transform_11(%arg0: i32) -> (i32, i32) {
    %c0_i32 = arith.constant 0 : i32
    %c0_i32_0 = arith.constant 0 : i32
    %c0_i32_1 = arith.constant 0 : i32
    return %c0_i32, %c0_i32_0 : i32, i32
  }
  func.func @transform_12(%arg0: i32) -> (i32, i32) {
    %c0_i32 = arith.constant 0 : i32
    %c0_i32_0 = arith.constant 0 : i32
    %c0_i32_1 = arith.constant 0 : i32
    return %c0_i32, %c0_i32_0 : i32, i32
  }
  func.func @transform_13(%arg0: i32) -> (i32, i32) {
    %c0_i32 = arith.constant 0 : i32
    %c0_i32_0 = arith.constant 0 : i32
    %c0_i32_1 = arith.constant 0 : i32
    return %c0_i32, %c0_i32_0 : i32, i32
  }
  func.func @transform_14(%arg0: i32) -> (i32, i32) {
    %c0_i32 = arith.constant 0 : i32
    %c0_i32_0 = arith.constant 0 : i32
    %c0_i32_1 = arith.constant 0 : i32
    return %c0_i32, %c0_i32_0 : i32, i32
  }
  func.func @transform_15(%arg0: i32) -> (i32, i32) {
    %c0_i32 = arith.constant 0 : i32
    %c0_i32_0 = arith.constant 0 : i32
    %c0_i32_1 = arith.constant 0 : i32
    return %c0_i32, %c0_i32_0 : i32, i32
  }
  func.func @transform_16(%arg0: i32) -> (i32, i32) {
    %c0_i32 = arith.constant 0 : i32
    %c0_i32_0 = arith.constant 0 : i32
    %c0_i32_1 = arith.constant 0 : i32
    return %c0_i32, %c0_i32_0 : i32, i32
  }
  func.func @transform_17(%arg0: i32) -> (i32, i32) {
    %c0_i32 = arith.constant 0 : i32
    %c0_i32_0 = arith.constant 0 : i32
    %c0_i32_1 = arith.constant 0 : i32
    return %c0_i32, %c0_i32_0 : i32, i32
  }
  func.func @transform_18(%arg0: i32) -> (i32, i32) {
    %c0_i32 = arith.constant 0 : i32
    %c0_i32_0 = arith.constant 0 : i32
    %c0_i32_1 = arith.constant 0 : i32
    return %c0_i32, %c0_i32_0 : i32, i32
  }
  func.func @transform_19(%arg0: i32) -> (i32, i32) {
    %c0_i32 = arith.constant 0 : i32
    %c0_i32_0 = arith.constant 0 : i32
    %c0_i32_1 = arith.constant 0 : i32
    return %c0_i32, %c0_i32_0 : i32, i32
  }
  func.func @transform_20(%arg0: i32) -> (i32, i32) {
    %c0_i32 = arith.constant 0 : i32
    %c0_i32_0 = arith.constant 0 : i32
    %c0_i32_1 = arith.constant 0 : i32
    return %c0_i32, %c0_i32_0 : i32, i32
  }
  func.func @transform_21(%arg0: i32) -> (i32, i32) {
    %c0_i32 = arith.constant 0 : i32
    %c0_i32_0 = arith.constant 0 : i32
    %c0_i32_1 = arith.constant 0 : i32
    return %c0_i32, %c0_i32_0 : i32, i32
  }
  func.func @transform_22(%arg0: i32) -> (i32, i32) {
    %c0_i32 = arith.constant 0 : i32
    %c0_i32_0 = arith.constant 0 : i32
    %c0_i32_1 = arith.constant 0 : i32
    return %c0_i32, %c0_i32_0 : i32, i32
  }
  func.func @transform_23(%arg0: i32) -> (i32, i32) {
    %c0_i32 = arith.constant 0 : i32
    %c0_i32_0 = arith.constant 0 : i32
    %c0_i32_1 = arith.constant 0 : i32
    return %c0_i32, %c0_i32_0 : i32, i32
  }
  func.func @transform_24(%arg0: i32) -> (i32, i32) {
    %c0_i32 = arith.constant 0 : i32
    %c0_i32_0 = arith.constant 0 : i32
    %c0_i32_1 = arith.constant 0 : i32
    return %c0_i32, %c0_i32_0 : i32, i32
  }
  func.func @transform_25(%arg0: i32) -> (i32, i32) {
    %c0_i32 = arith.constant 0 : i32
    %c0_i32_0 = arith.constant 0 : i32
    %c0_i32_1 = arith.constant 0 : i32
    return %c0_i32, %c0_i32_0 : i32, i32
  }
  func.func @transform_26(%arg0: i32) -> (i32, i32, i32) {
    %c0_i32 = arith.constant 0 : i32
    %c0_i32_0 = arith.constant 0 : i32
    %c0_i32_1 = arith.constant 0 : i32
    return %arg0, %c0_i32, %c0_i32_0 : i32, i32, i32
  }
}

module attributes {stable_mosaic.version = 11 : i64} {
  func.func @encoder_block_kernel(%arg0: i32, %arg1: memref<1x8x32xbf16, #tpu.memory_space<vmem>>, %arg2: memref<1x8x32xbf16, #tpu.memory_space<vmem>>, %arg3: memref<1x8x32xf32, #tpu.memory_space<vmem>>, %arg4: memref<1x2x32xbf16, #tpu.memory_space<vmem>>, %arg5: memref<1x1x8xf32, #tpu.memory_space<vmem>>, %arg6: memref<1x8x1xf32, #tpu.memory_space<vmem>>, %arg7: memref<32x32xbf16, #tpu.memory_space<vmem>>, %arg8: memref<32x32xbf16, #tpu.memory_space<vmem>>, %arg9: memref<32x32xbf16, #tpu.memory_space<vmem>>, %arg10: memref<32x32xbf16, #tpu.memory_space<vmem>>, %arg11: memref<1x32xf32, #tpu.memory_space<vmem>>, %arg12: memref<1x32xf32, #tpu.memory_space<vmem>>, %arg13: memref<1x32xf32, #tpu.memory_space<vmem>>, %arg14: memref<32x32xbf16, #tpu.memory_space<vmem>>, %arg15: memref<32x32xbf16, #tpu.memory_space<vmem>>, %arg16: memref<32x32xbf16, #tpu.memory_space<vmem>>, %arg17: memref<32x32xbf16, #tpu.memory_space<vmem>>, %arg18: memref<1x32xf32, #tpu.memory_space<vmem>>, %arg19: memref<1x32xf32, #tpu.memory_space<vmem>>, %arg20: memref<1x32xf32, #tpu.memory_space<vmem>>, %arg21: memref<32x128xbf16, #tpu.memory_space<vmem>>, %arg22: memref<1x128xf32, #tpu.memory_space<vmem>>, %arg23: memref<128x32xbf16, #tpu.memory_space<vmem>>, %arg24: memref<1x32xf32, #tpu.memory_space<vmem>>, %arg25: memref<1x32xf32, #tpu.memory_space<vmem>>, %arg26: memref<1x32xf32, #tpu.memory_space<vmem>>, %arg27: memref<1x8x32xf32, #tpu.memory_space<vmem>>) attributes {dimension_semantics = [#tpu.dimension_semantics<parallel>], iteration_bounds = array<i64: 2>, scalar_prefetch = 0 : i64, scratch_operands = 0 : i64, tpu.core_type = #tpu.core_type<tc>, window_params = [{transform_indices = @transform_0, window_bounds = array<i64: 1, 8, 32>}, {transform_indices = @transform_1, window_bounds = array<i64: 1, 8, 32>}, {transform_indices = @transform_2, window_bounds = array<i64: 1, 8, 32>}, {transform_indices = @transform_3, window_bounds = array<i64: 1, 2, 32>}, {transform_indices = @transform_4, window_bounds = array<i64: 1, 1, 8>}, {transform_indices = @transform_5, window_bounds = array<i64: 1, 8, 1>}, {pipeline_mode = #tpu.pipeline_mode<synchronous>, transform_indices = @transform_6, window_bounds = array<i64: 32, 32>}, {pipeline_mode = #tpu.pipeline_mode<synchronous>, transform_indices = @transform_7, window_bounds = array<i64: 32, 32>}, {pipeline_mode = #tpu.pipeline_mode<synchronous>, transform_indices = @transform_8, window_bounds = array<i64: 32, 32>}, {pipeline_mode = #tpu.pipeline_mode<synchronous>, transform_indices = @transform_9, window_bounds = array<i64: 32, 32>}, {pipeline_mode = #tpu.pipeline_mode<synchronous>, transform_indices = @transform_10, window_bounds = array<i64: 1, 32>}, {pipeline_mode = #tpu.pipeline_mode<synchronous>, transform_indices = @transform_11, window_bounds = array<i64: 1, 32>}, {pipeline_mode = #tpu.pipeline_mode<synchronous>, transform_indices = @transform_12, window_bounds = array<i64: 1, 32>}, {pipeline_mode = #tpu.pipeline_mode<synchronous>, transform_indices = @transform_13, window_bounds = array<i64: 32, 32>}, {pipeline_mode = #tpu.pipeline_mode<synchronous>, transform_indices = @transform_14, window_bounds = array<i64: 32, 32>}, {pipeline_mode = #tpu.pipeline_mode<synchronous>, transform_indices = @transform_15, window_bounds = array<i64: 32, 32>}, {pipeline_mode = #tpu.pipeline_mode<synchronous>, transform_indices = @transform_16, window_bounds = array<i64: 32, 32>}, {pipeline_mode = #tpu.pipeline_mode<synchronous>, transform_indices = @transform_17, window_bounds = array<i64: 1, 32>}, {pipeline_mode = #tpu.pipeline_mode<synchronous>, transform_indices = @transform_18, window_bounds = array<i64: 1, 32>}, {pipeline_mode = #tpu.pipeline_mode<synchronous>, transform_indices = @transform_19, window_bounds = array<i64: 1, 32>}, {pipeline_mode = #tpu.pipeline_mode<synchronous>, transform_indices = @transform_20, window_bounds = array<i64: 32, 128>}, {pipeline_mode = #tpu.pipeline_mode<synchronous>, transform_indices = @transform_21, window_bounds = array<i64: 1, 128>}, {pipeline_mode = #tpu.pipeline_mode<synchronous>, transform_indices = @transform_22, window_bounds = array<i64: 128, 32>}, {pipeline_mode = #tpu.pipeline_mode<synchronous>, transform_indices = @transform_23, window_bounds = array<i64: 1, 32>}, {pipeline_mode = #tpu.pipeline_mode<synchronous>, transform_indices = @transform_24, window_bounds = array<i64: 1, 32>}, {pipeline_mode = #tpu.pipeline_mode<synchronous>, transform_indices = @transform_25, window_bounds = array<i64: 1, 32>}, {transform_indices = @transform_26, window_bounds = array<i64: 1, 8, 32>}]} {
    %c0 = arith.constant 0 : index
    %c0_0 = arith.constant 0 : index
    %0 = vector.load %arg7[%c0, %c0_0] : memref<32x32xbf16, #tpu.memory_space<vmem>>, vector<32x32xbf16>
    %c0_1 = arith.constant 0 : index
    %c0_2 = arith.constant 0 : index
    %1 = vector.load %arg8[%c0_1, %c0_2] : memref<32x32xbf16, #tpu.memory_space<vmem>>, vector<32x32xbf16>
    %c0_3 = arith.constant 0 : index
    %c0_4 = arith.constant 0 : index
    %2 = vector.load %arg9[%c0_3, %c0_4] : memref<32x32xbf16, #tpu.memory_space<vmem>>, vector<32x32xbf16>
    %c0_5 = arith.constant 0 : index
    %c0_6 = arith.constant 0 : index
    %3 = vector.load %arg10[%c0_5, %c0_6] : memref<32x32xbf16, #tpu.memory_space<vmem>>, vector<32x32xbf16>
    %c0_7 = arith.constant 0 : index
    %c0_8 = arith.constant 0 : index
    %4 = vector.load %arg11[%c0_7, %c0_8] : memref<1x32xf32, #tpu.memory_space<vmem>>, vector<1x32xf32>
    %c0_9 = arith.constant 0 : index
    %c0_10 = arith.constant 0 : index
    %5 = vector.load %arg12[%c0_9, %c0_10] : memref<1x32xf32, #tpu.memory_space<vmem>>, vector<1x32xf32>
    %c0_11 = arith.constant 0 : index
    %c0_12 = arith.constant 0 : index
    %6 = vector.load %arg13[%c0_11, %c0_12] : memref<1x32xf32, #tpu.memory_space<vmem>>, vector<1x32xf32>
    %c0_13 = arith.constant 0 : index
    %c0_14 = arith.constant 0 : index
    %7 = vector.load %arg14[%c0_13, %c0_14] : memref<32x32xbf16, #tpu.memory_space<vmem>>, vector<32x32xbf16>
    %c0_15 = arith.constant 0 : index
    %c0_16 = arith.constant 0 : index
    %8 = vector.load %arg15[%c0_15, %c0_16] : memref<32x32xbf16, #tpu.memory_space<vmem>>, vector<32x32xbf16>
    %c0_17 = arith.constant 0 : index
    %c0_18 = arith.constant 0 : index
    %9 = vector.load %arg16[%c0_17, %c0_18] : memref<32x32xbf16, #tpu.memory_space<vmem>>, vector<32x32xbf16>
    %c0_19 = arith.constant 0 : index
    %c0_20 = arith.constant 0 : index
    %10 = vector.load %arg17[%c0_19, %c0_20] : memref<32x32xbf16, #tpu.memory_space<vmem>>, vector<32x32xbf16>
    %c0_21 = arith.constant 0 : index
    %c0_22 = arith.constant 0 : index
    %11 = vector.load %arg18[%c0_21, %c0_22] : memref<1x32xf32, #tpu.memory_space<vmem>>, vector<1x32xf32>
    %c0_23 = arith.constant 0 : index
    %c0_24 = arith.constant 0 : index
    %12 = vector.load %arg19[%c0_23, %c0_24] : memref<1x32xf32, #tpu.memory_space<vmem>>, vector<1x32xf32>
    %c0_25 = arith.constant 0 : index
    %c0_26 = arith.constant 0 : index
    %13 = vector.load %arg20[%c0_25, %c0_26] : memref<1x32xf32, #tpu.memory_space<vmem>>, vector<1x32xf32>
    %c0_27 = arith.constant 0 : index
    %c0_28 = arith.constant 0 : index
    %14 = vector.load %arg21[%c0_27, %c0_28] : memref<32x128xbf16, #tpu.memory_space<vmem>>, vector<32x128xbf16>
    %c0_29 = arith.constant 0 : index
    %c0_30 = arith.constant 0 : index
    %15 = vector.load %arg22[%c0_29, %c0_30] : memref<1x128xf32, #tpu.memory_space<vmem>>, vector<1x128xf32>
    %c0_31 = arith.constant 0 : index
    %c0_32 = arith.constant 0 : index
    %16 = vector.load %arg23[%c0_31, %c0_32] : memref<128x32xbf16, #tpu.memory_space<vmem>>, vector<128x32xbf16>
    %c0_33 = arith.constant 0 : index
    %c0_34 = arith.constant 0 : index
    %17 = vector.load %arg24[%c0_33, %c0_34] : memref<1x32xf32, #tpu.memory_space<vmem>>, vector<1x32xf32>
    %c0_35 = arith.constant 0 : index
    %c0_36 = arith.constant 0 : index
    %18 = vector.load %arg25[%c0_35, %c0_36] : memref<1x32xf32, #tpu.memory_space<vmem>>, vector<1x32xf32>
    %c0_37 = arith.constant 0 : index
    %c0_38 = arith.constant 0 : index
    %19 = vector.load %arg26[%c0_37, %c0_38] : memref<1x32xf32, #tpu.memory_space<vmem>>, vector<1x32xf32>
    %c0_39 = arith.constant 0 : index
    %c0_40 = arith.constant 0 : index
    %c0_41 = arith.constant 0 : index
    %20 = vector.load %arg3[%c0_39, %c0_40, %c0_41] : memref<1x8x32xf32, #tpu.memory_space<vmem>>, vector<1x8x32xf32>
    %21 = vector.shape_cast %20 : vector<1x8x32xf32> to vector<8x32xf32>
    %c0_42 = arith.constant 0 : index
    %c0_43 = arith.constant 0 : index
    %c0_44 = arith.constant 0 : index
    %22 = vector.load %arg1[%c0_42, %c0_43, %c0_44] : memref<1x8x32xbf16, #tpu.memory_space<vmem>>, vector<1x8x32xbf16>
    %23 = vector.shape_cast %22 : vector<1x8x32xbf16> to vector<8x32xbf16>
    %c0_45 = arith.constant 0 : index
    %c0_46 = arith.constant 0 : index
    %c0_47 = arith.constant 0 : index
    %24 = vector.load %arg2[%c0_45, %c0_46, %c0_47] : memref<1x8x32xbf16, #tpu.memory_space<vmem>>, vector<1x8x32xbf16>
    %25 = vector.shape_cast %24 : vector<1x8x32xbf16> to vector<8x32xbf16>
    %c0_48 = arith.constant 0 : index
    %c0_49 = arith.constant 0 : index
    %c0_50 = arith.constant 0 : index
    %26 = vector.load %arg4[%c0_48, %c0_49, %c0_50] : memref<1x2x32xbf16, #tpu.memory_space<vmem>>, vector<1x2x32xbf16>
    %27 = vector.shape_cast %26 : vector<1x2x32xbf16> to vector<2x32xbf16>
    %c0_51 = arith.constant 0 : index
    %c0_52 = arith.constant 0 : index
    %c0_53 = arith.constant 0 : index
    %28 = vector.load %arg5[%c0_51, %c0_52, %c0_53] : memref<1x1x8xf32, #tpu.memory_space<vmem>>, vector<1x1x8xf32>
    %c0_54 = arith.constant 0 : index
    %c0_55 = arith.constant 0 : index
    %c0_56 = arith.constant 0 : index
    %29 = vector.load %arg6[%c0_54, %c0_55, %c0_56] : memref<1x8x1xf32, #tpu.memory_space<vmem>>, vector<1x8x1xf32>
    %30 = arith.truncf %21 : vector<8x32xf32> to vector<8x32xbf16>
    %cst = arith.constant dense<0.000000e+00> : vector<8x32xf32>
    %31 = tpu.matmul %30, %0, %cst {dimension_numbers = #tpu.dot_dimension_numbers<[1], [0], [0], [1], [0, 0, 1, 1], [], []>} : vector<8x32xbf16>, vector<32x32xbf16>, vector<8x32xf32> -> vector<8x32xf32>
    %cst_57 = arith.constant dense<0.000000e+00> : vector<8x32xf32>
    %32 = tpu.matmul %25, %1, %cst_57 {dimension_numbers = #tpu.dot_dimension_numbers<[1], [0], [0], [1], [0, 0, 1, 1], [], []>} : vector<8x32xbf16>, vector<32x32xbf16>, vector<8x32xf32> -> vector<8x32xf32>
    %cst_58 = arith.constant dense<0.000000e+00> : vector<8x32xf32>
    %33 = tpu.matmul %23, %2, %cst_58 {dimension_numbers = #tpu.dot_dimension_numbers<[1], [0], [0], [1], [0, 0, 1, 1], [], []>} : vector<8x32xbf16>, vector<32x32xbf16>, vector<8x32xf32> -> vector<8x32xf32>
    %34 = vector.extract_strided_slice %31 {offsets = [0, 0], sizes = [8, 8], strides = [1, 1]} : vector<8x32xf32> to vector<8x8xf32>
    %35 = arith.truncf %34 : vector<8x8xf32> to vector<8x8xbf16>
    %36 = vector.shape_cast %35 : vector<8x8xbf16> to vector<1x8x8xbf16>
    %37 = vector.extract_strided_slice %31 {offsets = [0, 8], sizes = [8, 8], strides = [1, 1]} : vector<8x32xf32> to vector<8x8xf32>
    %38 = arith.truncf %37 : vector<8x8xf32> to vector<8x8xbf16>
    %39 = vector.shape_cast %38 : vector<8x8xbf16> to vector<1x8x8xbf16>
    %40 = vector.extract_strided_slice %31 {offsets = [0, 16], sizes = [8, 8], strides = [1, 1]} : vector<8x32xf32> to vector<8x8xf32>
    %41 = arith.truncf %40 : vector<8x8xf32> to vector<8x8xbf16>
    %42 = vector.shape_cast %41 : vector<8x8xbf16> to vector<1x8x8xbf16>
    %43 = vector.extract_strided_slice %31 {offsets = [0, 24], sizes = [8, 8], strides = [1, 1]} : vector<8x32xf32> to vector<8x8xf32>
    %44 = arith.truncf %43 : vector<8x8xf32> to vector<8x8xbf16>
    %45 = vector.shape_cast %44 : vector<8x8xbf16> to vector<1x8x8xbf16>
    %46 = tpu.concatenate %36, %39, %42, %45 in 0 : vector<1x8x8xbf16>, vector<1x8x8xbf16>, vector<1x8x8xbf16>, vector<1x8x8xbf16> -> vector<4x8x8xbf16>
    %47 = vector.extract_strided_slice %32 {offsets = [0, 0], sizes = [8, 8], strides = [1, 1]} : vector<8x32xf32> to vector<8x8xf32>
    %48 = arith.truncf %47 : vector<8x8xf32> to vector<8x8xbf16>
    %49 = vector.shape_cast %48 : vector<8x8xbf16> to vector<1x8x8xbf16>
    %50 = vector.extract_strided_slice %32 {offsets = [0, 8], sizes = [8, 8], strides = [1, 1]} : vector<8x32xf32> to vector<8x8xf32>
    %51 = arith.truncf %50 : vector<8x8xf32> to vector<8x8xbf16>
    %52 = vector.shape_cast %51 : vector<8x8xbf16> to vector<1x8x8xbf16>
    %53 = vector.extract_strided_slice %32 {offsets = [0, 16], sizes = [8, 8], strides = [1, 1]} : vector<8x32xf32> to vector<8x8xf32>
    %54 = arith.truncf %53 : vector<8x8xf32> to vector<8x8xbf16>
    %55 = vector.shape_cast %54 : vector<8x8xbf16> to vector<1x8x8xbf16>
    %56 = vector.extract_strided_slice %32 {offsets = [0, 24], sizes = [8, 8], strides = [1, 1]} : vector<8x32xf32> to vector<8x8xf32>
    %57 = arith.truncf %56 : vector<8x8xf32> to vector<8x8xbf16>
    %58 = vector.shape_cast %57 : vector<8x8xbf16> to vector<1x8x8xbf16>
    %59 = tpu.concatenate %49, %52, %55, %58 in 0 : vector<1x8x8xbf16>, vector<1x8x8xbf16>, vector<1x8x8xbf16>, vector<1x8x8xbf16> -> vector<4x8x8xbf16>
    %60 = vector.extract_strided_slice %33 {offsets = [0, 0], sizes = [8, 8], strides = [1, 1]} : vector<8x32xf32> to vector<8x8xf32>
    %61 = arith.truncf %60 : vector<8x8xf32> to vector<8x8xbf16>
    %62 = vector.shape_cast %61 : vector<8x8xbf16> to vector<1x8x8xbf16>
    %63 = vector.extract_strided_slice %33 {offsets = [0, 8], sizes = [8, 8], strides = [1, 1]} : vector<8x32xf32> to vector<8x8xf32>
    %64 = arith.truncf %63 : vector<8x8xf32> to vector<8x8xbf16>
    %65 = vector.shape_cast %64 : vector<8x8xbf16> to vector<1x8x8xbf16>
    %66 = vector.extract_strided_slice %33 {offsets = [0, 16], sizes = [8, 8], strides = [1, 1]} : vector<8x32xf32> to vector<8x8xf32>
    %67 = arith.truncf %66 : vector<8x8xf32> to vector<8x8xbf16>
    %68 = vector.shape_cast %67 : vector<8x8xbf16> to vector<1x8x8xbf16>
    %69 = vector.extract_strided_slice %33 {offsets = [0, 24], sizes = [8, 8], strides = [1, 1]} : vector<8x32xf32> to vector<8x8xf32>
    %70 = arith.truncf %69 : vector<8x8xf32> to vector<8x8xbf16>
    %71 = vector.shape_cast %70 : vector<8x8xbf16> to vector<1x8x8xbf16>
    %72 = tpu.concatenate %62, %65, %68, %71 in 0 : vector<1x8x8xbf16>, vector<1x8x8xbf16>, vector<1x8x8xbf16>, vector<1x8x8xbf16> -> vector<4x8x8xbf16>
    "tpu.trace_start"() <{level = 10 : i32, message = "gqd,gkd->gqk"}> : () -> ()
    %cst_59 = arith.constant dense<0.000000e+00> : vector<4x8x8xf32>
    %73 = tpu.matmul %46, %59, %cst_59 {dimension_numbers = #tpu.dot_dimension_numbers<[2], [2], [1], [1], [0, 0, 0, 1, 1, 1], [0], [0]>} : vector<4x8x8xbf16>, vector<4x8x8xbf16>, vector<4x8x8xf32> -> vector<4x8x8xf32>
    "tpu.trace_stop"() : () -> ()
    %74 = tpu.concatenate %28, %28, %28, %28 in 0 : vector<1x1x8xf32>, vector<1x1x8xf32>, vector<1x1x8xf32>, vector<1x1x8xf32> -> vector<4x1x8xf32>
    %75 = vector.broadcast %74 : vector<4x1x8xf32> to vector<4x8x8xf32>
    %76 = arith.addf %73, %75 : vector<4x8x8xf32>
    %cst_60 = arith.constant dense<0xFF800000> : vector<4x8xf32>
    %77 = vector.multi_reduction <maximumf>, %76, %cst_60 [2] : vector<4x8x8xf32> to vector<4x8xf32>
    %78 = vector.shape_cast %77 : vector<4x8xf32> to vector<4x8x1xf32>
    %79 = vector.broadcast %78 : vector<4x8x1xf32> to vector<4x8x8xf32>
    %80 = arith.subf %76, %79 : vector<4x8x8xf32>
    %81 = math.exp %80 : vector<4x8x8xf32>
    %cst_61 = arith.constant dense<0.000000e+00> : vector<4x8xf32>
    %82 = vector.multi_reduction <add>, %81, %cst_61 [2] : vector<4x8x8xf32> to vector<4x8xf32>
    %83 = vector.shape_cast %82 : vector<4x8xf32> to vector<4x8x1xf32>
    %84 = tpu.reciprocal %83 {approx = true} : vector<4x8x1xf32> -> vector<4x8x1xf32>
    %85 = vector.broadcast %84 : vector<4x8x1xf32> to vector<4x8x8xf32>
    %86 = arith.mulf %81, %85 : vector<4x8x8xf32>
    %87 = arith.truncf %86 : vector<4x8x8xf32> to vector<4x8x8xbf16>
    "tpu.trace_start"() <{level = 10 : i32, message = "gqk,gkd->gqd"}> : () -> ()
    %cst_62 = arith.constant dense<0.000000e+00> : vector<4x8x8xf32>
    %88 = tpu.matmul %87, %72, %cst_62 {dimension_numbers = #tpu.dot_dimension_numbers<[2], [1], [1], [2], [0, 0, 0, 1, 1, 2], [0], [0]>} : vector<4x8x8xbf16>, vector<4x8x8xbf16>, vector<4x8x8xf32> -> vector<4x8x8xf32>
    "tpu.trace_stop"() : () -> ()
    %89 = vector.extract_strided_slice %88 {offsets = [0, 0, 0], sizes = [1, 8, 8], strides = [1, 1, 1]} : vector<4x8x8xf32> to vector<1x8x8xf32>
    %90 = arith.truncf %89 : vector<1x8x8xf32> to vector<1x8x8xbf16>
    %91 = vector.shape_cast %90 : vector<1x8x8xbf16> to vector<8x8xbf16>
    %92 = vector.extract_strided_slice %88 {offsets = [1, 0, 0], sizes = [1, 8, 8], strides = [1, 1, 1]} : vector<4x8x8xf32> to vector<1x8x8xf32>
    %93 = arith.truncf %92 : vector<1x8x8xf32> to vector<1x8x8xbf16>
    %94 = vector.shape_cast %93 : vector<1x8x8xbf16> to vector<8x8xbf16>
    %95 = vector.extract_strided_slice %88 {offsets = [2, 0, 0], sizes = [1, 8, 8], strides = [1, 1, 1]} : vector<4x8x8xf32> to vector<1x8x8xf32>
    %96 = arith.truncf %95 : vector<1x8x8xf32> to vector<1x8x8xbf16>
    %97 = vector.shape_cast %96 : vector<1x8x8xbf16> to vector<8x8xbf16>
    %98 = vector.extract_strided_slice %88 {offsets = [3, 0, 0], sizes = [1, 8, 8], strides = [1, 1, 1]} : vector<4x8x8xf32> to vector<1x8x8xf32>
    %99 = arith.truncf %98 : vector<1x8x8xf32> to vector<1x8x8xbf16>
    %100 = vector.shape_cast %99 : vector<1x8x8xbf16> to vector<8x8xbf16>
    %101 = tpu.concatenate %91, %94, %97, %100 in 1 : vector<8x8xbf16>, vector<8x8xbf16>, vector<8x8xbf16>, vector<8x8xbf16> -> vector<8x32xbf16>
    %cst_63 = arith.constant dense<0.000000e+00> : vector<8x32xf32>
    %102 = tpu.matmul %101, %3, %cst_63 {dimension_numbers = #tpu.dot_dimension_numbers<[1], [0], [0], [1], [0, 0, 1, 1], [], []>} : vector<8x32xbf16>, vector<32x32xbf16>, vector<8x32xf32> -> vector<8x32xf32>
    %103 = vector.broadcast %4 : vector<1x32xf32> to vector<8x32xf32>
    %104 = arith.addf %102, %103 : vector<8x32xf32>
    %105 = arith.addf %104, %21 : vector<8x32xf32>
    %cst_64 = arith.constant dense<0.000000e+00> : vector<8xf32>
    %106 = vector.multi_reduction <add>, %105, %cst_64 [1] : vector<8x32xf32> to vector<8xf32>
    %107 = vector.shape_cast %106 : vector<8xf32> to vector<8x1xf32>
    %cst_65 = arith.constant 3.200000e+01 : f32
    %108 = vector.broadcast %cst_65 : f32 to vector<8x1xf32>
    %109 = arith.divf %107, %108 : vector<8x1xf32>
    %110 = vector.broadcast %109 : vector<8x1xf32> to vector<8x32xf32>
    %111 = arith.subf %105, %110 : vector<8x32xf32>
    %112 = arith.mulf %111, %111 : vector<8x32xf32>
    %cst_66 = arith.constant dense<0.000000e+00> : vector<8xf32>
    %113 = vector.multi_reduction <add>, %112, %cst_66 [1] : vector<8x32xf32> to vector<8xf32>
    %114 = vector.shape_cast %113 : vector<8xf32> to vector<8x1xf32>
    %cst_67 = arith.constant 3.200000e+01 : f32
    %115 = vector.broadcast %cst_67 : f32 to vector<8x1xf32>
    %116 = arith.divf %114, %115 : vector<8x1xf32>
    %cst_68 = arith.constant 9.99999974E-6 : f32
    %117 = vector.broadcast %cst_68 : f32 to vector<8x1xf32>
    %118 = arith.addf %116, %117 : vector<8x1xf32>
    %119 = math.rsqrt %118 : vector<8x1xf32>
    %120 = vector.broadcast %119 : vector<8x1xf32> to vector<8x32xf32>
    %121 = arith.mulf %111, %120 : vector<8x32xf32>
    %122 = vector.broadcast %5 : vector<1x32xf32> to vector<8x32xf32>
    %123 = arith.mulf %121, %122 : vector<8x32xf32>
    %124 = vector.broadcast %6 : vector<1x32xf32> to vector<8x32xf32>
    %125 = arith.addf %123, %124 : vector<8x32xf32>
    %126 = arith.truncf %125 : vector<8x32xf32> to vector<8x32xbf16>
    %cst_69 = arith.constant dense<0.000000e+00> : vector<8x32xf32>
    %127 = tpu.matmul %126, %7, %cst_69 {dimension_numbers = #tpu.dot_dimension_numbers<[1], [0], [0], [1], [0, 0, 1, 1], [], []>} : vector<8x32xbf16>, vector<32x32xbf16>, vector<8x32xf32> -> vector<8x32xf32>
    %cst_70 = arith.constant dense<0.000000e+00> : vector<2x32xf32>
    %128 = tpu.matmul %27, %8, %cst_70 {dimension_numbers = #tpu.dot_dimension_numbers<[1], [0], [0], [1], [0, 0, 1, 1], [], []>} : vector<2x32xbf16>, vector<32x32xbf16>, vector<2x32xf32> -> vector<2x32xf32>
    %cst_71 = arith.constant dense<0.000000e+00> : vector<2x32xf32>
    %129 = tpu.matmul %27, %9, %cst_71 {dimension_numbers = #tpu.dot_dimension_numbers<[1], [0], [0], [1], [0, 0, 1, 1], [], []>} : vector<2x32xbf16>, vector<32x32xbf16>, vector<2x32xf32> -> vector<2x32xf32>
    %130 = vector.extract_strided_slice %127 {offsets = [0, 0], sizes = [8, 16], strides = [1, 1]} : vector<8x32xf32> to vector<8x16xf32>
    %131 = arith.truncf %130 : vector<8x16xf32> to vector<8x16xbf16>
    %132 = vector.shape_cast %131 : vector<8x16xbf16> to vector<1x8x16xbf16>
    %133 = vector.extract_strided_slice %127 {offsets = [0, 16], sizes = [8, 16], strides = [1, 1]} : vector<8x32xf32> to vector<8x16xf32>
    %134 = arith.truncf %133 : vector<8x16xf32> to vector<8x16xbf16>
    %135 = vector.shape_cast %134 : vector<8x16xbf16> to vector<1x8x16xbf16>
    %136 = tpu.concatenate %132, %135 in 0 : vector<1x8x16xbf16>, vector<1x8x16xbf16> -> vector<2x8x16xbf16>
    %137 = vector.extract_strided_slice %128 {offsets = [0, 0], sizes = [2, 16], strides = [1, 1]} : vector<2x32xf32> to vector<2x16xf32>
    %138 = arith.truncf %137 : vector<2x16xf32> to vector<2x16xbf16>
    %139 = vector.shape_cast %138 : vector<2x16xbf16> to vector<1x2x16xbf16>
    %140 = vector.extract_strided_slice %128 {offsets = [0, 16], sizes = [2, 16], strides = [1, 1]} : vector<2x32xf32> to vector<2x16xf32>
    %141 = arith.truncf %140 : vector<2x16xf32> to vector<2x16xbf16>
    %142 = vector.shape_cast %141 : vector<2x16xbf16> to vector<1x2x16xbf16>
    %143 = tpu.concatenate %139, %142 in 0 : vector<1x2x16xbf16>, vector<1x2x16xbf16> -> vector<2x2x16xbf16>
    %144 = vector.extract_strided_slice %129 {offsets = [0, 0], sizes = [2, 16], strides = [1, 1]} : vector<2x32xf32> to vector<2x16xf32>
    %145 = arith.truncf %144 : vector<2x16xf32> to vector<2x16xbf16>
    %146 = vector.shape_cast %145 : vector<2x16xbf16> to vector<1x2x16xbf16>
    %147 = vector.extract_strided_slice %129 {offsets = [0, 16], sizes = [2, 16], strides = [1, 1]} : vector<2x32xf32> to vector<2x16xf32>
    %148 = arith.truncf %147 : vector<2x16xf32> to vector<2x16xbf16>
    %149 = vector.shape_cast %148 : vector<2x16xbf16> to vector<1x2x16xbf16>
    %150 = tpu.concatenate %146, %149 in 0 : vector<1x2x16xbf16>, vector<1x2x16xbf16> -> vector<2x2x16xbf16>
    "tpu.trace_start"() <{level = 10 : i32, message = "gsd,gld->gsl"}> : () -> ()
    %cst_72 = arith.constant dense<0.000000e+00> : vector<2x8x2xf32>
    %151 = tpu.matmul %136, %143, %cst_72 {dimension_numbers = #tpu.dot_dimension_numbers<[2], [2], [1], [1], [0, 0, 0, 1, 1, 1], [0], [0]>} : vector<2x8x16xbf16>, vector<2x2x16xbf16>, vector<2x8x2xf32> -> vector<2x8x2xf32>
    "tpu.trace_stop"() : () -> ()
    %152 = tpu.concatenate %29, %29 in 0 : vector<1x8x1xf32>, vector<1x8x1xf32> -> vector<2x8x1xf32>
    %cst_73 = arith.constant 0.000000e+00 : f32
    %153 = vector.broadcast %cst_73 : f32 to vector<2x8x1xf32>
    %154 = arith.cmpf oeq, %152, %153 : vector<2x8x1xf32>
    %cst_74 = arith.constant -1.000000e+20 : f32
    %155 = vector.shape_cast %154 : vector<2x8x1xi1> to vector<2x8x1xi1>
    %156 = vector.broadcast %155 : vector<2x8x1xi1> to vector<2x8x2xi1>
    %157 = vector.broadcast %cst_74 : f32 to vector<2x8x2xf32>
    %158 = arith.select %156, %157, %151 : vector<2x8x2xi1>, vector<2x8x2xf32>
    %cst_75 = arith.constant dense<0xFF800000> : vector<2x8xf32>
    %159 = vector.multi_reduction <maximumf>, %158, %cst_75 [2] : vector<2x8x2xf32> to vector<2x8xf32>
    %160 = vector.shape_cast %159 : vector<2x8xf32> to vector<2x8x1xf32>
    %161 = vector.broadcast %160 : vector<2x8x1xf32> to vector<2x8x2xf32>
    %162 = arith.subf %158, %161 : vector<2x8x2xf32>
    %163 = math.exp %162 : vector<2x8x2xf32>
    %cst_76 = arith.constant dense<0.000000e+00> : vector<2x8xf32>
    %164 = vector.multi_reduction <add>, %163, %cst_76 [2] : vector<2x8x2xf32> to vector<2x8xf32>
    %165 = vector.shape_cast %164 : vector<2x8xf32> to vector<2x8x1xf32>
    %166 = tpu.reciprocal %165 {approx = true} : vector<2x8x1xf32> -> vector<2x8x1xf32>
    %167 = vector.broadcast %166 : vector<2x8x1xf32> to vector<2x8x2xf32>
    %168 = arith.mulf %163, %167 : vector<2x8x2xf32>
    %169 = arith.truncf %168 : vector<2x8x2xf32> to vector<2x8x2xbf16>
    "tpu.trace_start"() <{level = 10 : i32, message = "gsl,gld->gsd"}> : () -> ()
    %cst_77 = arith.constant dense<0.000000e+00> : vector<2x8x16xf32>
    %170 = tpu.matmul %169, %150, %cst_77 {dimension_numbers = #tpu.dot_dimension_numbers<[2], [1], [1], [2], [0, 0, 0, 1, 1, 2], [0], [0]>} : vector<2x8x2xbf16>, vector<2x2x16xbf16>, vector<2x8x16xf32> -> vector<2x8x16xf32>
    "tpu.trace_stop"() : () -> ()
    %171 = vector.extract_strided_slice %170 {offsets = [0, 0, 0], sizes = [1, 8, 16], strides = [1, 1, 1]} : vector<2x8x16xf32> to vector<1x8x16xf32>
    %172 = arith.truncf %171 : vector<1x8x16xf32> to vector<1x8x16xbf16>
    %173 = vector.shape_cast %172 : vector<1x8x16xbf16> to vector<8x16xbf16>
    %174 = vector.extract_strided_slice %170 {offsets = [1, 0, 0], sizes = [1, 8, 16], strides = [1, 1, 1]} : vector<2x8x16xf32> to vector<1x8x16xf32>
    %175 = arith.truncf %174 : vector<1x8x16xf32> to vector<1x8x16xbf16>
    %176 = vector.shape_cast %175 : vector<1x8x16xbf16> to vector<8x16xbf16>
    %177 = tpu.concatenate %173, %176 in 1 : vector<8x16xbf16>, vector<8x16xbf16> -> vector<8x32xbf16>
    %cst_78 = arith.constant dense<0.000000e+00> : vector<8x32xf32>
    %178 = tpu.matmul %177, %10, %cst_78 {dimension_numbers = #tpu.dot_dimension_numbers<[1], [0], [0], [1], [0, 0, 1, 1], [], []>} : vector<8x32xbf16>, vector<32x32xbf16>, vector<8x32xf32> -> vector<8x32xf32>
    %179 = vector.broadcast %11 : vector<1x32xf32> to vector<8x32xf32>
    %180 = arith.addf %178, %179 : vector<8x32xf32>
    %181 = arith.addf %125, %180 : vector<8x32xf32>
    %cst_79 = arith.constant dense<0.000000e+00> : vector<8xf32>
    %182 = vector.multi_reduction <add>, %181, %cst_79 [1] : vector<8x32xf32> to vector<8xf32>
    %183 = vector.shape_cast %182 : vector<8xf32> to vector<8x1xf32>
    %cst_80 = arith.constant 3.200000e+01 : f32
    %184 = vector.broadcast %cst_80 : f32 to vector<8x1xf32>
    %185 = arith.divf %183, %184 : vector<8x1xf32>
    %186 = vector.broadcast %185 : vector<8x1xf32> to vector<8x32xf32>
    %187 = arith.subf %181, %186 : vector<8x32xf32>
    %188 = arith.mulf %187, %187 : vector<8x32xf32>
    %cst_81 = arith.constant dense<0.000000e+00> : vector<8xf32>
    %189 = vector.multi_reduction <add>, %188, %cst_81 [1] : vector<8x32xf32> to vector<8xf32>
    %190 = vector.shape_cast %189 : vector<8xf32> to vector<8x1xf32>
    %cst_82 = arith.constant 3.200000e+01 : f32
    %191 = vector.broadcast %cst_82 : f32 to vector<8x1xf32>
    %192 = arith.divf %190, %191 : vector<8x1xf32>
    %cst_83 = arith.constant 9.99999974E-6 : f32
    %193 = vector.broadcast %cst_83 : f32 to vector<8x1xf32>
    %194 = arith.addf %192, %193 : vector<8x1xf32>
    %195 = math.rsqrt %194 : vector<8x1xf32>
    %196 = vector.broadcast %195 : vector<8x1xf32> to vector<8x32xf32>
    %197 = arith.mulf %187, %196 : vector<8x32xf32>
    %198 = vector.broadcast %12 : vector<1x32xf32> to vector<8x32xf32>
    %199 = arith.mulf %197, %198 : vector<8x32xf32>
    %200 = vector.broadcast %13 : vector<1x32xf32> to vector<8x32xf32>
    %201 = arith.addf %199, %200 : vector<8x32xf32>
    %202 = arith.truncf %201 : vector<8x32xf32> to vector<8x32xbf16>
    %cst_84 = arith.constant dense<0.000000e+00> : vector<8x128xf32>
    %203 = tpu.matmul %202, %14, %cst_84 {dimension_numbers = #tpu.dot_dimension_numbers<[1], [0], [0], [1], [0, 0, 1, 1], [], []>} : vector<8x32xbf16>, vector<32x128xbf16>, vector<8x128xf32> -> vector<8x128xf32>
    %204 = vector.broadcast %15 : vector<1x128xf32> to vector<8x128xf32>
    %205 = arith.addf %203, %204 : vector<8x128xf32>
    %cst_85 = arith.constant 0.000000e+00 : f32
    %206 = vector.broadcast %cst_85 : f32 to vector<8x128xf32>
    %207 = arith.maximumf %205, %206 : vector<8x128xf32>
    %208 = arith.truncf %207 : vector<8x128xf32> to vector<8x128xbf16>
    %cst_86 = arith.constant dense<0.000000e+00> : vector<8x32xf32>
    %209 = tpu.matmul %208, %16, %cst_86 {dimension_numbers = #tpu.dot_dimension_numbers<[1], [0], [0], [1], [0, 0, 1, 1], [], []>} : vector<8x128xbf16>, vector<128x32xbf16>, vector<8x32xf32> -> vector<8x32xf32>
    %210 = vector.broadcast %17 : vector<1x32xf32> to vector<8x32xf32>
    %211 = arith.addf %209, %210 : vector<8x32xf32>
    %212 = arith.addf %211, %201 : vector<8x32xf32>
    %cst_87 = arith.constant dense<0.000000e+00> : vector<8xf32>
    %213 = vector.multi_reduction <add>, %212, %cst_87 [1] : vector<8x32xf32> to vector<8xf32>
    %214 = vector.shape_cast %213 : vector<8xf32> to vector<8x1xf32>
    %cst_88 = arith.constant 3.200000e+01 : f32
    %215 = vector.broadcast %cst_88 : f32 to vector<8x1xf32>
    %216 = arith.divf %214, %215 : vector<8x1xf32>
    %217 = vector.broadcast %216 : vector<8x1xf32> to vector<8x32xf32>
    %218 = arith.subf %212, %217 : vector<8x32xf32>
    %219 = arith.mulf %218, %218 : vector<8x32xf32>
    %cst_89 = arith.constant dense<0.000000e+00> : vector<8xf32>
    %220 = vector.multi_reduction <add>, %219, %cst_89 [1] : vector<8x32xf32> to vector<8xf32>
    %221 = vector.shape_cast %220 : vector<8xf32> to vector<8x1xf32>
    %cst_90 = arith.constant 3.200000e+01 : f32
    %222 = vector.broadcast %cst_90 : f32 to vector<8x1xf32>
    %223 = arith.divf %221, %222 : vector<8x1xf32>
    %cst_91 = arith.constant 9.99999974E-6 : f32
    %224 = vector.broadcast %cst_91 : f32 to vector<8x1xf32>
    %225 = arith.addf %223, %224 : vector<8x1xf32>
    %226 = math.rsqrt %225 : vector<8x1xf32>
    %227 = vector.broadcast %226 : vector<8x1xf32> to vector<8x32xf32>
    %228 = arith.mulf %218, %227 : vector<8x32xf32>
    %229 = vector.broadcast %18 : vector<1x32xf32> to vector<8x32xf32>
    %230 = arith.mulf %228, %229 : vector<8x32xf32>
    %231 = vector.broadcast %19 : vector<1x32xf32> to vector<8x32xf32>
    %232 = arith.addf %230, %231 : vector<8x32xf32>
    %233 = vector.shape_cast %232 : vector<8x32xf32> to vector<1x8x32xf32>
    %c0_92 = arith.constant 0 : index
    %c0_93 = arith.constant 0 : index
    %c0_94 = arith.constant 0 : index
    %234 = vector.load %arg27[%c0_92, %c0_93, %c0_94] : memref<1x8x32xf32, #tpu.memory_space<vmem>>, vector<1x8x32xf32>
    tpu.vector_store %arg27[%c0_92, %c0_93, %c0_94], %233 {strides = array<i32>} : memref<1x8x32xf32, #tpu.memory_space<vmem>>, vector<1x8x32xf32>,
    return
  }
  func.func @transform_0(%arg0: i32) -> (i32, i32, i32) {
    %c0_i32 = arith.constant 0 : i32
    %c0_i32_0 = arith.constant 0 : i32
    %c0_i32_1 = arith.constant 0 : i32
    return %arg0, %c0_i32, %c0_i32_0 : i32, i32, i32
  }
  func.func @transform_1(%arg0: i32) -> (i32, i32, i32) {
    %c0_i32 = arith.constant 0 : i32
    %c0_i32_0 = arith.constant 0 : i32
    %c0_i32_1 = arith.constant 0 : i32
    return %arg0, %c0_i32, %c0_i32_0 : i32, i32, i32
  }
  func.func @transform_2(%arg0: i32) -> (i32, i32, i32) {
    %c0_i32 = arith.constant 0 : i32
    %c0_i32_0 = arith.constant 0 : i32
    %c0_i32_1 = arith.constant 0 : i32
    return %arg0, %c0_i32, %c0_i32_0 : i32, i32, i32
  }
  func.func @transform_3(%arg0: i32) -> (i32, i32, i32) {
    %c0_i32 = arith.constant 0 : i32
    %c0_i32_0 = arith.constant 0 : i32
    %c0_i32_1 = arith.constant 0 : i32
    return %arg0, %c0_i32, %c0_i32_0 : i32, i32, i32
  }
  func.func @transform_4(%arg0: i32) -> (i32, i32, i32) {
    %c0_i32 = arith.constant 0 : i32
    %c0_i32_0 = arith.constant 0 : i32
    %c0_i32_1 = arith.constant 0 : i32
    return %arg0, %c0_i32, %c0_i32_0 : i32, i32, i32
  }
  func.func @transform_5(%arg0: i32) -> (i32, i32, i32) {
    %c0_i32 = arith.constant 0 : i32
    %c0_i32_0 = arith.constant 0 : i32
    %c0_i32_1 = arith.constant 0 : i32
    return %arg0, %c0_i32, %c0_i32_0 : i32, i32, i32
  }
  func.func @transform_6(%arg0: i32) -> (i32, i32) {
    %c0_i32 = arith.constant 0 : i32
    %c0_i32_0 = arith.constant 0 : i32
    %c0_i32_1 = arith.constant 0 : i32
    return %c0_i32, %c0_i32_0 : i32, i32
  }
  func.func @transform_7(%arg0: i32) -> (i32, i32) {
    %c0_i32 = arith.constant 0 : i32
    %c0_i32_0 = arith.constant 0 : i32
    %c0_i32_1 = arith.constant 0 : i32
    return %c0_i32, %c0_i32_0 : i32, i32
  }
  func.func @transform_8(%arg0: i32) -> (i32, i32) {
    %c0_i32 = arith.constant 0 : i32
    %c0_i32_0 = arith.constant 0 : i32
    %c0_i32_1 = arith.constant 0 : i32
    return %c0_i32, %c0_i32_0 : i32, i32
  }
  func.func @transform_9(%arg0: i32) -> (i32, i32) {
    %c0_i32 = arith.constant 0 : i32
    %c0_i32_0 = arith.constant 0 : i32
    %c0_i32_1 = arith.constant 0 : i32
    return %c0_i32, %c0_i32_0 : i32, i32
  }
  func.func @transform_10(%arg0: i32) -> (i32, i32) {
    %c0_i32 = arith.constant 0 : i32
    %c0_i32_0 = arith.constant 0 : i32
    %c0_i32_1 = arith.constant 0 : i32
    return %c0_i32, %c0_i32_0 : i32, i32
  }
  func.func @transform_11(%arg0: i32) -> (i32, i32) {
    %c0_i32 = arith.constant 0 : i32
    %c0_i32_0 = arith.constant 0 : i32
    %c0_i32_1 = arith.constant 0 : i32
    return %c0_i32, %c0_i32_0 : i32, i32
  }
  func.func @transform_12(%arg0: i32) -> (i32, i32) {
    %c0_i32 = arith.constant 0 : i32
    %c0_i32_0 = arith.constant 0 : i32
    %c0_i32_1 = arith.constant 0 : i32
    return %c0_i32, %c0_i32_0 : i32, i32
  }
  func.func @transform_13(%arg0: i32) -> (i32, i32) {
    %c0_i32 = arith.constant 0 : i32
    %c0_i32_0 = arith.constant 0 : i32
    %c0_i32_1 = arith.constant 0 : i32
    return %c0_i32, %c0_i32_0 : i32, i32
  }
  func.func @transform_14(%arg0: i32) -> (i32, i32) {
    %c0_i32 = arith.constant 0 : i32
    %c0_i32_0 = arith.constant 0 : i32
    %c0_i32_1 = arith.constant 0 : i32
    return %c0_i32, %c0_i32_0 : i32, i32
  }
  func.func @transform_15(%arg0: i32) -> (i32, i32) {
    %c0_i32 = arith.constant 0 : i32
    %c0_i32_0 = arith.constant 0 : i32
    %c0_i32_1 = arith.constant 0 : i32
    return %c0_i32, %c0_i32_0 : i32, i32
  }
  func.func @transform_16(%arg0: i32) -> (i32, i32) {
    %c0_i32 = arith.constant 0 : i32
    %c0_i32_0 = arith.constant 0 : i32
    %c0_i32_1 = arith.constant 0 : i32
    return %c0_i32, %c0_i32_0 : i32, i32
  }
  func.func @transform_17(%arg0: i32) -> (i32, i32) {
    %c0_i32 = arith.constant 0 : i32
    %c0_i32_0 = arith.constant 0 : i32
    %c0_i32_1 = arith.constant 0 : i32
    return %c0_i32, %c0_i32_0 : i32, i32
  }
  func.func @transform_18(%arg0: i32) -> (i32, i32) {
    %c0_i32 = arith.constant 0 : i32
    %c0_i32_0 = arith.constant 0 : i32
    %c0_i32_1 = arith.constant 0 : i32
    return %c0_i32, %c0_i32_0 : i32, i32
  }
  func.func @transform_19(%arg0: i32) -> (i32, i32) {
    %c0_i32 = arith.constant 0 : i32
    %c0_i32_0 = arith.constant 0 : i32
    %c0_i32_1 = arith.constant 0 : i32
    return %c0_i32, %c0_i32_0 : i32, i32
  }
  func.func @transform_20(%arg0: i32) -> (i32, i32) {
    %c0_i32 = arith.constant 0 : i32
    %c0_i32_0 = arith.constant 0 : i32
    %c0_i32_1 = arith.constant 0 : i32
    return %c0_i32, %c0_i32_0 : i32, i32
  }
  func.func @transform_21(%arg0: i32) -> (i32, i32) {
    %c0_i32 = arith.constant 0 : i32
    %c0_i32_0 = arith.constant 0 : i32
    %c0_i32_1 = arith.constant 0 : i32
    return %c0_i32, %c0_i32_0 : i32, i32
  }
  func.func @transform_22(%arg0: i32) -> (i32, i32) {
    %c0_i32 = arith.constant 0 : i32
    %c0_i32_0 = arith.constant 0 : i32
    %c0_i32_1 = arith.constant 0 : i32
    return %c0_i32, %c0_i32_0 : i32, i32
  }
  func.func @transform_23(%arg0: i32) -> (i32, i32) {
    %c0_i32 = arith.constant 0 : i32
    %c0_i32_0 = arith.constant 0 : i32
    %c0_i32_1 = arith.constant 0 : i32
    return %c0_i32, %c0_i32_0 : i32, i32
  }
  func.func @transform_24(%arg0: i32) -> (i32, i32) {
    %c0_i32 = arith.constant 0 : i32
    %c0_i32_0 = arith.constant 0 : i32
    %c0_i32_1 = arith.constant 0 : i32
    return %c0_i32, %c0_i32_0 : i32, i32
  }
  func.func @transform_25(%arg0: i32) -> (i32, i32) {
    %c0_i32 = arith.constant 0 : i32
    %c0_i32_0 = arith.constant 0 : i32
    %c0_i32_1 = arith.constant 0 : i32
    return %c0_i32, %c0_i32_0 : i32, i32
  }
  func.func @transform_26(%arg0: i32) -> (i32, i32, i32) {
    %c0_i32 = arith.constant 0 : i32
    %c0_i32_0 = arith.constant 0 : i32
    %c0_i32_1 = arith.constant 0 : i32
    return %arg0, %c0_i32, %c0_i32_0 : i32, i32, i32
  }
}

</mosaic_0001>

<llo_original>
// kernel: tpu_custom_call.1
$region0: #{tpu_custom_call.1}
  #allocation0 [shape = 'u32[]', space=smem, size = 0x4, offset = 0x4, fixed_abs, tag = 'smem constant byte address 0x4 - core index']
  #allocation1 [shape = 'u32[72,128]{1,0:T(1,128)}', space=vmem, size = 0x9000, scoped, tag = 'internal scratch']
  %s0 = inlined_call_operand.hbm [shape: bf16[2,8,32], index: 0, kind: input, shape index: {}]
  %s1 = inlined_call_operand.hbm [shape: bf16[2,8,32], index: 1, kind: input, shape index: {}]
  %s2 = inlined_call_operand.vmem [shape: f32[2,8,32], index: 2, kind: input, shape index: {}]
  %s3 = inlined_call_operand.hbm [shape: bf16[2,2,32], index: 3, kind: input, shape index: {}]
  %s4 = inlined_call_operand.hbm [shape: f32[2,1,8], index: 4, kind: input, shape index: {}]
  %s5 = inlined_call_operand.vmem [shape: f32[2,8,1], index: 5, kind: input, shape index: {}]
  %s6 = inlined_call_operand.vmem [shape: bf16[32,32], index: 6, kind: input, shape index: {}]
  %s7 = inlined_call_operand.vmem [shape: bf16[32,32], index: 7, kind: input, shape index: {}]
  %s8 = inlined_call_operand.vmem [shape: bf16[32,32], index: 8, kind: input, shape index: {}]
  %s9 = inlined_call_operand.vmem [shape: bf16[32,32], index: 9, kind: input, shape index: {}]
  %s10 = inlined_call_operand.hbm [shape: f32[1,32], index: 10, kind: input, shape index: {}]
  %s11 = inlined_call_operand.hbm [shape: f32[1,32], index: 11, kind: input, shape index: {}]
  %s12 = inlined_call_operand.hbm [shape: f32[1,32], index: 12, kind: input, shape index: {}]
  %s13 = inlined_call_operand.vmem [shape: bf16[32,32], index: 13, kind: input, shape index: {}]
  %s14 = inlined_call_operand.hbm [shape: bf16[32,32], index: 14, kind: input, shape index: {}]
  %s15 = inlined_call_operand.hbm [shape: bf16[32,32], index: 15, kind: input, shape index: {}]
  %s16 = inlined_call_operand.hbm [shape: bf16[32,32], index: 16, kind: input, shape index: {}]
  %s17 = inlined_call_operand.vmem [shape: f32[1,32], index: 17, kind: input, shape index: {}]
  %s18 = inlined_call_operand.vmem [shape: f32[1,32], index: 18, kind: input, shape index: {}]
  %s19 = inlined_call_operand.vmem [shape: f32[1,32], index: 19, kind: input, shape index: {}]
  %s20 = inlined_call_operand.hbm [shape: bf16[32,128], index: 20, kind: input, shape index: {}]
  %s21 = inlined_call_operand.vmem [shape: f32[1,128], index: 21, kind: input, shape index: {}]
  %s22 = inlined_call_operand.vmem [shape: bf16[128,32], index: 22, kind: input, shape index: {}]
  %s23 = inlined_call_operand.vmem [shape: f32[1,32], index: 23, kind: input, shape index: {}]
  %s24 = inlined_call_operand.vmem [shape: f32[1,32], index: 24, kind: input, shape index: {}]
  %s25 = inlined_call_operand.vmem [shape: f32[1,32], index: 25, kind: input, shape index: {}]
  %s26 = inlined_call_operand.hbm [shape: f32[2,8,32], index: 26, kind: output, shape index: {}]
  %s27 = sld [smem:[#allocation0]]
  $region181: #{tpu_custom_call.1} parent=0
    _
  %s29 = ssub.s32 1, %s27
  %s30 = scalar_select 0, %s29, %s27
  $region1: #{tpu_custom_call.1} parent=0
    #allocation2 [shape = 'u8[4096]{0}', space=vmem, size = 0x1000, scoped, tag = 'input window, operand 0']
    #allocation3 [shape = 's32[2]{0}', space=sflag, size = 0x8, scoped, tag = 'scoped memory for tpu_custom_call.1']
    #allocation4 [shape = 's32[2]{0}', space=sflag, size = 0x8, scoped, tag = 'scoped memory for tpu_custom_call.1']
    #allocation5 [shape = 'u8[4096]{0}', space=vmem, size = 0x1000, scoped, tag = 'input window, operand 1']
    #allocation6 [shape = 's32[2]{0}', space=sflag, size = 0x8, scoped, tag = 'scoped memory for tpu_custom_call.1']
    #allocation7 [shape = 'u8[1024]{0}', space=vmem, size = 0x400, scoped, tag = 'input window, operand 3']
    #allocation8 [shape = 'u8[1024]{0}', space=vmem, size = 0x400, scoped, tag = 'input window, operand 4']
    #allocation9 [shape = 's32[2]{0}', space=sflag, size = 0x8, scoped, tag = 'scoped memory for tpu_custom_call.1']
    #allocation10 [shape = 'u8[512]{0}', space=vmem, size = 0x400, scoped, tag = 'input window, operand 10, single buffered']
    #allocation11 [shape = 'u8[512]{0}', space=vmem, size = 0x400, scoped, tag = 'input window, operand 11, single buffered']
    #allocation12 [shape = 's32[1]{0}', space=sflag, size = 0x4, scoped, tag = 'scoped memory for tpu_custom_call.1']
    #allocation13 [shape = 'u8[512]{0}', space=vmem, size = 0x400, scoped, tag = 'input window, operand 12, single buffered']
    #allocation14 [shape = 'u8[8192]{0}', space=vmem, size = 0x2000, scoped, tag = 'input window, operand 14, single buffered']
    #allocation15 [shape = 's32[1]{0}', space=sflag, size = 0x4, scoped, tag = 'scoped memory for tpu_custom_call.1']
    #allocation16 [shape = 'u8[8192]{0}', space=vmem, size = 0x2000, scoped, tag = 'input window, operand 15, single buffered']
    #allocation17 [shape = 'u8[8192]{0}', space=vmem, size = 0x2000, scoped, tag = 'input window, operand 16, single buffered']
    #allocation18 [shape = 's32[1]{0}', space=sflag, size = 0x4, scoped, tag = 'scoped memory for tpu_custom_call.1']
    #allocation19 [shape = 'u8[8192]{0}', space=vmem, size = 0x2000, scoped, tag = 'input window, operand 20, single buffered']
    #allocation20 [shape = 'u8[8192]{0}', space=vmem, size = 0x2000, scoped, tag = 'output window, operand 0']
    %31 = vsyncpa [#allocation3], 0
    %s32 = scalar_lea.sflag [#allocation3], 1
    %33 = vsyncpa %s32, 0
    %34 = vsyncpa [#allocation6], 0
    %s35 = scalar_lea.sflag [#allocation6], 1
    %36 = vsyncpa %s35, 0
    %37 = vsyncpa [#allocation9], 0
    %s38 = scalar_lea.sflag [#allocation9], 1
    %39 = vsyncpa %s38, 0
    %40 = vsyncpa [#allocation12], 0
    %41 = vsyncpa [#allocation15], 0
    %42 = vsyncpa [#allocation18], 0
    %43 = vsyncpa [#allocation4], 0
    %s44 = scalar_lea.sflag [#allocation4], 1
    %45 = vsyncpa %s44, 0
    loop: start=0, step=1, limit=4
    $region2: #{tpu_custom_call.1} parent=1 // loop_pre_header
      _
    $region3: #{tpu_custom_call.1} parent=1 // loop_header
      %s47 = sphi 0, %s51
      %p48 = scmp.ge.s32.totalorder %s47, 4
      %s57 = sphi 0, %s59
      %s60 = sphi 0, %s57
      %s61 = sphi 0, %s60
      %s77 = sphi 0, %s61
      %s83 = sphi 0, %s85
      %s86 = sphi 0, %s83
      %s87 = sphi 0, %s86
      %s103 = sphi 0, %s87
      %s109 = sphi 0, %s111
      %s112 = sphi 0, %s109
      %s113 = sphi 0, %s112
      %s129 = sphi 0, %s113
      %s135 = sphi 0, %s137
      %s138 = sphi 0, %s135
      %s139 = sphi 0, %s138
      %s155 = sphi 0, %s139
      %s161 = sphi 0, %s163
      %s164 = sphi 0, %s161
      %s165 = sphi 0, %s164
      %s181 = sphi 0, %s165
      %s187 = sphi 0, %s189
      %s190 = sphi 0, %s187
      %s191 = sphi 0, %s190
      %s207 = sphi 0, %s191
      %s211 = sphi 0, %s211
      %s213 = sphi 0, %s211
      %s214 = sphi 0, %s213
      %s228 = sphi 0, %s214
      %s232 = sphi 0, %s232
      %s234 = sphi 0, %s232
      %s235 = sphi 0, %s234
      %s249 = sphi 0, %s235
      %s253 = sphi 0, %s253
      %s255 = sphi 0, %s253
      %s256 = sphi 0, %s255
      %s270 = sphi 0, %s256
      %s274 = sphi 0, %s274
      %s276 = sphi 0, %s274
      %s277 = sphi 0, %s276
      %s291 = sphi 0, %s277
      %s295 = sphi 0, %s295
      %s297 = sphi 0, %s295
      %s298 = sphi 0, %s297
      %s312 = sphi 0, %s298
      %s316 = sphi 0, %s316
      %s318 = sphi 0, %s316
      %s319 = sphi 0, %s318
      %s333 = sphi 0, %s319
      %s337 = sphi 0, %s337
      %s339 = sphi 0, %s337
      %s340 = sphi 0, %s339
      %s354 = sphi 0, %s340
      %s358 = sphi 0, %s358
      %s360 = sphi 0, %s358
      %s361 = sphi 0, %s360
      %s375 = sphi 0, %s361
      %s379 = sphi 0, %s379
      %s381 = sphi 0, %s379
      %s382 = sphi 0, %s381
      %s396 = sphi 0, %s382
      %s400 = sphi 0, %s400
      %s402 = sphi 0, %s400
      %s403 = sphi 0, %s402
      %s417 = sphi 0, %s403
      %s421 = sphi 0, %s421
      %s423 = sphi 0, %s421
      %s424 = sphi 0, %s423
      %s438 = sphi 0, %s424
      %s442 = sphi 0, %s442
      %s444 = sphi 0, %s442
      %s445 = sphi 0, %s444
      %s459 = sphi 0, %s445
      %s463 = sphi 0, %s463
      %s465 = sphi 0, %s463
      %s466 = sphi 0, %s465
      %s480 = sphi 0, %s466
      %s484 = sphi 0, %s484
      %s486 = sphi 0, %s484
      %s487 = sphi 0, %s486
      %s501 = sphi 0, %s487
      %s505 = sphi 0, %s505
      %s507 = sphi 0, %s505
      %s508 = sphi 0, %s507
      %s522 = sphi 0, %s508
      %s526 = sphi 0, %s526
      %s528 = sphi 0, %s526
      %s529 = sphi 0, %s528
      %s543 = sphi 0, %s529
      %s547 = sphi 0, %s547
      %s549 = sphi 0, %s547
      %s550 = sphi 0, %s549
      %s564 = sphi 0, %s550
      %s568 = sphi 0, %s568
      %s570 = sphi 0, %s568
      %s571 = sphi 0, %s570
      %s585 = sphi 0, %s571
      %s589 = sphi 0, %s589
      %s591 = sphi 0, %s589
      %s592 = sphi 0, %s591
      %s606 = sphi 0, %s592
      %s610 = sphi 0, %s610
      %s612 = sphi 0, %s610
      %s613 = sphi 0, %s612
      %s627 = sphi 0, %s613
      %s633 = sphi 0, %s635
      %s636 = sphi 0, %s633
      %s637 = sphi 0, %s636
      %s653 = sphi 0, %s637
    $region4: #{tpu_custom_call.1} parent=1 // loop_header_branch
      %50 = sbr.rel (%p48) target = $region8
    $region5: #{tpu_custom_call.1} parent=1 // loop_body
      %s52 = ssub.s32 %s47, 1
      %s53 = ssub.s32 %s47, 2
      %s54 = sadd.s32 %s47, 1
      %s55 = ssub.s32 %s47, %s54
      %p56 = scmp.eq.s32.totalorder %s55, 0
      %s58 = sadd.s32 %s57, 1
      %s59 = scalar_select %p56, %s57, %s58
      %p62 = pneg %p56
      %p63 = scmp.eq.s32.totalorder %s47, 1
      %p64 = por %p62, %p63
      %p65 = scmp.ne.s32.totalorder %s57, %s60
      %p66 = scmp.eq.s32.totalorder %s47, 0
      %p67 = por %p65, %p66
      %p68 = scmp.ne.s32.totalorder %s57, %s60
      %p69 = scmp.eq.s32.totalorder %s52, 1
      %p70 = por %p68, %p69
      %p71 = scmp.ne.s32.totalorder %s60, %s61
      %p72 = scmp.eq.s32.totalorder %s52, 0
      %p73 = por %p71, %p72
      %p74 = scmp.ne.s32.totalorder %s60, %s61
      %p75 = scmp.eq.s32.totalorder %s53, 1
      %p76 = por %p74, %p75
      %p78 = scmp.ne.s32.totalorder %s61, %s77
      %p79 = scmp.eq.s32.totalorder %s53, 0
      %p80 = por %p78, %p79
      %s81 = ssub.s32 %s47, %s54
      %p82 = scmp.eq.s32.totalorder %s81, 0
      %s84 = sadd.s32 %s83, 1
      %s85 = scalar_select %p82, %s83, %s84
      %p88 = pneg %p82
      %p89 = scmp.eq.s32.totalorder %s47, 1
      %p90 = por %p88, %p89
      %p91 = scmp.ne.s32.totalorder %s83, %s86
      %p92 = scmp.eq.s32.totalorder %s47, 0
      %p93 = por %p91, %p92
      %p94 = scmp.ne.s32.totalorder %s83, %s86
      %p95 = scmp.eq.s32.totalorder %s52, 1
      %p96 = por %p94, %p95
      %p97 = scmp.ne.s32.totalorder %s86, %s87
      %p98 = scmp.eq.s32.totalorder %s52, 0
      %p99 = por %p97, %p98
      %p100 = scmp.ne.s32.totalorder %s86, %s87
      %p101 = scmp.eq.s32.totalorder %s53, 1
      %p102 = por %p100, %p101
      %p104 = scmp.ne.s32.totalorder %s87, %s103
      %p105 = scmp.eq.s32.totalorder %s53, 0
      %p106 = por %p104, %p105
      %s107 = ssub.s32 %s47, %s54
      %p108 = scmp.eq.s32.totalorder %s107, 0
      %s110 = sadd.s32 %s109, 1
      %s111 = scalar_select %p108, %s109, %s110
      %p114 = pneg %p108
      %p115 = scmp.eq.s32.totalorder %s47, 1
      %p116 = por %p114, %p115
      %p117 = scmp.ne.s32.totalorder %s109, %s112
      %p118 = scmp.eq.s32.totalorder %s47, 0
      %p119 = por %p117, %p118
      %p120 = scmp.ne.s32.totalorder %s109, %s112
      %p121 = scmp.eq.s32.totalorder %s52, 1
      %p122 = por %p120, %p121
      %p123 = scmp.ne.s32.totalorder %s112, %s113
      %p124 = scmp.eq.s32.totalorder %s52, 0
      %p125 = por %p123, %p124
      %p126 = scmp.ne.s32.totalorder %s112, %s113
      %p127 = scmp.eq.s32.totalorder %s53, 1
      %p128 = por %p126, %p127
      %p130 = scmp.ne.s32.totalorder %s113, %s129
      %p131 = scmp.eq.s32.totalorder %s53, 0
      %p132 = por %p130, %p131
      %s133 = ssub.s32 %s47, %s54
      %p134 = scmp.eq.s32.totalorder %s133, 0
      %s136 = sadd.s32 %s135, 1
      %s137 = scalar_select %p134, %s135, %s136
      %p140 = pneg %p134
      %p141 = scmp.eq.s32.totalorder %s47, 1
      %p142 = por %p140, %p141
      %p143 = scmp.ne.s32.totalorder %s135, %s138
      %p144 = scmp.eq.s32.totalorder %s47, 0
      %p145 = por %p143, %p144
      %p146 = scmp.ne.s32.totalorder %s135, %s138
      %p147 = scmp.eq.s32.totalorder %s52, 1
      %p148 = por %p146, %p147
      %p149 = scmp.ne.s32.totalorder %s138, %s139
      %p150 = scmp.eq.s32.totalorder %s52, 0
      %p151 = por %p149, %p150
      %p152 = scmp.ne.s32.totalorder %s138, %s139
      %p153 = scmp.eq.s32.totalorder %s53, 1
      %p154 = por %p152, %p153
      %p156 = scmp.ne.s32.totalorder %s139, %s155
      %p157 = scmp.eq.s32.totalorder %s53, 0
      %p158 = por %p156, %p157
      %s159 = ssub.s32 %s47, %s54
      %p160 = scmp.eq.s32.totalorder %s159, 0
      %s162 = sadd.s32 %s161, 1
      %s163 = scalar_select %p160, %s161, %s162
      %p166 = pneg %p160
      %p167 = scmp.eq.s32.totalorder %s47, 1
      %p168 = por %p166, %p167
      %p169 = scmp.ne.s32.totalorder %s161, %s164
      %p170 = scmp.eq.s32.totalorder %s47, 0
      %p171 = por %p169, %p170
      %p172 = scmp.ne.s32.totalorder %s161, %s164
      %p173 = scmp.eq.s32.totalorder %s52, 1
      %p174 = por %p172, %p173
      %p175 = scmp.ne.s32.totalorder %s164, %s165
      %p176 = scmp.eq.s32.totalorder %s52, 0
      %p177 = por %p175, %p176
      %p178 = scmp.ne.s32.totalorder %s164, %s165
      %p179 = scmp.eq.s32.totalorder %s53, 1
      %p180 = por %p178, %p179
      %p182 = scmp.ne.s32.totalorder %s165, %s181
      %p183 = scmp.eq.s32.totalorder %s53, 0
      %p184 = por %p182, %p183
      %s185 = ssub.s32 %s47, %s54
      %p186 = scmp.eq.s32.totalorder %s185, 0
      %s188 = sadd.s32 %s187, 1
      %s189 = scalar_select %p186, %s187, %s188
      %p192 = pneg %p186
      %p193 = scmp.eq.s32.totalorder %s47, 1
      %p194 = por %p192, %p193
      %p195 = scmp.ne.s32.totalorder %s187, %s190
      %p196 = scmp.eq.s32.totalorder %s47, 0
      %p197 = por %p195, %p196
      %p198 = scmp.ne.s32.totalorder %s187, %s190
      %p199 = scmp.eq.s32.totalorder %s52, 1
      %p200 = por %p198, %p199
      %p201 = scmp.ne.s32.totalorder %s190, %s191
      %p202 = scmp.eq.s32.totalorder %s52, 0
      %p203 = por %p201, %p202
      %p204 = scmp.ne.s32.totalorder %s190, %s191
      %p205 = scmp.eq.s32.totalorder %s53, 1
      %p206 = por %p204, %p205
      %p208 = scmp.ne.s32.totalorder %s191, %s207
      %p209 = scmp.eq.s32.totalorder %s53, 0
      %p210 = por %p208, %p209
      %s212 = sadd.s32 %s211, 1
      %p215 = scmp.eq.s32.totalorder %s47, 1
      %p216 = scmp.ne.s32.totalorder %s211, %s213
      %p217 = scmp.eq.s32.totalorder %s47, 0
      %p218 = por %p216, %p217
      %p219 = scmp.ne.s32.totalorder %s211, %s213
      %p220 = scmp.eq.s32.totalorder %s52, 1
      %p221 = por %p219, %p220
      %p222 = scmp.ne.s32.totalorder %s213, %s214
      %p223 = scmp.eq.s32.totalorder %s52, 0
      %p224 = por %p222, %p223
      %p225 = scmp.ne.s32.totalorder %s213, %s214
      %p226 = scmp.eq.s32.totalorder %s53, 1
      %p227 = por %p225, %p226
      %p229 = scmp.ne.s32.totalorder %s214, %s228
      %p230 = scmp.eq.s32.totalorder %s53, 0
      %p231 = por %p229, %p230
      %s233 = sadd.s32 %s232, 1
      %p236 = scmp.eq.s32.totalorder %s47, 1
      %p237 = scmp.ne.s32.totalorder %s232, %s234
      %p238 = scmp.eq.s32.totalorder %s47, 0
      %p239 = por %p237, %p238
      %p240 = scmp.ne.s32.totalorder %s232, %s234
      %p241 = scmp.eq.s32.totalorder %s52, 1
      %p242 = por %p240, %p241
      %p243 = scmp.ne.s32.totalorder %s234, %s235
      %p244 = scmp.eq.s32.totalorder %s52, 0
      %p245 = por %p243, %p244
      %p246 = scmp.ne.s32.totalorder %s234, %s235
      %p247 = scmp.eq.s32.totalorder %s53, 1
      %p248 = por %p246, %p247
      %p250 = scmp.ne.s32.totalorder %s235, %s249
      %p251 = scmp.eq.s32.totalorder %s53, 0
      %p252 = por %p250, %p251
      %s254 = sadd.s32 %s253, 1
      %p257 = scmp.eq.s32.totalorder %s47, 1
      %p258 = scmp.ne.s32.totalorder %s253, %s255
      %p259 = scmp.eq.s32.totalorder %s47, 0
      %p260 = por %p258, %p259
      %p261 = scmp.ne.s32.totalorder %s253, %s255
      %p262 = scmp.eq.s32.totalorder %s52, 1
      %p263 = por %p261, %p262
      %p264 = scmp.ne.s32.totalorder %s255, %s256
      %p265 = scmp.eq.s32.totalorder %s52, 0
      %p266 = por %p264, %p265
      %p267 = scmp.ne.s32.totalorder %s255, %s256
      %p268 = scmp.eq.s32.totalorder %s53, 1
      %p269 = por %p267, %p268
      %p271 = scmp.ne.s32.totalorder %s256, %s270
      %p272 = scmp.eq.s32.totalorder %s53, 0
      %p273 = por %p271, %p272
      %s275 = sadd.s32 %s274, 1
      %p278 = scmp.eq.s32.totalorder %s47, 1
      %p279 = scmp.ne.s32.totalorder %s274, %s276
      %p280 = scmp.eq.s32.totalorder %s47, 0
      %p281 = por %p279, %p280
      %p282 = scmp.ne.s32.totalorder %s274, %s276
      %p283 = scmp.eq.s32.totalorder %s52, 1
      %p284 = por %p282, %p283
      %p285 = scmp.ne.s32.totalorder %s276, %s277
      %p286 = scmp.eq.s32.totalorder %s52, 0
      %p287 = por %p285, %p286
      %p288 = scmp.ne.s32.totalorder %s276, %s277
      %p289 = scmp.eq.s32.totalorder %s53, 1
      %p290 = por %p288, %p289
      %p292 = scmp.ne.s32.totalorder %s277, %s291
      %p293 = scmp.eq.s32.totalorder %s53, 0
      %p294 = por %p292, %p293
      %s296 = sadd.s32 %s295, 1
      %p299 = scmp.eq.s32.totalorder %s47, 1
      %p300 = scmp.ne.s32.totalorder %s295, %s297
      %p301 = scmp.eq.s32.totalorder %s47, 0
      %p302 = por %p300, %p301
      %p303 = scmp.ne.s32.totalorder %s295, %s297
      %p304 = scmp.eq.s32.totalorder %s52, 1
      %p305 = por %p303, %p304
      %p306 = scmp.ne.s32.totalorder %s297, %s298
      %p307 = scmp.eq.s32.totalorder %s52, 0
      %p308 = por %p306, %p307
      %p309 = scmp.ne.s32.totalorder %s297, %s298
      %p310 = scmp.eq.s32.totalorder %s53, 1
      %p311 = por %p309, %p310
      %p313 = scmp.ne.s32.totalorder %s298, %s312
      %p314 = scmp.eq.s32.totalorder %s53, 0
      %p315 = por %p313, %p314
      %s317 = sadd.s32 %s316, 1
      %p320 = scmp.eq.s32.totalorder %s47, 1
      %p321 = scmp.ne.s32.totalorder %s316, %s318
      %p322 = scmp.eq.s32.totalorder %s47, 0
      %p323 = por %p321, %p322
      %p324 = scmp.ne.s32.totalorder %s316, %s318
      %p325 = scmp.eq.s32.totalorder %s52, 1
      %p326 = por %p324, %p325
      %p327 = scmp.ne.s32.totalorder %s318, %s319
      %p328 = scmp.eq.s32.totalorder %s52, 0
      %p329 = por %p327, %p328
      %p330 = scmp.ne.s32.totalorder %s318, %s319
      %p331 = scmp.eq.s32.totalorder %s53, 1
      %p332 = por %p330, %p331
      %p334 = scmp.ne.s32.totalorder %s319, %s333
      %p335 = scmp.eq.s32.totalorder %s53, 0
      %p336 = por %p334, %p335
      %s338 = sadd.s32 %s337, 1
      %p341 = scmp.eq.s32.totalorder %s47, 1
      %p342 = scmp.ne.s32.totalorder %s337, %s339
      %p343 = scmp.eq.s32.totalorder %s47, 0
      %p344 = por %p342, %p343
      %p345 = scmp.ne.s32.totalorder %s337, %s339
      %p346 = scmp.eq.s32.totalorder %s52, 1
      %p347 = por %p345, %p346
      %p348 = scmp.ne.s32.totalorder %s339, %s340
      %p349 = scmp.eq.s32.totalorder %s52, 0
      %p350 = por %p348, %p349
      %p351 = scmp.ne.s32.totalorder %s339, %s340
      %p352 = scmp.eq.s32.totalorder %s53, 1
      %p353 = por %p351, %p352
      %p355 = scmp.ne.s32.totalorder %s340, %s354
      %p356 = scmp.eq.s32.totalorder %s53, 0
      %p357 = por %p355, %p356
      %s359 = sadd.s32 %s358, 1
      %p362 = scmp.eq.s32.totalorder %s47, 1
      %p363 = scmp.ne.s32.totalorder %s358, %s360
      %p364 = scmp.eq.s32.totalorder %s47, 0
      %p365 = por %p363, %p364
      %p366 = scmp.ne.s32.totalorder %s358, %s360
      %p367 = scmp.eq.s32.totalorder %s52, 1
      %p368 = por %p366, %p367
      %p369 = scmp.ne.s32.totalorder %s360, %s361
      %p370 = scmp.eq.s32.totalorder %s52, 0
      %p371 = por %p369, %p370
      %p372 = scmp.ne.s32.totalorder %s360, %s361
      %p373 = scmp.eq.s32.totalorder %s53, 1
      %p374 = por %p372, %p373
      %p376 = scmp.ne.s32.totalorder %s361, %s375
      %p377 = scmp.eq.s32.totalorder %s53, 0
      %p378 = por %p376, %p377
      %s380 = sadd.s32 %s379, 1
      %p383 = scmp.eq.s32.totalorder %s47, 1
      %p384 = scmp.ne.s32.totalorder %s379, %s381
      %p385 = scmp.eq.s32.totalorder %s47, 0
      %p386 = por %p384, %p385
      %p387 = scmp.ne.s32.totalorder %s379, %s381
      %p388 = scmp.eq.s32.totalorder %s52, 1
      %p389 = por %p387, %p388
      %p390 = scmp.ne.s32.totalorder %s381, %s382
      %p391 = scmp.eq.s32.totalorder %s52, 0
      %p392 = por %p390, %p391
      %p393 = scmp.ne.s32.totalorder %s381, %s382
      %p394 = scmp.eq.s32.totalorder %s53, 1
      %p395 = por %p393, %p394
      %p397 = scmp.ne.s32.totalorder %s382, %s396
      %p398 = scmp.eq.s32.totalorder %s53, 0
      %p399 = por %p397, %p398
      %s401 = sadd.s32 %s400, 1
      %p404 = scmp.eq.s32.totalorder %s47, 1
      %p405 = scmp.ne.s32.totalorder %s400, %s402
      %p406 = scmp.eq.s32.totalorder %s47, 0
      %p407 = por %p405, %p406
      %p408 = scmp.ne.s32.totalorder %s400, %s402
      %p409 = scmp.eq.s32.totalorder %s52, 1
      %p410 = por %p408, %p409
      %p411 = scmp.ne.s32.totalorder %s402, %s403
      %p412 = scmp.eq.s32.totalorder %s52, 0
      %p413 = por %p411, %p412
      %p414 = scmp.ne.s32.totalorder %s402, %s403
      %p415 = scmp.eq.s32.totalorder %s53, 1
      %p416 = por %p414, %p415
      %p418 = scmp.ne.s32.totalorder %s403, %s417
      %p419 = scmp.eq.s32.totalorder %s53, 0
      %p420 = por %p418, %p419
      %s422 = sadd.s32 %s421, 1
      %p425 = scmp.eq.s32.totalorder %s47, 1
      %p426 = scmp.ne.s32.totalorder %s421, %s423
      %p427 = scmp.eq.s32.totalorder %s47, 0
      %p428 = por %p426, %p427
      %p429 = scmp.ne.s32.totalorder %s421, %s423
      %p430 = scmp.eq.s32.totalorder %s52, 1
      %p431 = por %p429, %p430
      %p432 = scmp.ne.s32.totalorder %s423, %s424
      %p433 = scmp.eq.s32.totalorder %s52, 0
      %p434 = por %p432, %p433
      %p435 = scmp.ne.s32.totalorder %s423, %s424
      %p436 = scmp.eq.s32.totalorder %s53, 1
      %p437 = por %p435, %p436
      %p439 = scmp.ne.s32.totalorder %s424, %s438
      %p440 = scmp.eq.s32.totalorder %s53, 0
      %p441 = por %p439, %p440
      %s443 = sadd.s32 %s442, 1
      %p446 = scmp.eq.s32.totalorder %s47, 1
      %p447 = scmp.ne.s32.totalorder %s442, %s444
      %p448 = scmp.eq.s32.totalorder %s47, 0
      %p449 = por %p447, %p448
      %p450 = scmp.ne.s32.totalorder %s442, %s444
      %p451 = scmp.eq.s32.totalorder %s52, 1
      %p452 = por %p450, %p451
      %p453 = scmp.ne.s32.totalorder %s444, %s445
      %p454 = scmp.eq.s32.totalorder %s52, 0
      %p455 = por %p453, %p454
      %p456 = scmp.ne.s32.totalorder %s444, %s445
      %p457 = scmp.eq.s32.totalorder %s53, 1
      %p458 = por %p456, %p457
      %p460 = scmp.ne.s32.totalorder %s445, %s459
      %p461 = scmp.eq.s32.totalorder %s53, 0
      %p462 = por %p460, %p461
      %s464 = sadd.s32 %s463, 1
      %p467 = scmp.eq.s32.totalorder %s47, 1
      %p468 = scmp.ne.s32.totalorder %s463, %s465
      %p469 = scmp.eq.s32.totalorder %s47, 0
      %p470 = por %p468, %p469
      %p471 = scmp.ne.s32.totalorder %s463, %s465
      %p472 = scmp.eq.s32.totalorder %s52, 1
      %p473 = por %p471, %p472
      %p474 = scmp.ne.s32.totalorder %s465, %s466
      %p475 = scmp.eq.s32.totalorder %s52, 0
      %p476 = por %p474, %p475
      %p477 = scmp.ne.s32.totalorder %s465, %s466
      %p478 = scmp.eq.s32.totalorder %s53, 1
      %p479 = por %p477, %p478
      %p481 = scmp.ne.s32.totalorder %s466, %s480
      %p482 = scmp.eq.s32.totalorder %s53, 0
      %p483 = por %p481, %p482
      %s485 = sadd.s32 %s484, 1
      %p488 = scmp.eq.s32.totalorder %s47, 1
      %p489 = scmp.ne.s32.totalorder %s484, %s486
      %p490 = scmp.eq.s32.totalorder %s47, 0
      %p491 = por %p489, %p490
      %p492 = scmp.ne.s32.totalorder %s484, %s486
      %p493 = scmp.eq.s32.totalorder %s52, 1
      %p494 = por %p492, %p493
      %p495 = scmp.ne.s32.totalorder %s486, %s487
      %p496 = scmp.eq.s32.totalorder %s52, 0
      %p497 = por %p495, %p496
      %p498 = scmp.ne.s32.totalorder %s486, %s487
      %p499 = scmp.eq.s32.totalorder %s53, 1
      %p500 = por %p498, %p499
      %p502 = scmp.ne.s32.totalorder %s487, %s501
      %p503 = scmp.eq.s32.totalorder %s53, 0
      %p504 = por %p502, %p503
      %s506 = sadd.s32 %s505, 1
      %p509 = scmp.eq.s32.totalorder %s47, 1
      %p510 = scmp.ne.s32.totalorder %s505, %s507
      %p511 = scmp.eq.s32.totalorder %s47, 0
      %p512 = por %p510, %p511
      %p513 = scmp.ne.s32.totalorder %s505, %s507
      %p514 = scmp.eq.s32.totalorder %s52, 1
      %p515 = por %p513, %p514
      %p516 = scmp.ne.s32.totalorder %s507, %s508
      %p517 = scmp.eq.s32.totalorder %s52, 0
      %p518 = por %p516, %p517
      %p519 = scmp.ne.s32.totalorder %s507, %s508
      %p520 = scmp.eq.s32.totalorder %s53, 1
      %p521 = por %p519, %p520
      %p523 = scmp.ne.s32.totalorder %s508, %s522
      %p524 = scmp.eq.s32.totalorder %s53, 0
      %p525 = por %p523, %p524
      %s527 = sadd.s32 %s526, 1
      %p530 = scmp.eq.s32.totalorder %s47, 1
      %p531 = scmp.ne.s32.totalorder %s526, %s528
      %p532 = scmp.eq.s32.totalorder %s47, 0
      %p533 = por %p531, %p532
      %p534 = scmp.ne.s32.totalorder %s526, %s528
      %p535 = scmp.eq.s32.totalorder %s52, 1
      %p536 = por %p534, %p535
      %p537 = scmp.ne.s32.totalorder %s528, %s529
      %p538 = scmp.eq.s32.totalorder %s52, 0
      %p539 = por %p537, %p538
      %p540 = scmp.ne.s32.totalorder %s528, %s529
      %p541 = scmp.eq.s32.totalorder %s53, 1
      %p542 = por %p540, %p541
      %p544 = scmp.ne.s32.totalorder %s529, %s543
      %p545 = scmp.eq.s32.totalorder %s53, 0
      %p546 = por %p544, %p545
      %s548 = sadd.s32 %s547, 1
      %p551 = scmp.eq.s32.totalorder %s47, 1
      %p552 = scmp.ne.s32.totalorder %s547, %s549
      %p553 = scmp.eq.s32.totalorder %s47, 0
      %p554 = por %p552, %p553
      %p555 = scmp.ne.s32.totalorder %s547, %s549
      %p556 = scmp.eq.s32.totalorder %s52, 1
      %p557 = por %p555, %p556
      %p558 = scmp.ne.s32.totalorder %s549, %s550
      %p559 = scmp.eq.s32.totalorder %s52, 0
      %p560 = por %p558, %p559
      %p561 = scmp.ne.s32.totalorder %s549, %s550
      %p562 = scmp.eq.s32.totalorder %s53, 1
      %p563 = por %p561, %p562
      %p565 = scmp.ne.s32.totalorder %s550, %s564
      %p566 = scmp.eq.s32.totalorder %s53, 0
      %p567 = por %p565, %p566
      %s569 = sadd.s32 %s568, 1
      %p572 = scmp.eq.s32.totalorder %s47, 1
      %p573 = scmp.ne.s32.totalorder %s568, %s570
      %p574 = scmp.eq.s32.totalorder %s47, 0
      %p575 = por %p573, %p574
      %p576 = scmp.ne.s32.totalorder %s568, %s570
      %p577 = scmp.eq.s32.totalorder %s52, 1
      %p578 = por %p576, %p577
      %p579 = scmp.ne.s32.totalorder %s570, %s571
      %p580 = scmp.eq.s32.totalorder %s52, 0
      %p581 = por %p579, %p580
      %p582 = scmp.ne.s32.totalorder %s570, %s571
      %p583 = scmp.eq.s32.totalorder %s53, 1
      %p584 = por %p582, %p583
      %p586 = scmp.ne.s32.totalorder %s571, %s585
      %p587 = scmp.eq.s32.totalorder %s53, 0
      %p588 = por %p586, %p587
      %s590 = sadd.s32 %s589, 1
      %p593 = scmp.eq.s32.totalorder %s47, 1
      %p594 = scmp.ne.s32.totalorder %s589, %s591
      %p595 = scmp.eq.s32.totalorder %s47, 0
      %p596 = por %p594, %p595
      %p597 = scmp.ne.s32.totalorder %s589, %s591
      %p598 = scmp.eq.s32.totalorder %s52, 1
      %p599 = por %p597, %p598
      %p600 = scmp.ne.s32.totalorder %s591, %s592
      %p601 = scmp.eq.s32.totalorder %s52, 0
      %p602 = por %p600, %p601
      %p603 = scmp.ne.s32.totalorder %s591, %s592
      %p604 = scmp.eq.s32.totalorder %s53, 1
      %p605 = por %p603, %p604
      %p607 = scmp.ne.s32.totalorder %s592, %s606
      %p608 = scmp.eq.s32.totalorder %s53, 0
      %p609 = por %p607, %p608
      %s611 = sadd.s32 %s610, 1
      %p614 = scmp.eq.s32.totalorder %s47, 1
      %p615 = scmp.ne.s32.totalorder %s610, %s612
      %p616 = scmp.eq.s32.totalorder %s47, 0
      %p617 = por %p615, %p616
      %p618 = scmp.ne.s32.totalorder %s610, %s612
      %p619 = scmp.eq.s32.totalorder %s52, 1
      %p620 = por %p618, %p619
      %p621 = scmp.ne.s32.totalorder %s612, %s613
      %p622 = scmp.eq.s32.totalorder %s52, 0
      %p623 = por %p621, %p622
      %p624 = scmp.ne.s32.totalorder %s612, %s613
      %p625 = scmp.eq.s32.totalorder %s53, 1
      %p626 = por %p624, %p625
      %p628 = scmp.ne.s32.totalorder %s613, %s627
      %p629 = scmp.eq.s32.totalorder %s53, 0
      %p630 = por %p628, %p629
      %s631 = ssub.s32 %s47, %s54
      %p632 = scmp.eq.s32.totalorder %s631, 0
      %s634 = sadd.s32 %s633, 1
      %s635 = scalar_select %p632, %s633, %s634
      %p638 = pneg %p632
      %p639 = scmp.eq.s32.totalorder %s47, 1
      %p640 = por %p638, %p639
      %p641 = scmp.ne.s32.totalorder %s633, %s636
      %p642 = scmp.eq.s32.totalorder %s47, 0
      %p643 = por %p641, %p642
      %p644 = scmp.ne.s32.totalorder %s633, %s636
      %p645 = scmp.eq.s32.totalorder %s52, 1
      %p646 = por %p644, %p645
      %p647 = scmp.ne.s32.totalorder %s636, %s637
      %p648 = scmp.eq.s32.totalorder %s52, 0
      %p649 = por %p647, %p648
      %p650 = scmp.ne.s32.totalorder %s636, %s637
      %p651 = scmp.eq.s32.totalorder %s53, 1
      %p652 = por %p650, %p651
      %p654 = scmp.ne.s32.totalorder %s637, %s653
      %p655 = scmp.eq.s32.totalorder %s53, 0
      %p656 = por %p654, %p655
      %p657 = scmp.le.s32.totalorder 1, %s47
      %p658 = scmp.lt.s32.totalorder %s47, 3
      %p659 = pnand %p657, %p658
      %p660 = pneg %p659
      // Predicated region
      $region9: #{tpu_custom_call.1} parent=5 // pred_check
        _
      $region10: #{tpu_custom_call.1} parent=5 // pred_check_branch
        %662 = sbr.rel (%p659) target = $region12
      $region11: #{tpu_custom_call.1} parent=5 // pred_region
        %s663 = ssub.s32 %s47, 1
        // Predicated region
        $region13: #{tpu_custom_call.1} parent=11 // pred_check
          %p664 = pneg %p224
        $region14: #{tpu_custom_call.1} parent=11 // pred_check_branch
          %666 = sbr.rel (%p664) target = $region16
        $region15: #{tpu_custom_call.1} parent=11 // pred_region
          _
        $region16: #{tpu_custom_call.1} parent=11 // pred_fallthru
          _
        // Predicated region
        $region17: #{tpu_custom_call.1} parent=11 // pred_check
          %p667 = pneg %p245
        $region18: #{tpu_custom_call.1} parent=11 // pred_check_branch
          %669 = sbr.rel (%p667) target = $region20
        $region19: #{tpu_custom_call.1} parent=11 // pred_region
          _
        $region20: #{tpu_custom_call.1} parent=11 // pred_fallthru
          _
        // Predicated region
        $region21: #{tpu_custom_call.1} parent=11 // pred_check
          %p670 = pneg %p266
        $region22: #{tpu_custom_call.1} parent=11 // pred_check_branch
          %672 = sbr.rel (%p670) target = $region24
        $region23: #{tpu_custom_call.1} parent=11 // pred_region
          _
        $region24: #{tpu_custom_call.1} parent=11 // pred_fallthru
          _
        // Predicated region
        $region25: #{tpu_custom_call.1} parent=11 // pred_check
          %p673 = pneg %p287
        $region26: #{tpu_custom_call.1} parent=11 // pred_check_branch
          %675 = sbr.rel (%p673) target = $region28
        $region27: #{tpu_custom_call.1} parent=11 // pred_region
          _
        $region28: #{tpu_custom_call.1} parent=11 // pred_fallthru
          _
        // Predicated region
        $region29: #{tpu_custom_call.1} parent=11 // pred_check
          %p676 = pneg %p308
        $region30: #{tpu_custom_call.1} parent=11 // pred_check_branch
          %678 = sbr.rel (%p676) target = $region32
        $region31: #{tpu_custom_call.1} parent=11 // pred_region
          %680 = vsyncadd [#allocation9], 0
          %s682 = sshll.u32 %s10, 4
          %s683 = int_to_ptr.hbm [resolvable:$true] %s682
          %s684 = sshll.u32 [#allocation10], 4
          %s685 = int_to_ptr.vmem [resolvable:$true] %s684
          %687 = dma.hbm_to_vmem [thread:$0]  %s683, 16, %s685, [#allocation9]
        $region32: #{tpu_custom_call.1} parent=11 // pred_fallthru
          _
        // Predicated region
        $region33: #{tpu_custom_call.1} parent=11 // pred_check
          %p688 = pneg %p329
        $region34: #{tpu_custom_call.1} parent=11 // pred_check_branch
          %690 = sbr.rel (%p688) target = $region36
        $region35: #{tpu_custom_call.1} parent=11 // pred_region
          %692 = vsyncadd [#allocation12], 0
          %s694 = sshll.u32 %s11, 4
          %s695 = int_to_ptr.hbm [resolvable:$true] %s694
          %s696 = sshll.u32 [#allocation11], 4
          %s697 = int_to_ptr.vmem [resolvable:$true] %s696
          %699 = dma.hbm_to_vmem [thread:$0]  %s695, 16, %s697, [#allocation12]
        $region36: #{tpu_custom_call.1} parent=11 // pred_fallthru
          _
        // Predicated region
        $region37: #{tpu_custom_call.1} parent=11 // pred_check
          %p700 = pneg %p350
        $region38: #{tpu_custom_call.1} parent=11 // pred_check_branch
          %702 = sbr.rel (%p700) target = $region40
        $region39: #{tpu_custom_call.1} parent=11 // pred_region
          %704 = vsyncadd [#allocation12], 0
          %s706 = sshll.u32 %s12, 4
          %s707 = int_to_ptr.hbm [resolvable:$true] %s706
          %s708 = sshll.u32 [#allocation13], 4
          %s709 = int_to_ptr.vmem [resolvable:$true] %s708
          %711 = dma.hbm_to_vmem [thread:$0]  %s707, 16, %s709, [#allocation12]
        $region40: #{tpu_custom_call.1} parent=11 // pred_fallthru
          _
        // Predicated region
        $region41: #{tpu_custom_call.1} parent=11 // pred_check
          %p712 = pneg %p371
        $region42: #{tpu_custom_call.1} parent=11 // pred_check_branch
          %714 = sbr.rel (%p712) target = $region44
        $region43: #{tpu_custom_call.1} parent=11 // pred_region
          _
        $region44: #{tpu_custom_call.1} parent=11 // pred_fallthru
          _
        // Predicated region
        $region45: #{tpu_custom_call.1} parent=11 // pred_check
          %p715 = pneg %p392
        $region46: #{tpu_custom_call.1} parent=11 // pred_check_branch
          %717 = sbr.rel (%p715) target = $region48
        $region47: #{tpu_custom_call.1} parent=11 // pred_region
          %719 = vsyncadd [#allocation15], 0
          %s720 = sshll.u32 %s14, 4
          %s721 = int_to_ptr.hbm [resolvable:$true] %s720
          %s722 = sshll.u32 [#allocation14], 4
          %s723 = int_to_ptr.vmem [resolvable:$true] %s722
          %728 = dma.hbm_to_vmem [thread:$0]  %s721, 256, %s723, [#allocation15], 64, 64, 4
        $region48: #{tpu_custom_call.1} parent=11 // pred_fallthru
          _
        // Predicated region
        $region49: #{tpu_custom_call.1} parent=11 // pred_check
          %p729 = pneg %p413
        $region50: #{tpu_custom_call.1} parent=11 // pred_check_branch
          %731 = sbr.rel (%p729) target = $region52
        $region51: #{tpu_custom_call.1} parent=11 // pred_region
          %733 = vsyncadd [#allocation15], 0
          %s734 = sshll.u32 %s15, 4
          %s735 = int_to_ptr.hbm [resolvable:$true] %s734
          %s736 = sshll.u32 [#allocation16], 4
          %s737 = int_to_ptr.vmem [resolvable:$true] %s736
          %742 = dma.hbm_to_vmem [thread:$0]  %s735, 256, %s737, [#allocation15], 64, 64, 4
        $region52: #{tpu_custom_call.1} parent=11 // pred_fallthru
          _
        // Predicated region
        $region53: #{tpu_custom_call.1} parent=11 // pred_check
          %p743 = pneg %p434
        $region54: #{tpu_custom_call.1} parent=11 // pred_check_branch
          %745 = sbr.rel (%p743) target = $region56
        $region55: #{tpu_custom_call.1} parent=11 // pred_region
          %747 = vsyncadd [#allocation18], 0
          %s748 = sshll.u32 %s16, 4
          %s749 = int_to_ptr.hbm [resolvable:$true] %s748
          %s750 = sshll.u32 [#allocation17], 4
          %s751 = int_to_ptr.vmem [resolvable:$true] %s750
          %756 = dma.hbm_to_vmem [thread:$0]  %s749, 256, %s751, [#allocation18], 64, 64, 4
        $region56: #{tpu_custom_call.1} parent=11 // pred_fallthru
          _
        // Predicated region
        $region57: #{tpu_custom_call.1} parent=11 // pred_check
          %p757 = pneg %p455
        $region58: #{tpu_custom_call.1} parent=11 // pred_check_branch
          %759 = sbr.rel (%p757) target = $region60
        $region59: #{tpu_custom_call.1} parent=11 // pred_region
          _
        $region60: #{tpu_custom_call.1} parent=11 // pred_fallthru
          _
        // Predicated region
        $region61: #{tpu_custom_call.1} parent=11 // pred_check
          %p760 = pneg %p476
        $region62: #{tpu_custom_call.1} parent=11 // pred_check_branch
          %762 = sbr.rel (%p760) target = $region64
        $region63: #{tpu_custom_call.1} parent=11 // pred_region
          _
        $region64: #{tpu_custom_call.1} parent=11 // pred_fallthru
          _
        // Predicated region
        $region65: #{tpu_custom_call.1} parent=11 // pred_check
          %p763 = pneg %p497
        $region66: #{tpu_custom_call.1} parent=11 // pred_check_branch
          %765 = sbr.rel (%p763) target = $region68
        $region67: #{tpu_custom_call.1} parent=11 // pred_region
          _
        $region68: #{tpu_custom_call.1} parent=11 // pred_fallthru
          _
        // Predicated region
        $region69: #{tpu_custom_call.1} parent=11 // pred_check
          %p766 = pneg %p518
        $region70: #{tpu_custom_call.1} parent=11 // pred_check_branch
          %768 = sbr.rel (%p766) target = $region72
        $region71: #{tpu_custom_call.1} parent=11 // pred_region
          %770 = vsyncadd [#allocation18], 0
          %s771 = sshll.u32 %s20, 4
          %s772 = int_to_ptr.hbm [resolvable:$true] %s771
          %s773 = sshll.u32 [#allocation19], 4
          %s774 = int_to_ptr.vmem [resolvable:$true] %s773
          %779 = dma.hbm_to_vmem [thread:$0]  %s772, 256, %s774, [#allocation18], 64, 64, 4
        $region72: #{tpu_custom_call.1} parent=11 // pred_fallthru
          _
        // Predicated region
        $region73: #{tpu_custom_call.1} parent=11 // pred_check
          %p780 = pneg %p539
        $region74: #{tpu_custom_call.1} parent=11 // pred_check_branch
          %782 = sbr.rel (%p780) target = $region76
        $region75: #{tpu_custom_call.1} parent=11 // pred_region
          _
        $region76: #{tpu_custom_call.1} parent=11 // pred_fallthru
          _
        // Predicated region
        $region77: #{tpu_custom_call.1} parent=11 // pred_check
          %p783 = pneg %p560
        $region78: #{tpu_custom_call.1} parent=11 // pred_check_branch
          %785 = sbr.rel (%p783) target = $region80
        $region79: #{tpu_custom_call.1} parent=11 // pred_region
          _
        $region80: #{tpu_custom_call.1} parent=11 // pred_fallthru
          _
        // Predicated region
        $region81: #{tpu_custom_call.1} parent=11 // pred_check
          %p786 = pneg %p581
        $region82: #{tpu_custom_call.1} parent=11 // pred_check_branch
          %788 = sbr.rel (%p786) target = $region84
        $region83: #{tpu_custom_call.1} parent=11 // pred_region
          _
        $region84: #{tpu_custom_call.1} parent=11 // pred_fallthru
          _
        // Predicated region
        $region85: #{tpu_custom_call.1} parent=11 // pred_check
          %p789 = pneg %p602
        $region86: #{tpu_custom_call.1} parent=11 // pred_check_branch
          %791 = sbr.rel (%p789) target = $region88
        $region87: #{tpu_custom_call.1} parent=11 // pred_region
          _
        $region88: #{tpu_custom_call.1} parent=11 // pred_fallthru
          _
        // Predicated region
        $region89: #{tpu_custom_call.1} parent=11 // pred_check
          %p792 = pneg %p623
        $region90: #{tpu_custom_call.1} parent=11 // pred_check_branch
          %794 = sbr.rel (%p792) target = $region92
        $region91: #{tpu_custom_call.1} parent=11 // pred_region
          _
        $region92: #{tpu_custom_call.1} parent=11 // pred_fallthru
          _
      $region12: #{tpu_custom_call.1} parent=5 // pred_fallthru
        _
      %p795 = scmp.lt.s32.totalorder %s47, 2
      // Predicated region
      $region93: #{tpu_custom_call.1} parent=5 // pred_check
        %p796 = pneg %p795
      $region94: #{tpu_custom_call.1} parent=5 // pred_check_branch
        %798 = sbr.rel (%p796) target = $region96
      $region95: #{tpu_custom_call.1} parent=5 // pred_region
        // Predicated region
        $region97: #{tpu_custom_call.1} parent=95 // pred_check
          %p799 = pneg %p67
        $region98: #{tpu_custom_call.1} parent=95 // pred_check_branch
          %801 = sbr.rel (%p799) target = $region100
        $region99: #{tpu_custom_call.1} parent=95 // pred_region
          %s802 = sand.u32 %s57, 1
          %s803 = scalar_lea.sflag [#allocation3], %s802
          %s804 = sand.u32 %s57, 1
          %s805 = smul.addr %s804, 4
          %s806 = scalar_lea.vmem [#allocation2], %s805
          %808 = vsyncadd %s803, 0
          %s809 = smul.addr %s47, 4
          %s810 = scalar_lea.hbm %s0, %s809
          %s812 = sshll.u32 %s810, 4
          %s813 = int_to_ptr.hbm [resolvable:$true] %s812
          %s814 = sshll.u32 %s806, 4
          %s815 = int_to_ptr.vmem [resolvable:$true] %s814
          %817 = dma.hbm_to_vmem [thread:$0]  %s813, 64, %s815, %s803
        $region100: #{tpu_custom_call.1} parent=95 // pred_fallthru
          _
        // Predicated region
        $region101: #{tpu_custom_call.1} parent=95 // pred_check
          %p818 = pneg %p93
        $region102: #{tpu_custom_call.1} parent=95 // pred_check_branch
          %820 = sbr.rel (%p818) target = $region104
        $region103: #{tpu_custom_call.1} parent=95 // pred_region
          %s821 = sand.u32 %s47, 1
          %s822 = scalar_lea.sflag [#allocation6], %s821
          %s823 = sand.u32 %s83, 1
          %s824 = smul.addr %s823, 4
          %s825 = scalar_lea.vmem [#allocation5], %s824
          %827 = vsyncadd %s822, 0
          %s828 = smul.addr %s47, 4
          %s829 = scalar_lea.hbm %s1, %s828
          %s831 = sshll.u32 %s829, 4
          %s832 = int_to_ptr.hbm [resolvable:$true] %s831
          %s833 = sshll.u32 %s825, 4
          %s834 = int_to_ptr.vmem [resolvable:$true] %s833
          %836 = dma.hbm_to_vmem [thread:$0]  %s832, 64, %s834, %s822
        $region104: #{tpu_custom_call.1} parent=95 // pred_fallthru
          _
        // Predicated region
        $region105: #{tpu_custom_call.1} parent=95 // pred_check
          %p837 = pneg %p119
        $region106: #{tpu_custom_call.1} parent=95 // pred_check_branch
          %839 = sbr.rel (%p837) target = $region108
        $region107: #{tpu_custom_call.1} parent=95 // pred_region
          %p840 = scmp.lt.s32.totalorder %s47, 1
          %s841 = scalar_select %p840, %s47, 1
          %s842 = smul.addr %s841, 8
          %s843 = scalar_lea.vmem %s2, %s842
        $region108: #{tpu_custom_call.1} parent=95 // pred_fallthru
          _
        // Predicated region
        $region109: #{tpu_custom_call.1} parent=95 // pred_check
          %p844 = pneg %p145
        $region110: #{tpu_custom_call.1} parent=95 // pred_check_branch
          %846 = sbr.rel (%p844) target = $region112
        $region111: #{tpu_custom_call.1} parent=95 // pred_region
          %s847 = sand.u32 %s47, 1
          %s848 = scalar_lea.sflag [#allocation6], %s847
          %s849 = sand.u32 %s135, 1
          %s850 = scalar_lea.vmem [#allocation7], %s849
          %852 = vsyncadd %s848, 0
          %s853 = scalar_lea.hbm %s3, %s47
          %s855 = sshll.u32 %s853, 4
          %s856 = int_to_ptr.hbm [resolvable:$true] %s855
          %s857 = sshll.u32 %s850, 4
          %s858 = int_to_ptr.vmem [resolvable:$true] %s857
          %860 = dma.hbm_to_vmem [thread:$0]  %s856, 16, %s858, %s848
        $region112: #{tpu_custom_call.1} parent=95 // pred_fallthru
          _
        // Predicated region
        $region113: #{tpu_custom_call.1} parent=95 // pred_check
          %p861 = pneg %p171
        $region114: #{tpu_custom_call.1} parent=95 // pred_check_branch
          %863 = sbr.rel (%p861) target = $region116
        $region115: #{tpu_custom_call.1} parent=95 // pred_region
          %s864 = sand.u32 %s47, 1
          %s865 = scalar_lea.sflag [#allocation9], %s864
          %s866 = sand.u32 %s161, 1
          %s867 = scalar_lea.vmem [#allocation8], %s866
          %869 = vsyncadd %s865, 0
          %s870 = scalar_lea.hbm %s4, %s47
          %s872 = sshll.u32 %s870, 4
          %s873 = int_to_ptr.hbm [resolvable:$true] %s872
          %s874 = sshll.u32 %s867, 4
          %s875 = int_to_ptr.vmem [resolvable:$true] %s874
          %877 = dma.hbm_to_vmem [thread:$0]  %s873, 16, %s875, %s865
        $region116: #{tpu_custom_call.1} parent=95 // pred_fallthru
          _
        // Predicated region
        $region117: #{tpu_custom_call.1} parent=95 // pred_check
          %p878 = pneg %p197
        $region118: #{tpu_custom_call.1} parent=95 // pred_check_branch
          %880 = sbr.rel (%p878) target = $region120
        $region119: #{tpu_custom_call.1} parent=95 // pred_region
          %p881 = scmp.lt.s32.totalorder %s47, 1
          %s882 = scalar_select %p881, %s47, 1
          %s883 = smul.addr %s882, 8
          %s884 = scalar_lea.vmem %s5, %s883
        $region120: #{tpu_custom_call.1} parent=95 // pred_fallthru
          _
      $region96: #{tpu_custom_call.1} parent=5 // pred_fallthru
        _
      %p885 = scmp.le.s32.totalorder 1, %s47
      %p886 = scmp.lt.s32.totalorder %s47, 3
      %p887 = pnand %p885, %p886
      %p888 = pneg %p887
      // Predicated region
      $region121: #{tpu_custom_call.1} parent=5 // pred_check
        _
      $region122: #{tpu_custom_call.1} parent=5 // pred_check_branch
        %890 = sbr.rel (%p887) target = $region124
      $region123: #{tpu_custom_call.1} parent=5 // pred_region
        %s891 = ssub.s32 %s47, 1
        %s892 = sand.u32 %s60, 1
        %s893 = scalar_lea.sflag [#allocation3], %s892
        %s894 = sand.u32 %s60, 1
        %s895 = smul.addr %s894, 4
        %s896 = scalar_lea.vmem [#allocation2], %s895
        // Predicated region
        $region125: #{tpu_custom_call.1} parent=123 // pred_check
          %p897 = pneg %p73
        $region126: #{tpu_custom_call.1} parent=123 // pred_check_branch
          %899 = sbr.rel (%p897) target = $region128
        $region127: #{tpu_custom_call.1} parent=123 // pred_region
          %901 = dma.done %s893, 64
        $region128: #{tpu_custom_call.1} parent=123 // pred_fallthru
          _
        %s902 = sand.u32 %s52, 1
        %s903 = scalar_lea.sflag [#allocation6], %s902
        %s904 = sand.u32 %s86, 1
        %s905 = smul.addr %s904, 4
        %s906 = scalar_lea.vmem [#allocation5], %s905
        // Predicated region
        $region129: #{tpu_custom_call.1} parent=123 // pred_check
          %p907 = pneg %p99
        $region130: #{tpu_custom_call.1} parent=123 // pred_check_branch
          %909 = sbr.rel (%p907) target = $region132
        $region131: #{tpu_custom_call.1} parent=123 // pred_region
          %911 = dma.done %s903, 64
        $region132: #{tpu_custom_call.1} parent=123 // pred_fallthru
          _
        %s912 = sand.u32 %s52, 1
        %s913 = scalar_lea.sflag [#allocation6], %s912
        %s914 = sand.u32 %s138, 1
        %s915 = scalar_lea.vmem [#allocation7], %s914
        // Predicated region
        $region133: #{tpu_custom_call.1} parent=123 // pred_check
          %p916 = pneg %p151
        $region134: #{tpu_custom_call.1} parent=123 // pred_check_branch
          %918 = sbr.rel (%p916) target = $region136
        $region135: #{tpu_custom_call.1} parent=123 // pred_region
          %920 = dma.done %s913, 16
        $region136: #{tpu_custom_call.1} parent=123 // pred_fallthru
          _
        %s921 = sand.u32 %s52, 1
        %s922 = scalar_lea.sflag [#allocation9], %s921
        %s923 = sand.u32 %s164, 1
        %s924 = scalar_lea.vmem [#allocation8], %s923
        // Predicated region
        $region137: #{tpu_custom_call.1} parent=123 // pred_check
          %p925 = pneg %p177
        $region138: #{tpu_custom_call.1} parent=123 // pred_check_branch
          %927 = sbr.rel (%p925) target = $region140
        $region139: #{tpu_custom_call.1} parent=123 // pred_region
          %929 = dma.done %s922, 16
        $region140: #{tpu_custom_call.1} parent=123 // pred_fallthru
          _
        // Predicated region
        $region141: #{tpu_custom_call.1} parent=123 // pred_check
          %p930 = pneg %p308
        $region142: #{tpu_custom_call.1} parent=123 // pred_check_branch
          %932 = sbr.rel (%p930) target = $region144
        $region143: #{tpu_custom_call.1} parent=123 // pred_region
          %934 = dma.done [#allocation9], 16
        $region144: #{tpu_custom_call.1} parent=123 // pred_fallthru
          _
        // Predicated region
        $region145: #{tpu_custom_call.1} parent=123 // pred_check
          %p935 = pneg %p329
        $region146: #{tpu_custom_call.1} parent=123 // pred_check_branch
          %937 = sbr.rel (%p935) target = $region148
        $region147: #{tpu_custom_call.1} parent=123 // pred_region
          %939 = dma.done [#allocation12], 16
        $region148: #{tpu_custom_call.1} parent=123 // pred_fallthru
          _
        // Predicated region
        $region149: #{tpu_custom_call.1} parent=123 // pred_check
          %p940 = pneg %p350
        $region150: #{tpu_custom_call.1} parent=123 // pred_check_branch
          %942 = sbr.rel (%p940) target = $region152
        $region151: #{tpu_custom_call.1} parent=123 // pred_region
          %944 = dma.done [#allocation12], 16
        $region152: #{tpu_custom_call.1} parent=123 // pred_fallthru
          _
        // Predicated region
        $region153: #{tpu_custom_call.1} parent=123 // pred_check
          %p945 = pneg %p392
        $region154: #{tpu_custom_call.1} parent=123 // pred_check_branch
          %947 = sbr.rel (%p945) target = $region156
        $region155: #{tpu_custom_call.1} parent=123 // pred_region
          %949 = dma.done [#allocation15], 256
        $region156: #{tpu_custom_call.1} parent=123 // pred_fallthru
          _
        // Predicated region
        $region157: #{tpu_custom_call.1} parent=123 // pred_check
          %p950 = pneg %p413
        $region158: #{tpu_custom_call.1} parent=123 // pred_check_branch
          %952 = sbr.rel (%p950) target = $region160
        $region159: #{tpu_custom_call.1} parent=123 // pred_region
          %954 = dma.done [#allocation15], 256
        $region160: #{tpu_custom_call.1} parent=123 // pred_fallthru
          _
        // Predicated region
        $region161: #{tpu_custom_call.1} parent=123 // pred_check
          %p955 = pneg %p434
        $region162: #{tpu_custom_call.1} parent=123 // pred_check_branch
          %957 = sbr.rel (%p955) target = $region164
        $region163: #{tpu_custom_call.1} parent=123 // pred_region
          %959 = dma.done [#allocation18], 256
        $region164: #{tpu_custom_call.1} parent=123 // pred_fallthru
          _
        // Predicated region
        $region165: #{tpu_custom_call.1} parent=123 // pred_check
          %p960 = pneg %p518
        $region166: #{tpu_custom_call.1} parent=123 // pred_check_branch
          %962 = sbr.rel (%p960) target = $region168
        $region167: #{tpu_custom_call.1} parent=123 // pred_region
          %964 = dma.done [#allocation18], 256
        $region168: #{tpu_custom_call.1} parent=123 // pred_fallthru
          _
        %s965 = sand.u32 %s60, 1
        %s966 = scalar_lea.sflag [#allocation3], %s965
        %s967 = sand.u32 %s60, 1
        %s968 = smul.addr %s967, 4
        %s969 = scalar_lea.vmem [#allocation2], %s968
        %p970 = pneg %p73
        %p971 = pneg %p70
        %s972 = sand.u32 %s52, 1
        %s973 = scalar_lea.sflag [#allocation6], %s972
        %s974 = sand.u32 %s86, 1
        %s975 = smul.addr %s974, 4
        %s976 = scalar_lea.vmem [#allocation5], %s975
        %p977 = pneg %p99
        %p978 = pneg %p96
        %p979 = scmp.lt.s32.totalorder %s52, 1
        %s980 = scalar_select %p979, %s52, 1
        %s981 = smul.addr %s980, 8
        %s982 = scalar_lea.vmem %s2, %s981
        %p983 = pneg %p125
        %p984 = pneg %p122
        %s985 = sand.u32 %s52, 1
        %s986 = scalar_lea.sflag [#allocation6], %s985
        %s987 = sand.u32 %s138, 1
        %s988 = scalar_lea.vmem [#allocation7], %s987
        %p989 = pneg %p151
        %p990 = pneg %p148
        %s991 = sand.u32 %s52, 1
        %s992 = scalar_lea.sflag [#allocation9], %s991
        %s993 = sand.u32 %s164, 1
        %s994 = scalar_lea.vmem [#allocation8], %s993
        %p995 = pneg %p177
        %p996 = pneg %p174
        %p997 = scmp.lt.s32.totalorder %s52, 1
        %s998 = scalar_select %p997, %s52, 1
        %s999 = smul.addr %s998, 8
        %s1000 = scalar_lea.vmem %s5, %s999
        %p1001 = pneg %p203
        %p1002 = pneg %p200
        %p1003 = pneg %p224
        %p1004 = pneg %p221
        %p1005 = pneg %p245
        %p1006 = pneg %p242
        %p1007 = pneg %p266
        %p1008 = pneg %p263
        %p1009 = pneg %p287
        %p1010 = pneg %p284
        %p1011 = pneg %p308
        %p1012 = pneg %p305
        %p1013 = pneg %p329
        %p1014 = pneg %p326
        %p1015 = pneg %p350
        %p1016 = pneg %p347
        %p1017 = pneg %p371
        %p1018 = pneg %p368
        %p1019 = pneg %p392
        %p1020 = pneg %p389
        %p1021 = pneg %p413
        %p1022 = pneg %p410
        %p1023 = pneg %p434
        %p1024 = pneg %p431
        %p1025 = pneg %p455
        %p1026 = pneg %p452
        %p1027 = pneg %p476
        %p1028 = pneg %p473
        %p1029 = pneg %p497
        %p1030 = pneg %p494
        %p1031 = pneg %p518
        %p1032 = pneg %p515
        %p1033 = pneg %p539
        %p1034 = pneg %p536
        %p1035 = pneg %p560
        %p1036 = pneg %p557
        %p1037 = pneg %p581
        %p1038 = pneg %p578
        %p1039 = pneg %p602
        %p1040 = pneg %p599
        %p1041 = pneg %p623
        %p1042 = pneg %p620
        %p1043 = pneg %p649
        %p1044 = pneg %p646
        %s1045 = sand.u32 %s636, 1
        %s1046 = scalar_lea.sflag [#allocation4], %s1045
        %s1047 = sand.u32 %s636, 1
        %s1048 = smul.addr %s1047, 8
        %s1049 = scalar_lea.vmem [#allocation20], %s1048
        %p1050 = scmp.lt.s32.totalorder %s52, 1
        %s1051 = scalar_select %p1050, %s52, 1
        %s1052 = smul.addr %s1051, 8
        %s1053 = scalar_lea.vmem %s2, %s1052
        %p1054 = scmp.lt.s32.totalorder %s52, 1
        %s1055 = scalar_select %p1054, %s52, 1
        %s1056 = smul.addr %s1055, 8
        %s1057 = scalar_lea.vmem %s5, %s1056
        %v1059 = vld [vmem:[%s6] sm:$0xf]
        %v1060 = vld [vmem:[%s6 + $0x4] sm:$0xf]
        %v1061 = vld [vmem:[%s6 + $0x8] sm:$0xf]
        %v1062 = vld [vmem:[%s6 + $0xc] sm:$0xf]
        %v1063 = vld [vmem:[%s7] sm:$0xf]
        %v1064 = vld [vmem:[%s7 + $0x4] sm:$0xf]
        %v1065 = vld [vmem:[%s7 + $0x8] sm:$0xf]
        %v1066 = vld [vmem:[%s7 + $0xc] sm:$0xf]
        %v1067 = vld [vmem:[%s8] sm:$0xf]
        %v1068 = vld [vmem:[%s8 + $0x4] sm:$0xf]
        %v1069 = vld [vmem:[%s8 + $0x8] sm:$0xf]
        %v1070 = vld [vmem:[%s8 + $0xc] sm:$0xf]
        %v1071 = vld [vmem:[%s9] sm:$0xf]
        %v1072 = vld [vmem:[%s9 + $0x4] sm:$0xf]
        %v1073 = vld [vmem:[%s9 + $0x8] sm:$0xf]
        %v1074 = vld [vmem:[%s9 + $0xc] sm:$0xf]
        %v1075 = vld [vmem:[#allocation10] sm:$0x1]
        %v1076 = vld [vmem:[#allocation11] sm:$0x1]
        %v1077 = vld [vmem:[#allocation13] sm:$0x1]
        %v1078 = vld [vmem:[%s13] sm:$0xf]
        %v1079 = vld [vmem:[%s13 + $0x4] sm:$0xf]
        %v1080 = vld [vmem:[%s13 + $0x8] sm:$0xf]
        %v1081 = vld [vmem:[%s13 + $0xc] sm:$0xf]
        %v1082 = vld [vmem:[#allocation14] sm:$0xf]
        %v1083 = vld [vmem:[#allocation14 + $0x4] sm:$0xf]
        %v1084 = vld [vmem:[#allocation14 + $0x8] sm:$0xf]
        %v1085 = vld [vmem:[#allocation14 + $0xc] sm:$0xf]
        %v1086 = vld [vmem:[#allocation16] sm:$0xf]
        %v1087 = vld [vmem:[#allocation16 + $0x4] sm:$0xf]
        %v1088 = vld [vmem:[#allocation16 + $0x8] sm:$0xf]
        %v1089 = vld [vmem:[#allocation16 + $0xc] sm:$0xf]
        %v1090 = vld [vmem:[#allocation17] sm:$0xf]
        %v1091 = vld [vmem:[#allocation17 + $0x4] sm:$0xf]
        %v1092 = vld [vmem:[#allocation17 + $0x8] sm:$0xf]
        %v1093 = vld [vmem:[#allocation17 + $0xc] sm:$0xf]
        %v1094 = vld [vmem:[%s17] sm:$0x1]
        %v1095 = vld [vmem:[%s18] sm:$0x1]
        %v1096 = vld [vmem:[%s19] sm:$0x1]
        %v1097 = vld [vmem:[#allocation19] sm:$0xf]
        %v1098 = vld [vmem:[#allocation19 + $0x4] sm:$0xf]
        %v1099 = vld [vmem:[#allocation19 + $0x8] sm:$0xf]
        %v1100 = vld [vmem:[#allocation19 + $0xc] sm:$0xf]
        %v1101 = vld [vmem:[%s21] sm:$0x1]
        %v1102 = vld [vmem:[%s22] sm:$0xf]
        %v1103 = vld [vmem:[%s22 + $0x4] sm:$0xf]
        %v1104 = vld [vmem:[%s22 + $0x8] sm:$0xf]
        %v1105 = vld [vmem:[%s22 + $0xc] sm:$0xf]
        %v1106 = vld [vmem:[%s22 + $0x10] sm:$0xf]
        %v1107 = vld [vmem:[%s22 + $0x14] sm:$0xf]
        %v1108 = vld [vmem:[%s22 + $0x18] sm:$0xf]
        %v1109 = vld [vmem:[%s22 + $0x1c] sm:$0xf]
        %v1110 = vld [vmem:[%s22 + $0x20] sm:$0xf]
        %v1111 = vld [vmem:[%s22 + $0x24] sm:$0xf]
        %v1112 = vld [vmem:[%s22 + $0x28] sm:$0xf]
        %v1113 = vld [vmem:[%s22 + $0x2c] sm:$0xf]
        %v1114 = vld [vmem:[%s22 + $0x30] sm:$0xf]
        %v1115 = vld [vmem:[%s22 + $0x34] sm:$0xf]
        %v1116 = vld [vmem:[%s22 + $0x38] sm:$0xf]
        %v1117 = vld [vmem:[%s22 + $0x3c] sm:$0xf]
        %v1118 = vld [vmem:[%s23] sm:$0x1]
        %v1119 = vld [vmem:[%s24] sm:$0x1]
        %v1120 = vld [vmem:[%s25] sm:$0x1]
        %v1121 = vld [vmem:[%s1053] sm:$0xff]
        %v1122 = vld [vmem:[%s896] sm:$0xf]
        %v1123 = vld [vmem:[%s906] sm:$0xf]
        %v1124 = vld [vmem:[%s915] sm:$0x1]
        %v1125 = vld [vmem:[%s924] sm:$0x1]
        %v1126 = vld [vmem:[%s1057] sm:$0xff]
        %v1127 = vpack.c.bf16 %v1121, %v1121
        %v1132 = vunpack.c.l.b16 %v1059
        %v1133 = vunpack.c.l.b16 %v1060
        %v1134 = vunpack.c.l.b16 %v1061
        %v1135 = vunpack.c.l.b16 %v1062
        %v1136 = vpack.c.b16 %v1133, %v1132
        %v1137 = vpack.c.b16 %v1135, %v1134
        %vm1140 = vcmask 261120
        %v1142 = vsel %vm1140, %v1127, 0
        %1144 = vmatpush.bf16.msra.mxu0 0
        %1145 = vmatpush.bf16.msra.mxu0 0
        %1146 = vmatpush.bf16.msra.mxu0 0
        %1147 = vmatpush.bf16.msra.mxu0 0
        %1148 = vmatpush.bf16.msra.mxu0 0
        %1149 = vmatpush.bf16.msra.mxu0 0
        %1150 = vmatpush.bf16.msra.mxu0 %v1137
        %1151 = vmatpush.bf16.msra.mxu0 %v1136
        %1152 = vmatmul.bf16.gmra.mxu0 %v1142
        %v1153 = vpop.f32.mrf.mxu0
        %v1154 = vadd.f32 0.0, %v1153
        %v1155 = vpop.f32.mrf.mxu0
        %1156 = vdwg.mxu0
        %v1161 = vunpack.c.l.b16 %v1063
        %v1162 = vunpack.c.l.b16 %v1064
        %v1163 = vunpack.c.l.b16 %v1065
        %v1164 = vunpack.c.l.b16 %v1066
        %v1165 = vpack.c.b16 %v1162, %v1161
        %v1166 = vpack.c.b16 %v1164, %v1163
        %v1170 = vsel %vm1140, %v1123, 0
        %1172 = vmatpush.bf16.msra.mxu0 0
        %1173 = vmatpush.bf16.msra.mxu0 0
        %1174 = vmatpush.bf16.msra.mxu0 0
        %1175 = vmatpush.bf16.msra.mxu0 0
        %1176 = vmatpush.bf16.msra.mxu0 0
        %1177 = vmatpush.bf16.msra.mxu0 0
        %1178 = vmatpush.bf16.msra.mxu0 %v1166
        %1179 = vmatpush.bf16.msra.mxu0 %v1165
        %1180 = vmatmul.bf16.gmra.mxu0 %v1170
        %v1181 = vpop.f32.mrf.mxu0
        %v1182 = vadd.f32 0.0, %v1181
        %v1183 = vpop.f32.mrf.mxu0
        %1184 = vdwg.mxu0
        %v1189 = vunpack.c.l.b16 %v1067
        %v1190 = vunpack.c.l.b16 %v1068
        %v1191 = vunpack.c.l.b16 %v1069
        %v1192 = vunpack.c.l.b16 %v1070
        %v1193 = vpack.c.b16 %v1190, %v1189
        %v1194 = vpack.c.b16 %v1192, %v1191
        %v1198 = vsel %vm1140, %v1122, 0
        %1200 = vmatpush.bf16.msra.mxu0 0
        %1201 = vmatpush.bf16.msra.mxu0 0
        %1202 = vmatpush.bf16.msra.mxu0 0
        %1203 = vmatpush.bf16.msra.mxu0 0
        %1204 = vmatpush.bf16.msra.mxu0 0
        %1205 = vmatpush.bf16.msra.mxu0 0
        %1206 = vmatpush.bf16.msra.mxu0 %v1194
        %1207 = vmatpush.bf16.msra.mxu0 %v1193
        %1208 = vmatmul.bf16.gmra.mxu0 %v1198
        %v1209 = vpop.f32.mrf.mxu0
        %v1210 = vadd.f32 0.0, %v1209
        %v1211 = vpop.f32.mrf.mxu0
        %1212 = vdwg.mxu0
        %v1213 = vpack.c.bf16 %v1154, %v1154
        %1215 = vrot.lane.b32.xlu0 %v1213, 120
        %v1216 = vpop.permute.xlu0 %1215
        %1217 = vrot.lane.b32.xlu0 %v1213, 112
        %v1218 = vpop.permute.xlu0 %1217
        %1219 = vrot.lane.b32.xlu0 %v1213, 104
        %v1220 = vpop.permute.xlu0 %1219
        %v1221 = vpack.c.bf16 %v1182, %v1182
        %1223 = vrot.lane.b32.xlu0 %v1221, 120
        %v1224 = vpop.permute.xlu0 %1223
        %1225 = vrot.lane.b32.xlu0 %v1221, 112
        %v1226 = vpop.permute.xlu0 %1225
        %1227 = vrot.lane.b32.xlu0 %v1221, 104
        %v1228 = vpop.permute.xlu0 %1227
        %v1229 = vpack.c.bf16 %v1210, %v1210
        %1231 = vrot.lane.b32.xlu0 %v1229, 120
        %v1232 = vpop.permute.xlu0 %1231
        %1233 = vrot.lane.b32.xlu0 %v1229, 112
        %v1234 = vpop.permute.xlu0 %1233
        %1235 = vrot.lane.b32.xlu0 %v1229, 104
        %v1236 = vpop.permute.xlu0 %1235
        %v1238 = vperm.slane %v1125, 0
        %vm1240 = vcmask 64512
        %v1242 = vsel %vm1240, %v1213, 0
        %v1245 = vsel %vm1240, %v1221, 0
        %1247 = vmatpush.bf16.xpose.msra.mxu0 0
        %1248 = vmatpush.bf16.xpose.msra.mxu0 0
        %1249 = vmatpush.bf16.xpose.msra.mxu0 0
        %1250 = vmatpush.bf16.xpose.msra.mxu0 0
        %1251 = vmatpush.bf16.xpose.msra.mxu0 0
        %1252 = vmatpush.bf16.xpose.msra.mxu0 0
        %1253 = vmatpush.bf16.xpose.msra.mxu0 0
        %1254 = vmatpush.bf16.xpose.msra.mxu0 %v1245
        %1255 = vmatmul.bf16.gmra.mxu0 %v1242
        %v1256 = vpop.f32.mrf.mxu0
        %v1257 = vadd.f32 %v1238, %v1256
        %v1258 = vpop.f32.mrf.mxu0
        %1259 = vdwg.mxu0
        %v1261 = vsel %vm1240, %v1216, 0
        %v1264 = vsel %vm1240, %v1224, 0
        %1266 = vmatpush.bf16.xpose.msra.mxu0 0
        %1267 = vmatpush.bf16.xpose.msra.mxu0 0
        %1268 = vmatpush.bf16.xpose.msra.mxu0 0
        %1269 = vmatpush.bf16.xpose.msra.mxu0 0
        %1270 = vmatpush.bf16.xpose.msra.mxu0 0
        %1271 = vmatpush.bf16.xpose.msra.mxu0 0
        %1272 = vmatpush.bf16.xpose.msra.mxu0 0
        %1273 = vmatpush.bf16.xpose.msra.mxu0 %v1264
        %1274 = vmatmul.bf16.gmra.mxu0 %v1261
        %v1275 = vpop.f32.mrf.mxu0
        %v1276 = vadd.f32 %v1238, %v1275
        %v1277 = vpop.f32.mrf.mxu0
        %1278 = vdwg.mxu0
        %v1280 = vsel %vm1240, %v1218, 0
        %v1283 = vsel %vm1240, %v1226, 0
        %1285 = vmatpush.bf16.xpose.msra.mxu0 0
        %1286 = vmatpush.bf16.xpose.msra.mxu0 0
        %1287 = vmatpush.bf16.xpose.msra.mxu0 0
        %1288 = vmatpush.bf16.xpose.msra.mxu0 0
        %1289 = vmatpush.bf16.xpose.msra.mxu0 0
        %1290 = vmatpush.bf16.xpose.msra.mxu0 0
        %1291 = vmatpush.bf16.xpose.msra.mxu0 0
        %1292 = vmatpush.bf16.xpose.msra.mxu0 %v1283
        %1293 = vmatmul.bf16.gmra.mxu0 %v1280
        %v1294 = vpop.f32.mrf.mxu0
        %v1295 = vadd.f32 %v1238, %v1294
        %v1296 = vpop.f32.mrf.mxu0
        %1297 = vdwg.mxu0
        %v1299 = vsel %vm1240, %v1220, 0
        %v1302 = vsel %vm1240, %v1228, 0
        %1304 = vmatpush.bf16.xpose.msra.mxu0 0
        %1305 = vmatpush.bf16.xpose.msra.mxu0 0
        %1306 = vmatpush.bf16.xpose.msra.mxu0 0
        %1307 = vmatpush.bf16.xpose.msra.mxu0 0
        %1308 = vmatpush.bf16.xpose.msra.mxu0 0
        %1309 = vmatpush.bf16.xpose.msra.mxu0 0
        %1310 = vmatpush.bf16.xpose.msra.mxu0 0
        %1311 = vmatpush.bf16.xpose.msra.mxu0 %v1302
        %1312 = vmatmul.bf16.gmra.mxu0 %v1299
        %v1313 = vpop.f32.mrf.mxu0
        %v1314 = vadd.f32 %v1238, %v1313
        %v1315 = vpop.f32.mrf.mxu0
        %1316 = vdwg.mxu0
        %v1317 = vsel %vm1240, %v1257, -inf
        %1318 = vmax.xlane.f32.xlu0 %v1317
        %v1319 = vpop.xlane.xlu0 %1318
        %v1320 = vsel %vm1240, %v1276, -inf
        %1321 = vmax.xlane.f32.xlu0 %v1320
        %v1322 = vpop.xlane.xlu0 %1321
        %v1323 = vsel %vm1240, %v1295, -inf
        %1324 = vmax.xlane.f32.xlu0 %v1323
        %v1325 = vpop.xlane.xlu0 %1324
        %v1326 = vsel %vm1240, %v1314, -inf
        %1327 = vmax.xlane.f32.xlu0 %v1326
        %v1328 = vpop.xlane.xlu0 %1327
        %v1329 = vsub.f32 %v1257, %v1319
        %v1330 = vsub.f32 %v1276, %v1322
        %v1331 = vsub.f32 %v1295, %v1325
        %v1332 = vsub.f32 %v1314, %v1328
        %v1333 = vmul.f32 %v1329, 1.442695
        %v1334 = vpow.pop %v1333
        %v1335 = vmul.f32 %v1330, 1.442695
        %v1336 = vpow.pop %v1335
        %v1337 = vmul.f32 %v1331, 1.442695
        %v1338 = vpow.pop %v1337
        %v1339 = vmul.f32 %v1332, 1.442695
        %v1340 = vpow.pop %v1339
        %v1341 = vsel %vm1240, %v1334, 0.0
        %1342 = vadd.xlane.f32.xlu0 %v1341
        %v1343 = vpop.xlane.xlu0 %1342
        %v1344 = vsel %vm1240, %v1336, 0.0
        %1345 = vadd.xlane.f32.xlu0 %v1344
        %v1346 = vpop.xlane.xlu0 %1345
        %v1347 = vsel %vm1240, %v1338, 0.0
        %1348 = vadd.xlane.f32.xlu0 %v1347
        %v1349 = vpop.xlane.xlu0 %1348
        %v1350 = vsel %vm1240, %v1340, 0.0
        %1351 = vadd.xlane.f32.xlu0 %v1350
        %v1352 = vpop.xlane.xlu0 %1351
        %v1353 = vrcp.pop %v1343
        %v1354 = vrcp.pop %v1346
        %v1355 = vrcp.pop %v1349
        %v1356 = vrcp.pop %v1352
        %v1357 = vmul.f32 %v1334, %v1353
        %v1358 = vmul.f32 %v1336, %v1354
        %v1359 = vmul.f32 %v1338, %v1355
        %v1360 = vmul.f32 %v1340, %v1356
        %v1361 = vpack.c.bf16 %v1357, %v1357
        %v1362 = vpack.c.bf16 %v1358, %v1358
        %v1363 = vpack.c.bf16 %v1359, %v1359
        %v1364 = vpack.c.bf16 %v1360, %v1360
        %v1366 = vsel %vm1240, %v1361, 0
        %vm1368 = vcmask 1043456
        %v1370 = vsel %vm1368, %v1229, 0
        %1372 = vmatpush.bf16.msra.mxu0 0
        %1373 = vmatpush.bf16.msra.mxu0 0
        %1374 = vmatpush.bf16.msra.mxu0 0
        %1375 = vmatpush.bf16.msra.mxu0 0
        %1376 = vmatpush.bf16.msra.mxu0 0
        %1377 = vmatpush.bf16.msra.mxu0 0
        %1378 = vmatpush.bf16.msra.mxu0 0
        %1379 = vmatpush.bf16.msra.mxu0 %v1370
        %1380 = vmatmul.bf16.gmra.mxu0 %v1366
        %v1381 = vpop.f32.mrf.mxu0
        %v1382 = vadd.f32 0.0, %v1381
        %v1383 = vpop.f32.mrf.mxu0
        %1384 = vdwg.mxu0
        %v1386 = vsel %vm1240, %v1362, 0
        %v1389 = vsel %vm1368, %v1232, 0
        %1391 = vmatpush.bf16.msra.mxu0 0
        %1392 = vmatpush.bf16.msra.mxu0 0
        %1393 = vmatpush.bf16.msra.mxu0 0
        %1394 = vmatpush.bf16.msra.mxu0 0
        %1395 = vmatpush.bf16.msra.mxu0 0
        %1396 = vmatpush.bf16.msra.mxu0 0
        %1397 = vmatpush.bf16.msra.mxu0 0
        %1398 = vmatpush.bf16.msra.mxu0 %v1389
        %1399 = vmatmul.bf16.gmra.mxu0 %v1386
        %v1400 = vpop.f32.mrf.mxu0
        %v1401 = vadd.f32 0.0, %v1400
        %v1402 = vpop.f32.mrf.mxu0
        %1403 = vdwg.mxu0
        %v1405 = vsel %vm1240, %v1363, 0
        %v1408 = vsel %vm1368, %v1234, 0
        %1410 = vmatpush.bf16.msra.mxu0 0
        %1411 = vmatpush.bf16.msra.mxu0 0
        %1412 = vmatpush.bf16.msra.mxu0 0
        %1413 = vmatpush.bf16.msra.mxu0 0
        %1414 = vmatpush.bf16.msra.mxu0 0
        %1415 = vmatpush.bf16.msra.mxu0 0
        %1416 = vmatpush.bf16.msra.mxu0 0
        %1417 = vmatpush.bf16.msra.mxu0 %v1408
        %1418 = vmatmul.bf16.gmra.mxu0 %v1405
        %v1419 = vpop.f32.mrf.mxu0
        %v1420 = vadd.f32 0.0, %v1419
        %v1421 = vpop.f32.mrf.mxu0
        %1422 = vdwg.mxu0
        %v1424 = vsel %vm1240, %v1364, 0
        %v1427 = vsel %vm1368, %v1236, 0
        %1429 = vmatpush.bf16.msra.mxu0 0
        %1430 = vmatpush.bf16.msra.mxu0 0
        %1431 = vmatpush.bf16.msra.mxu0 0
        %1432 = vmatpush.bf16.msra.mxu0 0
        %1433 = vmatpush.bf16.msra.mxu0 0
        %1434 = vmatpush.bf16.msra.mxu0 0
        %1435 = vmatpush.bf16.msra.mxu0 0
        %1436 = vmatpush.bf16.msra.mxu0 %v1427
        %1437 = vmatmul.bf16.gmra.mxu0 %v1424
        %v1438 = vpop.f32.mrf.mxu0
        %v1439 = vadd.f32 0.0, %v1438
        %v1440 = vpop.f32.mrf.mxu0
        %1441 = vdwg.mxu0
        %v1442 = vpack.c.bf16 %v1382, %v1382
        %v1443 = vpack.c.bf16 %v1401, %v1401
        %v1444 = vpack.c.bf16 %v1420, %v1420
        %v1445 = vpack.c.bf16 %v1439, %v1439
        %v1447 = vunpack.c.l.b16 %v1443
        %v1448 = vpack.c.b16 %v1447, %v1447
        %1449 = vrot.lane.b32.xlu0 %v1448, 8
        %v1450 = vpop.permute.xlu0 %1449
        %v1452 = vunpack.c.l.b16 %v1444
        %v1453 = vpack.c.b16 %v1452, %v1452
        %1454 = vrot.lane.b32.xlu0 %v1453, 16
        %v1455 = vpop.permute.xlu0 %1454
        %v1457 = vunpack.c.l.b16 %v1445
        %v1458 = vpack.c.b16 %v1457, %v1457
        %1459 = vrot.lane.b32.xlu0 %v1458, 24
        %v1460 = vpop.permute.xlu0 %1459
        %v1463 = vsel %vm1240, %v1442, %v1450
        %vm1464 = vcmask 130048
        %v1466 = vsel %vm1464, %v1463, %v1455
        %vm1467 = vcmask 195584
        %v1469 = vsel %vm1467, %v1466, %v1460
        %v1471 = vperm.slane %v1075, 0
        %v1477 = vunpack.c.l.b16 %v1071
        %v1478 = vunpack.c.l.b16 %v1072
        %v1479 = vunpack.c.l.b16 %v1073
        %v1480 = vunpack.c.l.b16 %v1074
        %v1481 = vpack.c.b16 %v1478, %v1477
        %v1482 = vpack.c.b16 %v1480, %v1479
        %v1485 = vsel %vm1140, %v1469, 0
        %1487 = vmatpush.bf16.msra.mxu0 0
        %1488 = vmatpush.bf16.msra.mxu0 0
        %1489 = vmatpush.bf16.msra.mxu0 0
        %1490 = vmatpush.bf16.msra.mxu0 0
        %1491 = vmatpush.bf16.msra.mxu0 0
        %1492 = vmatpush.bf16.msra.mxu0 0
        %1493 = vmatpush.bf16.msra.mxu0 %v1482
        %1494 = vmatpush.bf16.msra.mxu0 %v1481
        %1495 = vmatmul.bf16.gmra.mxu0 %v1485
        %v1496 = vpop.f32.mrf.mxu0
        %v1497 = vadd.f32 %v1471, %v1496
        %v1498 = vpop.f32.mrf.mxu0
        %1499 = vdwg.mxu0
        %v1500 = vadd.f32 %v1497, %v1121
        %v1501 = vsel %vm1140, %v1500, 0.0
        %1502 = vadd.xlane.f32.xlu0 %v1501
        %v1503 = vpop.xlane.xlu0 %1502
        %v1504 = vrcp.pop 32.0
        %v1505 = vmul.f32 32.0, %v1504
        %v1506 = vsub.f32 1.0, %v1505
        %v1507 = vmul.f32 %v1504, %v1506
        %v1508 = vadd.f32 %v1504, %v1507
        %vm1509 = vweird.f32 %v1504
        %v1510 = vsel %vm1509, %v1504, %v1508
        %v1511 = vmul.f32 %v1503, %v1510
        %v1512 = vsub.f32 %v1500, %v1511
        %v1513 = vmul.f32 %v1512, %v1512
        %v1514 = vsel %vm1140, %v1513, 0.0
        %1515 = vadd.xlane.f32.xlu0 %v1514
        %v1516 = vpop.xlane.xlu0 %1515
        %v1517 = vmul.f32 %v1516, %v1510
        %v1518 = vadd.f32 %v1517, 1e-05
        %v1519 = vrsqrt.pop %v1518
        %v1520 = vmul.f32 %v1519, %v1518
        %v1521 = vmul.f32 %v1520, %v1519
        %v1522 = vmul.f32 0.5, %v1521
        %v1523 = vsub.f32 1.5, %v1522
        %v1524 = vmul.f32 %v1519, %v1523
        %vm1525 = vweird.f32 %v1518
        %vm1526 = vweird.f32 %v1519
        %vm1527 = vmor %vm1525, %vm1526
        %v1528 = vsel %vm1527, %v1519, %v1524
        %v1529 = vmul.f32 %v1512, %v1528
        %v1531 = vperm.slane %v1076, 0
        %v1533 = vmul.f32 %v1529, %v1531
        %v1535 = vperm.slane %v1077, 0
        %v1537 = vadd.f32 %v1533, %v1535
        %v1538 = vpack.c.bf16 %v1537, %v1537
        %v1543 = vunpack.c.l.b16 %v1078
        %v1544 = vunpack.c.l.b16 %v1079
        %v1545 = vunpack.c.l.b16 %v1080
        %v1546 = vunpack.c.l.b16 %v1081
        %v1547 = vpack.c.b16 %v1544, %v1543
        %v1548 = vpack.c.b16 %v1546, %v1545
        %v1552 = vsel %vm1140, %v1538, 0
        %1554 = vmatpush.bf16.msra.mxu0 0
        %1555 = vmatpush.bf16.msra.mxu0 0
        %1556 = vmatpush.bf16.msra.mxu0 0
        %1557 = vmatpush.bf16.msra.mxu0 0
        %1558 = vmatpush.bf16.msra.mxu0 0
        %1559 = vmatpush.bf16.msra.mxu0 0
        %1560 = vmatpush.bf16.msra.mxu0 %v1548
        %1561 = vmatpush.bf16.msra.mxu0 %v1547
        %1562 = vmatmul.bf16.gmra.mxu0 %v1552
        %v1563 = vpop.f32.mrf.mxu0
        %v1564 = vadd.f32 0.0, %v1563
        %v1565 = vpop.f32.mrf.mxu0
        %1566 = vdwg.mxu0
        %v1571 = vunpack.c.l.b16 %v1082
        %v1572 = vunpack.c.l.b16 %v1083
        %v1573 = vunpack.c.l.b16 %v1084
        %v1574 = vunpack.c.l.b16 %v1085
        %v1575 = vpack.c.b16 %v1572, %v1571
        %v1576 = vpack.c.b16 %v1574, %v1573
        %v1580 = vsel %vm1140, %v1124, 0
        %1582 = vmatpush.bf16.msra.mxu0 0
        %1583 = vmatpush.bf16.msra.mxu0 0
        %1584 = vmatpush.bf16.msra.mxu0 0
        %1585 = vmatpush.bf16.msra.mxu0 0
        %1586 = vmatpush.bf16.msra.mxu0 0
        %1587 = vmatpush.bf16.msra.mxu0 0
        %1588 = vmatpush.bf16.msra.mxu0 %v1576
        %1589 = vmatpush.bf16.msra.mxu0 %v1575
        %1590 = vmatmul.bf16.gmra.mxu0 %v1580
        %v1591 = vpop.f32.mrf.mxu0
        %v1592 = vadd.f32 0.0, %v1591
        %v1593 = vpop.f32.mrf.mxu0
        %1594 = vdwg.mxu0
        %v1599 = vunpack.c.l.b16 %v1086
        %v1600 = vunpack.c.l.b16 %v1087
        %v1601 = vunpack.c.l.b16 %v1088
        %v1602 = vunpack.c.l.b16 %v1089
        %v1603 = vpack.c.b16 %v1600, %v1599
        %v1604 = vpack.c.b16 %v1602, %v1601
        %1607 = vmatpush.bf16.msra.mxu0 0
        %1608 = vmatpush.bf16.msra.mxu0 0
        %1609 = vmatpush.bf16.msra.mxu0 0
        %1610 = vmatpush.bf16.msra.mxu0 0
        %1611 = vmatpush.bf16.msra.mxu0 0
        %1612 = vmatpush.bf16.msra.mxu0 0
        %1613 = vmatpush.bf16.msra.mxu0 %v1604
        %1614 = vmatpush.bf16.msra.mxu0 %v1603
        %1615 = vmatmul.bf16.gmra.mxu0 %v1580
        %v1616 = vpop.f32.mrf.mxu0
        %v1617 = vadd.f32 0.0, %v1616
        %v1618 = vpop.f32.mrf.mxu0
        %1619 = vdwg.mxu0
        %v1620 = vpack.c.bf16 %v1564, %v1564
        %1622 = vrot.lane.b32.xlu0 %v1620, 112
        %v1623 = vpop.permute.xlu0 %1622
        %v1624 = vpack.c.bf16 %v1592, %v1592
        %1626 = vrot.lane.b32.xlu0 %v1624, 112
        %v1627 = vpop.permute.xlu0 %1626
        %v1628 = vpack.c.bf16 %v1617, %v1617
        %1630 = vrot.lane.b32.xlu0 %v1628, 112
        %v1631 = vpop.permute.xlu0 %1630
        %v1633 = vsel %vm1464, %v1620, 0
        %v1636 = vsel %vm1464, %v1624, 0
        %1638 = vmatpush.bf16.xpose.msra.mxu0 0
        %1639 = vmatpush.bf16.xpose.msra.mxu0 0
        %1640 = vmatpush.bf16.xpose.msra.mxu0 0
        %1641 = vmatpush.bf16.xpose.msra.mxu0 0
        %1642 = vmatpush.bf16.xpose.msra.mxu0 0
        %1643 = vmatpush.bf16.xpose.msra.mxu0 0
        %1644 = vmatpush.bf16.xpose.msra.mxu0 0
        %1645 = vmatpush.bf16.xpose.msra.mxu0 %v1636
        %1646 = vmatmul.bf16.gmra.mxu0 %v1633
        %v1647 = vpop.f32.mrf.mxu0
        %v1648 = vadd.f32 0.0, %v1647
        %v1649 = vpop.f32.mrf.mxu0
        %1650 = vdwg.mxu0
        %v1652 = vsel %vm1464, %v1623, 0
        %v1655 = vsel %vm1464, %v1627, 0
        %1657 = vmatpush.bf16.xpose.msra.mxu0 0
        %1658 = vmatpush.bf16.xpose.msra.mxu0 0
        %1659 = vmatpush.bf16.xpose.msra.mxu0 0
        %1660 = vmatpush.bf16.xpose.msra.mxu0 0
        %1661 = vmatpush.bf16.xpose.msra.mxu0 0
        %1662 = vmatpush.bf16.xpose.msra.mxu0 0
        %1663 = vmatpush.bf16.xpose.msra.mxu0 0
        %1664 = vmatpush.bf16.xpose.msra.mxu0 %v1655
        %1665 = vmatmul.bf16.gmra.mxu0 %v1652
        %v1666 = vpop.f32.mrf.mxu0
        %v1667 = vadd.f32 0.0, %v1666
        %v1668 = vpop.f32.mrf.mxu0
        %1669 = vdwg.mxu0
        %vm1670 = vcmp.eq.f32.partialorder %v1126, 0.0
        %v1671 = vsel %vm1670, 1, 0
        %1672 = vset.pattern.permute.xlu0 0
        %1673 = vperm.xlu0 %1672, %v1671
        %v1674 = vpop.permute.xlu0 %1673
        %vm1675 = vcmp.eq.s32.totalorder %v1674, 1
        %v1676 = vsel %vm1675, -1e+20, %v1648
        %v1677 = vsel %vm1675, -1e+20, %v1667
        %vm1678 = vcmask 15360
        %v1679 = vsel %vm1678, %v1676, -inf
        %1680 = vmax.xlane.f32.xlu0 %v1679
        %v1681 = vpop.xlane.xlu0 %1680
        %v1682 = vsel %vm1678, %v1677, -inf
        %1683 = vmax.xlane.f32.xlu0 %v1682
        %v1684 = vpop.xlane.xlu0 %1683
        %v1685 = vsub.f32 %v1676, %v1681
        %v1686 = vsub.f32 %v1677, %v1684
        %v1687 = vmul.f32 %v1685, 1.442695
        %v1688 = vpow.pop %v1687
        %v1689 = vmul.f32 %v1686, 1.442695
        %v1690 = vpow.pop %v1689
        %v1691 = vsel %vm1678, %v1688, 0.0
        %1692 = vadd.xlane.f32.xlu0 %v1691
        %v1693 = vpop.xlane.xlu0 %1692
        %v1694 = vsel %vm1678, %v1690, 0.0
        %1695 = vadd.xlane.f32.xlu0 %v1694
        %v1696 = vpop.xlane.xlu0 %1695
        %v1697 = vrcp.pop %v1693
        %v1698 = vrcp.pop %v1696
        %v1699 = vmul.f32 %v1688, %v1697
        %v1700 = vmul.f32 %v1690, %v1698
        %v1701 = vpack.c.bf16 %v1699, %v1699
        %v1702 = vpack.c.bf16 %v1700, %v1700
        %v1704 = vsel %vm1678, %v1701, 0
        %vm1706 = vcmask 1040384
        %v1708 = vsel %vm1706, %v1628, 0
        %1710 = vmatpush.bf16.msra.mxu0 0
        %1711 = vmatpush.bf16.msra.mxu0 0
        %1712 = vmatpush.bf16.msra.mxu0 0
        %1713 = vmatpush.bf16.msra.mxu0 0
        %1714 = vmatpush.bf16.msra.mxu0 0
        %1715 = vmatpush.bf16.msra.mxu0 0
        %1716 = vmatpush.bf16.msra.mxu0 0
        %1717 = vmatpush.bf16.msra.mxu0 %v1708
        %1718 = vmatmul.bf16.gmra.mxu0 %v1704
        %v1719 = vpop.f32.mrf.mxu0
        %v1720 = vadd.f32 0.0, %v1719
        %v1721 = vpop.f32.mrf.mxu0
        %1722 = vdwg.mxu0
        %v1724 = vsel %vm1678, %v1702, 0
        %v1727 = vsel %vm1706, %v1631, 0
        %1729 = vmatpush.bf16.msra.mxu0 0
        %1730 = vmatpush.bf16.msra.mxu0 0
        %1731 = vmatpush.bf16.msra.mxu0 0
        %1732 = vmatpush.bf16.msra.mxu0 0
        %1733 = vmatpush.bf16.msra.mxu0 0
        %1734 = vmatpush.bf16.msra.mxu0 0
        %1735 = vmatpush.bf16.msra.mxu0 0
        %1736 = vmatpush.bf16.msra.mxu0 %v1727
        %1737 = vmatmul.bf16.gmra.mxu0 %v1724
        %v1738 = vpop.f32.mrf.mxu0
        %v1739 = vadd.f32 0.0, %v1738
        %v1740 = vpop.f32.mrf.mxu0
        %1741 = vdwg.mxu0
        %v1742 = vpack.c.bf16 %v1720, %v1720
        %v1743 = vpack.c.bf16 %v1739, %v1739
        %v1745 = vunpack.c.l.b16 %v1743
        %v1746 = vpack.c.b16 %v1745, %v1745
        %1747 = vrot.lane.b32.xlu0 %v1746, 16
        %v1748 = vpop.permute.xlu0 %1747
        %v1751 = vsel %vm1464, %v1742, %v1748
        %v1753 = vperm.slane %v1094, 0
        %v1759 = vunpack.c.l.b16 %v1090
        %v1760 = vunpack.c.l.b16 %v1091
        %v1761 = vunpack.c.l.b16 %v1092
        %v1762 = vunpack.c.l.b16 %v1093
        %v1763 = vpack.c.b16 %v1760, %v1759
        %v1764 = vpack.c.b16 %v1762, %v1761
        %v1767 = vsel %vm1140, %v1751, 0
        %1769 = vmatpush.bf16.msra.mxu0 0
        %1770 = vmatpush.bf16.msra.mxu0 0
        %1771 = vmatpush.bf16.msra.mxu0 0
        %1772 = vmatpush.bf16.msra.mxu0 0
        %1773 = vmatpush.bf16.msra.mxu0 0
        %1774 = vmatpush.bf16.msra.mxu0 0
        %1775 = vmatpush.bf16.msra.mxu0 %v1764
        %1776 = vmatpush.bf16.msra.mxu0 %v1763
        %1777 = vmatmul.bf16.gmra.mxu0 %v1767
        %v1778 = vpop.f32.mrf.mxu0
        %v1779 = vadd.f32 %v1753, %v1778
        %v1780 = vpop.f32.mrf.mxu0
        %1781 = vdwg.mxu0
        %v1782 = vadd.f32 %v1537, %v1779
        %v1783 = vsel %vm1140, %v1782, 0.0
        %1784 = vadd.xlane.f32.xlu0 %v1783
        %v1785 = vpop.xlane.xlu0 %1784
        %v1786 = vmul.f32 %v1785, %v1510
        %v1787 = vsub.f32 %v1782, %v1786
        %v1788 = vmul.f32 %v1787, %v1787
        %v1789 = vsel %vm1140, %v1788, 0.0
        %1790 = vadd.xlane.f32.xlu0 %v1789
        %v1791 = vpop.xlane.xlu0 %1790
        %v1792 = vmul.f32 %v1791, %v1510
        %v1793 = vadd.f32 %v1792, 1e-05
        %v1794 = vrsqrt.pop %v1793
        %v1795 = vmul.f32 %v1794, %v1793
        %v1796 = vmul.f32 %v1795, %v1794
        %v1797 = vmul.f32 0.5, %v1796
        %v1798 = vsub.f32 1.5, %v1797
        %v1799 = vmul.f32 %v1794, %v1798
        %vm1800 = vweird.f32 %v1793
        %vm1801 = vweird.f32 %v1794
        %vm1802 = vmor %vm1800, %vm1801
        %v1803 = vsel %vm1802, %v1794, %v1799
        %v1804 = vmul.f32 %v1787, %v1803
        %v1806 = vperm.slane %v1095, 0
        %v1808 = vmul.f32 %v1804, %v1806
        %v1810 = vperm.slane %v1096, 0
        %v1812 = vadd.f32 %v1808, %v1810
        %v1813 = vpack.c.bf16 %v1812, %v1812
        %v1815 = vperm.slane %v1101, 0
        %v1821 = vunpack.c.l.b16 %v1097
        %v1822 = vunpack.c.l.b16 %v1098
        %v1823 = vunpack.c.l.b16 %v1099
        %v1824 = vunpack.c.l.b16 %v1100
        %v1825 = vpack.c.b16 %v1822, %v1821
        %v1826 = vpack.c.b16 %v1824, %v1823
        %v1830 = vsel %vm1140, %v1813, 0
        %1832 = vmatpush.bf16.msra.mxu0 0
        %1833 = vmatpush.bf16.msra.mxu0 0
        %1834 = vmatpush.bf16.msra.mxu0 0
        %1835 = vmatpush.bf16.msra.mxu0 0
        %1836 = vmatpush.bf16.msra.mxu0 0
        %1837 = vmatpush.bf16.msra.mxu0 0
        %1838 = vmatpush.bf16.msra.mxu0 %v1826
        %1839 = vmatpush.bf16.msra.mxu0 %v1825
        %1840 = vmatmul.bf16.gmra.mxu0 %v1830
        %v1841 = vpop.f32.mrf.mxu0
        %v1842 = vadd.f32 %v1815, %v1841
        %v1843 = vpop.f32.mrf.mxu0
        %1844 = vdwg.mxu0
        %v1845 = vmax.f32 %v1842, 0.0
        %v1846 = vpack.c.bf16 %v1845, %v1845
        %v1848 = vperm.slane %v1118, 0
        %v1866 = vunpack.c.l.b16 %v1102
        %v1867 = vunpack.c.l.b16 %v1103
        %v1868 = vunpack.c.l.b16 %v1104
        %v1869 = vunpack.c.l.b16 %v1105
        %v1870 = vunpack.c.l.b16 %v1106
        %v1871 = vunpack.c.l.b16 %v1107
        %v1872 = vunpack.c.l.b16 %v1108
        %v1873 = vunpack.c.l.b16 %v1109
        %v1874 = vunpack.c.l.b16 %v1110
        %v1875 = vunpack.c.l.b16 %v1111
        %v1876 = vunpack.c.l.b16 %v1112
        %v1877 = vunpack.c.l.b16 %v1113
        %v1878 = vunpack.c.l.b16 %v1114
        %v1879 = vunpack.c.l.b16 %v1115
        %v1880 = vunpack.c.l.b16 %v1116
        %v1881 = vunpack.c.l.b16 %v1117
        %v1882 = vpack.c.b16 %v1867, %v1866
        %v1883 = vpack.c.b16 %v1869, %v1868
        %v1884 = vpack.c.b16 %v1871, %v1870
        %v1885 = vpack.c.b16 %v1873, %v1872
        %v1886 = vpack.c.b16 %v1875, %v1874
        %v1887 = vpack.c.b16 %v1877, %v1876
        %v1888 = vpack.c.b16 %v1879, %v1878
        %v1889 = vpack.c.b16 %v1881, %v1880
        %1898 = vmatpush.bf16.msra.mxu0 %v1889
        %1899 = vmatpush.bf16.msra.mxu0 %v1888
        %1900 = vmatpush.bf16.msra.mxu0 %v1887
        %1901 = vmatpush.bf16.msra.mxu0 %v1886
        %1902 = vmatpush.bf16.msra.mxu0 %v1885
        %1903 = vmatpush.bf16.msra.mxu0 %v1884
        %1904 = vmatpush.bf16.msra.mxu0 %v1883
        %1905 = vmatpush.bf16.msra.mxu0 %v1882
        %1906 = vmatmul.bf16.gmra.mxu0 %v1846
        %v1907 = vpop.f32.mrf.mxu0
        %v1908 = vadd.f32 %v1848, %v1907
        %v1909 = vpop.f32.mrf.mxu0
        %1910 = vdwg.mxu0
        %v1911 = vadd.f32 %v1908, %v1812
        %v1912 = vsel %vm1140, %v1911, 0.0
        %1913 = vadd.xlane.f32.xlu0 %v1912
        %v1914 = vpop.xlane.xlu0 %1913
        %v1915 = vmul.f32 %v1914, %v1510
        %v1916 = vsub.f32 %v1911, %v1915
        %v1917 = vmul.f32 %v1916, %v1916
        %v1918 = vsel %vm1140, %v1917, 0.0
        %1919 = vadd.xlane.f32.xlu0 %v1918
        %v1920 = vpop.xlane.xlu0 %1919
        %v1921 = vmul.f32 %v1920, %v1510
        %v1922 = vadd.f32 %v1921, 1e-05
        %v1923 = vrsqrt.pop %v1922
        %v1924 = vmul.f32 %v1923, %v1922
        %v1925 = vmul.f32 %v1924, %v1923
        %v1926 = vmul.f32 0.5, %v1925
        %v1927 = vsub.f32 1.5, %v1926
        %v1928 = vmul.f32 %v1923, %v1927
        %vm1929 = vweird.f32 %v1922
        %vm1930 = vweird.f32 %v1923
        %vm1931 = vmor %vm1929, %vm1930
        %v1932 = vsel %vm1931, %v1923, %v1928
        %v1933 = vmul.f32 %v1916, %v1932
        %v1935 = vperm.slane %v1119, 0
        %v1937 = vmul.f32 %v1933, %v1935
        %v1939 = vperm.slane %v1120, 0
        %v1941 = vadd.f32 %v1937, %v1939
        %1942 = vst.msk [vmem:[%s1049] sm:$0xff] %vm1140, %v1941
        %s1943 = sand.u32 %s636, 1
        %s1944 = scalar_lea.sflag [#allocation4], %s1943
        %s1945 = sand.u32 %s636, 1
        %s1946 = smul.addr %s1945, 8
        %s1947 = scalar_lea.vmem [#allocation20], %s1946
        // Predicated region
        $region169: #{tpu_custom_call.1} parent=123 // pred_check
          %p1948 = pneg %p646
        $region170: #{tpu_custom_call.1} parent=123 // pred_check_branch
          %1950 = sbr.rel (%p1948) target = $region172
        $region171: #{tpu_custom_call.1} parent=123 // pred_region
          %1952 = vsyncadd %s1944, 0
          %s1953 = smul.addr %s52, 8
          %s1954 = scalar_lea.hbm %s26, %s1953
          %s1956 = sshll.u32 %s1947, 4
          %s1957 = int_to_ptr.vmem [resolvable:$true] %s1956
          %s1958 = sshll.u32 %s1954, 4
          %s1959 = int_to_ptr.hbm [resolvable:$true] %s1958
          %1961 = dma.vmem_to_hbm [thread:$0]  %s1957, 128, %s1959, %s1944
        $region172: #{tpu_custom_call.1} parent=123 // pred_fallthru
          _
      $region124: #{tpu_custom_call.1} parent=5 // pred_fallthru
        _
      %p1962 = scmp.le.s32.totalorder 2, %s47
      // Predicated region
      $region173: #{tpu_custom_call.1} parent=5 // pred_check
        %p1963 = pneg %p1962
      $region174: #{tpu_custom_call.1} parent=5 // pred_check_branch
        %1965 = sbr.rel (%p1963) target = $region176
      $region175: #{tpu_custom_call.1} parent=5 // pred_region
        %s1966 = ssub.s32 %s47, 2
        // Predicated region
        $region177: #{tpu_custom_call.1} parent=175 // pred_check
          %p1967 = pneg %p652
        $region178: #{tpu_custom_call.1} parent=175 // pred_check_branch
          %1969 = sbr.rel (%p1967) target = $region180
        $region179: #{tpu_custom_call.1} parent=175 // pred_region
          %s1970 = sand.u32 %s637, 1
          %s1971 = scalar_lea.sflag [#allocation4], %s1970
          %s1972 = sand.u32 %s637, 1
          %s1973 = smul.addr %s1972, 8
          %s1974 = scalar_lea.vmem [#allocation20], %s1973
          %1976 = dma.done %s1971, 128
        $region180: #{tpu_custom_call.1} parent=175 // pred_fallthru
          _
      $region176: #{tpu_custom_call.1} parent=5 // pred_fallthru
        _
    $region6: #{tpu_custom_call.1} parent=1 // loop_footer
      %s51 = sadd.s32 1, %s47
    $region7: #{tpu_custom_call.1} parent=1 // loop_footer_branch
      %46 = sbr.rel target = $region3
    $region8: #{tpu_custom_call.1} parent=1 // loop_exit
      _
    %1977 = vsyncpa [#allocation3], 1
    %s1978 = scalar_lea.sflag [#allocation3], 1
    %1979 = vsyncpa %s1978, 1
    %1980 = vsyncpa [#allocation6], 1
    %s1981 = scalar_lea.sflag [#allocation6], 1
    %1982 = vsyncpa %s1981, 1
    %1983 = vsyncpa [#allocation9], 1
    %s1984 = scalar_lea.sflag [#allocation9], 1
    %1985 = vsyncpa %s1984, 1
    %1986 = vsyncpa [#allocation12], 1
    %1987 = vsyncpa [#allocation15], 1
    %1988 = vsyncpa [#allocation18], 1
    %1989 = vsyncpa [#allocation4], 1
    %s1990 = scalar_lea.sflag [#allocation4], 1
    %1991 = vsyncpa %s1990, 1

// kernel: tpu_custom_call.1
$region0: #{tpu_custom_call.1}
  #allocation0 [shape = 'u32[]', space=smem, size = 0x4, offset = 0x4, fixed_abs, tag = 'smem constant byte address 0x4 - core index']
  #allocation1 [shape = 'u32[72,128]{1,0:T(1,128)}', space=vmem, size = 0x9000, scoped, tag = 'internal scratch']
  %s0 = inlined_call_operand.hbm [shape: bf16[2,8,32], index: 0, kind: input, shape index: {}]
  %s1 = inlined_call_operand.hbm [shape: bf16[2,8,32], index: 1, kind: input, shape index: {}]
  %s2 = inlined_call_operand.vmem [shape: f32[2,8,32], index: 2, kind: input, shape index: {}]
  %s3 = inlined_call_operand.hbm [shape: bf16[2,2,32], index: 3, kind: input, shape index: {}]
  %s4 = inlined_call_operand.hbm [shape: f32[2,1,8], index: 4, kind: input, shape index: {}]
  %s5 = inlined_call_operand.vmem [shape: f32[2,8,1], index: 5, kind: input, shape index: {}]
  %s6 = inlined_call_operand.vmem [shape: bf16[32,32], index: 6, kind: input, shape index: {}]
  %s7 = inlined_call_operand.vmem [shape: bf16[32,32], index: 7, kind: input, shape index: {}]
  %s8 = inlined_call_operand.vmem [shape: bf16[32,32], index: 8, kind: input, shape index: {}]
  %s9 = inlined_call_operand.vmem [shape: bf16[32,32], index: 9, kind: input, shape index: {}]
  %s10 = inlined_call_operand.hbm [shape: f32[1,32], index: 10, kind: input, shape index: {}]
  %s11 = inlined_call_operand.hbm [shape: f32[1,32], index: 11, kind: input, shape index: {}]
  %s12 = inlined_call_operand.hbm [shape: f32[1,32], index: 12, kind: input, shape index: {}]
  %s13 = inlined_call_operand.vmem [shape: bf16[32,32], index: 13, kind: input, shape index: {}]
  %s14 = inlined_call_operand.hbm [shape: bf16[32,32], index: 14, kind: input, shape index: {}]
  %s15 = inlined_call_operand.hbm [shape: bf16[32,32], index: 15, kind: input, shape index: {}]
  %s16 = inlined_call_operand.hbm [shape: bf16[32,32], index: 16, kind: input, shape index: {}]
  %s17 = inlined_call_operand.vmem [shape: f32[1,32], index: 17, kind: input, shape index: {}]
  %s18 = inlined_call_operand.vmem [shape: f32[1,32], index: 18, kind: input, shape index: {}]
  %s19 = inlined_call_operand.vmem [shape: f32[1,32], index: 19, kind: input, shape index: {}]
  %s20 = inlined_call_operand.hbm [shape: bf16[32,128], index: 20, kind: input, shape index: {}]
  %s21 = inlined_call_operand.vmem [shape: f32[1,128], index: 21, kind: input, shape index: {}]
  %s22 = inlined_call_operand.vmem [shape: bf16[128,32], index: 22, kind: input, shape index: {}]
  %s23 = inlined_call_operand.vmem [shape: f32[1,32], index: 23, kind: input, shape index: {}]
  %s24 = inlined_call_operand.vmem [shape: f32[1,32], index: 24, kind: input, shape index: {}]
  %s25 = inlined_call_operand.vmem [shape: f32[1,32], index: 25, kind: input, shape index: {}]
  %s26 = inlined_call_operand.hbm [shape: f32[2,8,32], index: 26, kind: output, shape index: {}]
  %s27 = sld [smem:[#allocation0]]
  $region181: #{tpu_custom_call.1} parent=0
    _
  %s29 = ssub.s32 1, %s27
  %s30 = scalar_select 0, %s29, %s27
  $region1: #{tpu_custom_call.1} parent=0
    #allocation2 [shape = 'u8[4096]{0}', space=vmem, size = 0x1000, scoped, tag = 'input window, operand 0']
    #allocation3 [shape = 's32[2]{0}', space=sflag, size = 0x8, scoped, tag = 'scoped memory for tpu_custom_call.1']
    #allocation4 [shape = 's32[2]{0}', space=sflag, size = 0x8, scoped, tag = 'scoped memory for tpu_custom_call.1']
    #allocation5 [shape = 'u8[4096]{0}', space=vmem, size = 0x1000, scoped, tag = 'input window, operand 1']
    #allocation6 [shape = 's32[2]{0}', space=sflag, size = 0x8, scoped, tag = 'scoped memory for tpu_custom_call.1']
    #allocation7 [shape = 'u8[1024]{0}', space=vmem, size = 0x400, scoped, tag = 'input window, operand 3']
    #allocation8 [shape = 'u8[1024]{0}', space=vmem, size = 0x400, scoped, tag = 'input window, operand 4']
    #allocation9 [shape = 's32[2]{0}', space=sflag, size = 0x8, scoped, tag = 'scoped memory for tpu_custom_call.1']
    #allocation10 [shape = 'u8[512]{0}', space=vmem, size = 0x400, scoped, tag = 'input window, operand 10, single buffered']
    #allocation11 [shape = 'u8[512]{0}', space=vmem, size = 0x400, scoped, tag = 'input window, operand 11, single buffered']
    #allocation12 [shape = 's32[1]{0}', space=sflag, size = 0x4, scoped, tag = 'scoped memory for tpu_custom_call.1']
    #allocation13 [shape = 'u8[512]{0}', space=vmem, size = 0x400, scoped, tag = 'input window, operand 12, single buffered']
    #allocation14 [shape = 'u8[8192]{0}', space=vmem, size = 0x2000, scoped, tag = 'input window, operand 14, single buffered']
    #allocation15 [shape = 's32[1]{0}', space=sflag, size = 0x4, scoped, tag = 'scoped memory for tpu_custom_call.1']
    #allocation16 [shape = 'u8[8192]{0}', space=vmem, size = 0x2000, scoped, tag = 'input window, operand 15, single buffered']
    #allocation17 [shape = 'u8[8192]{0}', space=vmem, size = 0x2000, scoped, tag = 'input window, operand 16, single buffered']
    #allocation18 [shape = 's32[1]{0}', space=sflag, size = 0x4, scoped, tag = 'scoped memory for tpu_custom_call.1']
    #allocation19 [shape = 'u8[8192]{0}', space=vmem, size = 0x2000, scoped, tag = 'input window, operand 20, single buffered']
    #allocation20 [shape = 'u8[8192]{0}', space=vmem, size = 0x2000, scoped, tag = 'output window, operand 0']
    %31 = vsyncpa [#allocation3], 0
    %s32 = scalar_lea.sflag [#allocation3], 1
    %33 = vsyncpa %s32, 0
    %34 = vsyncpa [#allocation6], 0
    %s35 = scalar_lea.sflag [#allocation6], 1
    %36 = vsyncpa %s35, 0
    %37 = vsyncpa [#allocation9], 0
    %s38 = scalar_lea.sflag [#allocation9], 1
    %39 = vsyncpa %s38, 0
    %40 = vsyncpa [#allocation12], 0
    %41 = vsyncpa [#allocation15], 0
    %42 = vsyncpa [#allocation18], 0
    %43 = vsyncpa [#allocation4], 0
    %s44 = scalar_lea.sflag [#allocation4], 1
    %45 = vsyncpa %s44, 0
    loop: start=0, step=1, limit=4
    $region2: #{tpu_custom_call.1} parent=1 // loop_pre_header
      _
    $region3: #{tpu_custom_call.1} parent=1 // loop_header
      %s47 = sphi 0, %s51
      %p48 = scmp.ge.s32.totalorder %s47, 4
      %s57 = sphi 0, %s59
      %s60 = sphi 0, %s57
      %s61 = sphi 0, %s60
      %s77 = sphi 0, %s61
      %s83 = sphi 0, %s85
      %s86 = sphi 0, %s83
      %s87 = sphi 0, %s86
      %s103 = sphi 0, %s87
      %s109 = sphi 0, %s111
      %s112 = sphi 0, %s109
      %s113 = sphi 0, %s112
      %s129 = sphi 0, %s113
      %s135 = sphi 0, %s137
      %s138 = sphi 0, %s135
      %s139 = sphi 0, %s138
      %s155 = sphi 0, %s139
      %s161 = sphi 0, %s163
      %s164 = sphi 0, %s161
      %s165 = sphi 0, %s164
      %s181 = sphi 0, %s165
      %s187 = sphi 0, %s189
      %s190 = sphi 0, %s187
      %s191 = sphi 0, %s190
      %s207 = sphi 0, %s191
      %s211 = sphi 0, %s211
      %s213 = sphi 0, %s211
      %s214 = sphi 0, %s213
      %s228 = sphi 0, %s214
      %s232 = sphi 0, %s232
      %s234 = sphi 0, %s232
      %s235 = sphi 0, %s234
      %s249 = sphi 0, %s235
      %s253 = sphi 0, %s253
      %s255 = sphi 0, %s253
      %s256 = sphi 0, %s255
      %s270 = sphi 0, %s256
      %s274 = sphi 0, %s274
      %s276 = sphi 0, %s274
      %s277 = sphi 0, %s276
      %s291 = sphi 0, %s277
      %s295 = sphi 0, %s295
      %s297 = sphi 0, %s295
      %s298 = sphi 0, %s297
      %s312 = sphi 0, %s298
      %s316 = sphi 0, %s316
      %s318 = sphi 0, %s316
      %s319 = sphi 0, %s318
      %s333 = sphi 0, %s319
      %s337 = sphi 0, %s337
      %s339 = sphi 0, %s337
      %s340 = sphi 0, %s339
      %s354 = sphi 0, %s340
      %s358 = sphi 0, %s358
      %s360 = sphi 0, %s358
      %s361 = sphi 0, %s360
      %s375 = sphi 0, %s361
      %s379 = sphi 0, %s379
      %s381 = sphi 0, %s379
      %s382 = sphi 0, %s381
      %s396 = sphi 0, %s382
      %s400 = sphi 0, %s400
      %s402 = sphi 0, %s400
      %s403 = sphi 0, %s402
      %s417 = sphi 0, %s403
      %s421 = sphi 0, %s421
      %s423 = sphi 0, %s421
      %s424 = sphi 0, %s423
      %s438 = sphi 0, %s424
      %s442 = sphi 0, %s442
      %s444 = sphi 0, %s442
      %s445 = sphi 0, %s444
      %s459 = sphi 0, %s445
      %s463 = sphi 0, %s463
      %s465 = sphi 0, %s463
      %s466 = sphi 0, %s465
      %s480 = sphi 0, %s466
      %s484 = sphi 0, %s484
      %s486 = sphi 0, %s484
      %s487 = sphi 0, %s486
      %s501 = sphi 0, %s487
      %s505 = sphi 0, %s505
      %s507 = sphi 0, %s505
      %s508 = sphi 0, %s507
      %s522 = sphi 0, %s508
      %s526 = sphi 0, %s526
      %s528 = sphi 0, %s526
      %s529 = sphi 0, %s528
      %s543 = sphi 0, %s529
      %s547 = sphi 0, %s547
      %s549 = sphi 0, %s547
      %s550 = sphi 0, %s549
      %s564 = sphi 0, %s550
      %s568 = sphi 0, %s568
      %s570 = sphi 0, %s568
      %s571 = sphi 0, %s570
      %s585 = sphi 0, %s571
      %s589 = sphi 0, %s589
      %s591 = sphi 0, %s589
      %s592 = sphi 0, %s591
      %s606 = sphi 0, %s592
      %s610 = sphi 0, %s610
      %s612 = sphi 0, %s610
      %s613 = sphi 0, %s612
      %s627 = sphi 0, %s613
      %s633 = sphi 0, %s635
      %s636 = sphi 0, %s633
      %s637 = sphi 0, %s636
      %s653 = sphi 0, %s637
    $region4: #{tpu_custom_call.1} parent=1 // loop_header_branch
      %50 = sbr.rel (%p48) target = $region8
    $region5: #{tpu_custom_call.1} parent=1 // loop_body
      %s52 = ssub.s32 %s47, 1
      %s53 = ssub.s32 %s47, 2
      %s54 = sadd.s32 %s47, 1
      %s55 = ssub.s32 %s47, %s54
      %p56 = scmp.eq.s32.totalorder %s55, 0
      %s58 = sadd.s32 %s57, 1
      %s59 = scalar_select %p56, %s57, %s58
      %p62 = pneg %p56
      %p63 = scmp.eq.s32.totalorder %s47, 1
      %p64 = por %p62, %p63
      %p65 = scmp.ne.s32.totalorder %s57, %s60
      %p66 = scmp.eq.s32.totalorder %s47, 0
      %p67 = por %p65, %p66
      %p68 = scmp.ne.s32.totalorder %s57, %s60
      %p69 = scmp.eq.s32.totalorder %s52, 1
      %p70 = por %p68, %p69
      %p71 = scmp.ne.s32.totalorder %s60, %s61
      %p72 = scmp.eq.s32.totalorder %s52, 0
      %p73 = por %p71, %p72
      %p74 = scmp.ne.s32.totalorder %s60, %s61
      %p75 = scmp.eq.s32.totalorder %s53, 1
      %p76 = por %p74, %p75
      %p78 = scmp.ne.s32.totalorder %s61, %s77
      %p79 = scmp.eq.s32.totalorder %s53, 0
      %p80 = por %p78, %p79
      %s81 = ssub.s32 %s47, %s54
      %p82 = scmp.eq.s32.totalorder %s81, 0
      %s84 = sadd.s32 %s83, 1
      %s85 = scalar_select %p82, %s83, %s84
      %p88 = pneg %p82
      %p89 = scmp.eq.s32.totalorder %s47, 1
      %p90 = por %p88, %p89
      %p91 = scmp.ne.s32.totalorder %s83, %s86
      %p92 = scmp.eq.s32.totalorder %s47, 0
      %p93 = por %p91, %p92
      %p94 = scmp.ne.s32.totalorder %s83, %s86
      %p95 = scmp.eq.s32.totalorder %s52, 1
      %p96 = por %p94, %p95
      %p97 = scmp.ne.s32.totalorder %s86, %s87
      %p98 = scmp.eq.s32.totalorder %s52, 0
      %p99 = por %p97, %p98
      %p100 = scmp.ne.s32.totalorder %s86, %s87
      %p101 = scmp.eq.s32.totalorder %s53, 1
      %p102 = por %p100, %p101
      %p104 = scmp.ne.s32.totalorder %s87, %s103
      %p105 = scmp.eq.s32.totalorder %s53, 0
      %p106 = por %p104, %p105
      %s107 = ssub.s32 %s47, %s54
      %p108 = scmp.eq.s32.totalorder %s107, 0
      %s110 = sadd.s32 %s109, 1
      %s111 = scalar_select %p108, %s109, %s110
      %p114 = pneg %p108
      %p115 = scmp.eq.s32.totalorder %s47, 1
      %p116 = por %p114, %p115
      %p117 = scmp.ne.s32.totalorder %s109, %s112
      %p118 = scmp.eq.s32.totalorder %s47, 0
      %p119 = por %p117, %p118
      %p120 = scmp.ne.s32.totalorder %s109, %s112
      %p121 = scmp.eq.s32.totalorder %s52, 1
      %p122 = por %p120, %p121
      %p123 = scmp.ne.s32.totalorder %s112, %s113
      %p124 = scmp.eq.s32.totalorder %s52, 0
      %p125 = por %p123, %p124
      %p126 = scmp.ne.s32.totalorder %s112, %s113
      %p127 = scmp.eq.s32.totalorder %s53, 1
      %p128 = por %p126, %p127
      %p130 = scmp.ne.s32.totalorder %s113, %s129
      %p131 = scmp.eq.s32.totalorder %s53, 0
      %p132 = por %p130, %p131
      %s133 = ssub.s32 %s47, %s54
      %p134 = scmp.eq.s32.totalorder %s133, 0
      %s136 = sadd.s32 %s135, 1
      %s137 = scalar_select %p134, %s135, %s136
      %p140 = pneg %p134
      %p141 = scmp.eq.s32.totalorder %s47, 1
      %p142 = por %p140, %p141
      %p143 = scmp.ne.s32.totalorder %s135, %s138
      %p144 = scmp.eq.s32.totalorder %s47, 0
      %p145 = por %p143, %p144
      %p146 = scmp.ne.s32.totalorder %s135, %s138
      %p147 = scmp.eq.s32.totalorder %s52, 1
      %p148 = por %p146, %p147
      %p149 = scmp.ne.s32.totalorder %s138, %s139
      %p150 = scmp.eq.s32.totalorder %s52, 0
      %p151 = por %p149, %p150
      %p152 = scmp.ne.s32.totalorder %s138, %s139
      %p153 = scmp.eq.s32.totalorder %s53, 1
      %p154 = por %p152, %p153
      %p156 = scmp.ne.s32.totalorder %s139, %s155
      %p157 = scmp.eq.s32.totalorder %s53, 0
      %p158 = por %p156, %p157
      %s159 = ssub.s32 %s47, %s54
      %p160 = scmp.eq.s32.totalorder %s159, 0
      %s162 = sadd.s32 %s161, 1
      %s163 = scalar_select %p160, %s161, %s162
      %p166 = pneg %p160
      %p167 = scmp.eq.s32.totalorder %s47, 1
      %p168 = por %p166, %p167
      %p169 = scmp.ne.s32.totalorder %s161, %s164
      %p170 = scmp.eq.s32.totalorder %s47, 0
      %p171 = por %p169, %p170
      %p172 = scmp.ne.s32.totalorder %s161, %s164
      %p173 = scmp.eq.s32.totalorder %s52, 1
      %p174 = por %p172, %p173
      %p175 = scmp.ne.s32.totalorder %s164, %s165
      %p176 = scmp.eq.s32.totalorder %s52, 0
      %p177 = por %p175, %p176
      %p178 = scmp.ne.s32.totalorder %s164, %s165
      %p179 = scmp.eq.s32.totalorder %s53, 1
      %p180 = por %p178, %p179
      %p182 = scmp.ne.s32.totalorder %s165, %s181
      %p183 = scmp.eq.s32.totalorder %s53, 0
      %p184 = por %p182, %p183
      %s185 = ssub.s32 %s47, %s54
      %p186 = scmp.eq.s32.totalorder %s185, 0
      %s188 = sadd.s32 %s187, 1
      %s189 = scalar_select %p186, %s187, %s188
      %p192 = pneg %p186
      %p193 = scmp.eq.s32.totalorder %s47, 1
      %p194 = por %p192, %p193
      %p195 = scmp.ne.s32.totalorder %s187, %s190
      %p196 = scmp.eq.s32.totalorder %s47, 0
      %p197 = por %p195, %p196
      %p198 = scmp.ne.s32.totalorder %s187, %s190
      %p199 = scmp.eq.s32.totalorder %s52, 1
      %p200 = por %p198, %p199
      %p201 = scmp.ne.s32.totalorder %s190, %s191
      %p202 = scmp.eq.s32.totalorder %s52, 0
      %p203 = por %p201, %p202
      %p204 = scmp.ne.s32.totalorder %s190, %s191
      %p205 = scmp.eq.s32.totalorder %s53, 1
      %p206 = por %p204, %p205
      %p208 = scmp.ne.s32.totalorder %s191, %s207
      %p209 = scmp.eq.s32.totalorder %s53, 0
      %p210 = por %p208, %p209
      %s212 = sadd.s32 %s211, 1
      %p215 = scmp.eq.s32.totalorder %s47, 1
      %p216 = scmp.ne.s32.totalorder %s211, %s213
      %p217 = scmp.eq.s32.totalorder %s47, 0
      %p218 = por %p216, %p217
      %p219 = scmp.ne.s32.totalorder %s211, %s213
      %p220 = scmp.eq.s32.totalorder %s52, 1
      %p221 = por %p219, %p220
      %p222 = scmp.ne.s32.totalorder %s213, %s214
      %p223 = scmp.eq.s32.totalorder %s52, 0
      %p224 = por %p222, %p223
      %p225 = scmp.ne.s32.totalorder %s213, %s214
      %p226 = scmp.eq.s32.totalorder %s53, 1
      %p227 = por %p225, %p226
      %p229 = scmp.ne.s32.totalorder %s214, %s228
      %p230 = scmp.eq.s32.totalorder %s53, 0
      %p231 = por %p229, %p230
      %s233 = sadd.s32 %s232, 1
      %p236 = scmp.eq.s32.totalorder %s47, 1
      %p237 = scmp.ne.s32.totalorder %s232, %s234
      %p238 = scmp.eq.s32.totalorder %s47, 0
      %p239 = por %p237, %p238
      %p240 = scmp.ne.s32.totalorder %s232, %s234
      %p241 = scmp.eq.s32.totalorder %s52, 1
      %p242 = por %p240, %p241
      %p243 = scmp.ne.s32.totalorder %s234, %s235
      %p244 = scmp.eq.s32.totalorder %s52, 0
      %p245 = por %p243, %p244
      %p246 = scmp.ne.s32.totalorder %s234, %s235
      %p247 = scmp.eq.s32.totalorder %s53, 1
      %p248 = por %p246, %p247
      %p250 = scmp.ne.s32.totalorder %s235, %s249
      %p251 = scmp.eq.s32.totalorder %s53, 0
      %p252 = por %p250, %p251
      %s254 = sadd.s32 %s253, 1
      %p257 = scmp.eq.s32.totalorder %s47, 1
      %p258 = scmp.ne.s32.totalorder %s253, %s255
      %p259 = scmp.eq.s32.totalorder %s47, 0
      %p260 = por %p258, %p259
      %p261 = scmp.ne.s32.totalorder %s253, %s255
      %p262 = scmp.eq.s32.totalorder %s52, 1
      %p263 = por %p261, %p262
      %p264 = scmp.ne.s32.totalorder %s255, %s256
      %p265 = scmp.eq.s32.totalorder %s52, 0
      %p266 = por %p264, %p265
      %p267 = scmp.ne.s32.totalorder %s255, %s256
      %p268 = scmp.eq.s32.totalorder %s53, 1
      %p269 = por %p267, %p268
      %p271 = scmp.ne.s32.totalorder %s256, %s270
      %p272 = scmp.eq.s32.totalorder %s53, 0
      %p273 = por %p271, %p272
      %s275 = sadd.s32 %s274, 1
      %p278 = scmp.eq.s32.totalorder %s47, 1
      %p279 = scmp.ne.s32.totalorder %s274, %s276
      %p280 = scmp.eq.s32.totalorder %s47, 0
      %p281 = por %p279, %p280
      %p282 = scmp.ne.s32.totalorder %s274, %s276
      %p283 = scmp.eq.s32.totalorder %s52, 1
      %p284 = por %p282, %p283
      %p285 = scmp.ne.s32.totalorder %s276, %s277
      %p286 = scmp.eq.s32.totalorder %s52, 0
      %p287 = por %p285, %p286
      %p288 = scmp.ne.s32.totalorder %s276, %s277
      %p289 = scmp.eq.s32.totalorder %s53, 1
      %p290 = por %p288, %p289
      %p292 = scmp.ne.s32.totalorder %s277, %s291
      %p293 = scmp.eq.s32.totalorder %s53, 0
      %p294 = por %p292, %p293
      %s296 = sadd.s32 %s295, 1
      %p299 = scmp.eq.s32.totalorder %s47, 1
      %p300 = scmp.ne.s32.totalorder %s295, %s297
      %p301 = scmp.eq.s32.totalorder %s47, 0
      %p302 = por %p300, %p301
      %p303 = scmp.ne.s32.totalorder %s295, %s297
      %p304 = scmp.eq.s32.totalorder %s52, 1
      %p305 = por %p303, %p304
      %p306 = scmp.ne.s32.totalorder %s297, %s298
      %p307 = scmp.eq.s32.totalorder %s52, 0
      %p308 = por %p306, %p307
      %p309 = scmp.ne.s32.totalorder %s297, %s298
      %p310 = scmp.eq.s32.totalorder %s53, 1
      %p311 = por %p309, %p310
      %p313 = scmp.ne.s32.totalorder %s298, %s312
      %p314 = scmp.eq.s32.totalorder %s53, 0
      %p315 = por %p313, %p314
      %s317 = sadd.s32 %s316, 1
      %p320 = scmp.eq.s32.totalorder %s47, 1
      %p321 = scmp.ne.s32.totalorder %s316, %s318
      %p322 = scmp.eq.s32.totalorder %s47, 0
      %p323 = por %p321, %p322
      %p324 = scmp.ne.s32.totalorder %s316, %s318
      %p325 = scmp.eq.s32.totalorder %s52, 1
      %p326 = por %p324, %p325
      %p327 = scmp.ne.s32.totalorder %s318, %s319
      %p328 = scmp.eq.s32.totalorder %s52, 0
      %p329 = por %p327, %p328
      %p330 = scmp.ne.s32.totalorder %s318, %s319
      %p331 = scmp.eq.s32.totalorder %s53, 1
      %p332 = por %p330, %p331
      %p334 = scmp.ne.s32.totalorder %s319, %s333
      %p335 = scmp.eq.s32.totalorder %s53, 0
      %p336 = por %p334, %p335
      %s338 = sadd.s32 %s337, 1
      %p341 = scmp.eq.s32.totalorder %s47, 1
      %p342 = scmp.ne.s32.totalorder %s337, %s339
      %p343 = scmp.eq.s32.totalorder %s47, 0
      %p344 = por %p342, %p343
      %p345 = scmp.ne.s32.totalorder %s337, %s339
      %p346 = scmp.eq.s32.totalorder %s52, 1
      %p347 = por %p345, %p346
      %p348 = scmp.ne.s32.totalorder %s339, %s340
      %p349 = scmp.eq.s32.totalorder %s52, 0
      %p350 = por %p348, %p349
      %p351 = scmp.ne.s32.totalorder %s339, %s340
      %p352 = scmp.eq.s32.totalorder %s53, 1
      %p353 = por %p351, %p352
      %p355 = scmp.ne.s32.totalorder %s340, %s354
      %p356 = scmp.eq.s32.totalorder %s53, 0
      %p357 = por %p355, %p356
      %s359 = sadd.s32 %s358, 1
      %p362 = scmp.eq.s32.totalorder %s47, 1
      %p363 = scmp.ne.s32.totalorder %s358, %s360
      %p364 = scmp.eq.s32.totalorder %s47, 0
      %p365 = por %p363, %p364
      %p366 = scmp.ne.s32.totalorder %s358, %s360
      %p367 = scmp.eq.s32.totalorder %s52, 1
      %p368 = por %p366, %p367
      %p369 = scmp.ne.s32.totalorder %s360, %s361
      %p370 = scmp.eq.s32.totalorder %s52, 0
      %p371 = por %p369, %p370
      %p372 = scmp.ne.s32.totalorder %s360, %s361
      %p373 = scmp.eq.s32.totalorder %s53, 1
      %p374 = por %p372, %p373
      %p376 = scmp.ne.s32.totalorder %s361, %s375
      %p377 = scmp.eq.s32.totalorder %s53, 0
      %p378 = por %p376, %p377
      %s380 = sadd.s32 %s379, 1
      %p383 = scmp.eq.s32.totalorder %s47, 1
      %p384 = scmp.ne.s32.totalorder %s379, %s381
      %p385 = scmp.eq.s32.totalorder %s47, 0
      %p386 = por %p384, %p385
      %p387 = scmp.ne.s32.totalorder %s379, %s381
      %p388 = scmp.eq.s32.totalorder %s52, 1
      %p389 = por %p387, %p388
      %p390 = scmp.ne.s32.totalorder %s381, %s382
      %p391 = scmp.eq.s32.totalorder %s52, 0
      %p392 = por %p390, %p391
      %p393 = scmp.ne.s32.totalorder %s381, %s382
      %p394 = scmp.eq.s32.totalorder %s53, 1
      %p395 = por %p393, %p394
      %p397 = scmp.ne.s32.totalorder %s382, %s396
      %p398 = scmp.eq.s32.totalorder %s53, 0
      %p399 = por %p397, %p398
      %s401 = sadd.s32 %s400, 1
      %p404 = scmp.eq.s32.totalorder %s47, 1
      %p405 = scmp.ne.s32.totalorder %s400, %s402
      %p406 = scmp.eq.s32.totalorder %s47, 0
      %p407 = por %p405, %p406
      %p408 = scmp.ne.s32.totalorder %s400, %s402
      %p409 = scmp.eq.s32.totalorder %s52, 1
      %p410 = por %p408, %p409
      %p411 = scmp.ne.s32.totalorder %s402, %s403
      %p412 = scmp.eq.s32.totalorder %s52, 0
      %p413 = por %p411, %p412
      %p414 = scmp.ne.s32.totalorder %s402, %s403
      %p415 = scmp.eq.s32.totalorder %s53, 1
      %p416 = por %p414, %p415
      %p418 = scmp.ne.s32.totalorder %s403, %s417
      %p419 = scmp.eq.s32.totalorder %s53, 0
      %p420 = por %p418, %p419
      %s422 = sadd.s32 %s421, 1
      %p425 = scmp.eq.s32.totalorder %s47, 1
      %p426 = scmp.ne.s32.totalorder %s421, %s423
      %p427 = scmp.eq.s32.totalorder %s47, 0
      %p428 = por %p426, %p427
      %p429 = scmp.ne.s32.totalorder %s421, %s423
      %p430 = scmp.eq.s32.totalorder %s52, 1
      %p431 = por %p429, %p430
      %p432 = scmp.ne.s32.totalorder %s423, %s424
      %p433 = scmp.eq.s32.totalorder %s52, 0
      %p434 = por %p432, %p433
      %p435 = scmp.ne.s32.totalorder %s423, %s424
      %p436 = scmp.eq.s32.totalorder %s53, 1
      %p437 = por %p435, %p436
      %p439 = scmp.ne.s32.totalorder %s424, %s438
      %p440 = scmp.eq.s32.totalorder %s53, 0
      %p441 = por %p439, %p440
      %s443 = sadd.s32 %s442, 1
      %p446 = scmp.eq.s32.totalorder %s47, 1
      %p447 = scmp.ne.s32.totalorder %s442, %s444
      %p448 = scmp.eq.s32.totalorder %s47, 0
      %p449 = por %p447, %p448
      %p450 = scmp.ne.s32.totalorder %s442, %s444
      %p451 = scmp.eq.s32.totalorder %s52, 1
      %p452 = por %p450, %p451
      %p453 = scmp.ne.s32.totalorder %s444, %s445
      %p454 = scmp.eq.s32.totalorder %s52, 0
      %p455 = por %p453, %p454
      %p456 = scmp.ne.s32.totalorder %s444, %s445
      %p457 = scmp.eq.s32.totalorder %s53, 1
      %p458 = por %p456, %p457
      %p460 = scmp.ne.s32.totalorder %s445, %s459
      %p461 = scmp.eq.s32.totalorder %s53, 0
      %p462 = por %p460, %p461
      %s464 = sadd.s32 %s463, 1
      %p467 = scmp.eq.s32.totalorder %s47, 1
      %p468 = scmp.ne.s32.totalorder %s463, %s465
      %p469 = scmp.eq.s32.totalorder %s47, 0
      %p470 = por %p468, %p469
      %p471 = scmp.ne.s32.totalorder %s463, %s465
      %p472 = scmp.eq.s32.totalorder %s52, 1
      %p473 = por %p471, %p472
      %p474 = scmp.ne.s32.totalorder %s465, %s466
      %p475 = scmp.eq.s32.totalorder %s52, 0
      %p476 = por %p474, %p475
      %p477 = scmp.ne.s32.totalorder %s465, %s466
      %p478 = scmp.eq.s32.totalorder %s53, 1
      %p479 = por %p477, %p478
      %p481 = scmp.ne.s32.totalorder %s466, %s480
      %p482 = scmp.eq.s32.totalorder %s53, 0
      %p483 = por %p481, %p482
      %s485 = sadd.s32 %s484, 1
      %p488 = scmp.eq.s32.totalorder %s47, 1
      %p489 = scmp.ne.s32.totalorder %s484, %s486
      %p490 = scmp.eq.s32.totalorder %s47, 0
      %p491 = por %p489, %p490
      %p492 = scmp.ne.s32.totalorder %s484, %s486
      %p493 = scmp.eq.s32.totalorder %s52, 1
      %p494 = por %p492, %p493
      %p495 = scmp.ne.s32.totalorder %s486, %s487
      %p496 = scmp.eq.s32.totalorder %s52, 0
      %p497 = por %p495, %p496
      %p498 = scmp.ne.s32.totalorder %s486, %s487
      %p499 = scmp.eq.s32.totalorder %s53, 1
      %p500 = por %p498, %p499
      %p502 = scmp.ne.s32.totalorder %s487, %s501
      %p503 = scmp.eq.s32.totalorder %s53, 0
      %p504 = por %p502, %p503
      %s506 = sadd.s32 %s505, 1
      %p509 = scmp.eq.s32.totalorder %s47, 1
      %p510 = scmp.ne.s32.totalorder %s505, %s507
      %p511 = scmp.eq.s32.totalorder %s47, 0
      %p512 = por %p510, %p511
      %p513 = scmp.ne.s32.totalorder %s505, %s507
      %p514 = scmp.eq.s32.totalorder %s52, 1
      %p515 = por %p513, %p514
      %p516 = scmp.ne.s32.totalorder %s507, %s508
      %p517 = scmp.eq.s32.totalorder %s52, 0
      %p518 = por %p516, %p517
      %p519 = scmp.ne.s32.totalorder %s507, %s508
      %p520 = scmp.eq.s32.totalorder %s53, 1
      %p521 = por %p519, %p520
      %p523 = scmp.ne.s32.totalorder %s508, %s522
      %p524 = scmp.eq.s32.totalorder %s53, 0
      %p525 = por %p523, %p524
      %s527 = sadd.s32 %s526, 1
      %p530 = scmp.eq.s32.totalorder %s47, 1
      %p531 = scmp.ne.s32.totalorder %s526, %s528
      %p532 = scmp.eq.s32.totalorder %s47, 0
      %p533 = por %p531, %p532
      %p534 = scmp.ne.s32.totalorder %s526, %s528
      %p535 = scmp.eq.s32.totalorder %s52, 1
      %p536 = por %p534, %p535
      %p537 = scmp.ne.s32.totalorder %s528, %s529
      %p538 = scmp.eq.s32.totalorder %s52, 0
      %p539 = por %p537, %p538
      %p540 = scmp.ne.s32.totalorder %s528, %s529
      %p541 = scmp.eq.s32.totalorder %s53, 1
      %p542 = por %p540, %p541
      %p544 = scmp.ne.s32.totalorder %s529, %s543
      %p545 = scmp.eq.s32.totalorder %s53, 0
      %p546 = por %p544, %p545
      %s548 = sadd.s32 %s547, 1
      %p551 = scmp.eq.s32.totalorder %s47, 1
      %p552 = scmp.ne.s32.totalorder %s547, %s549
      %p553 = scmp.eq.s32.totalorder %s47, 0
      %p554 = por %p552, %p553
      %p555 = scmp.ne.s32.totalorder %s547, %s549
      %p556 = scmp.eq.s32.totalorder %s52, 1
      %p557 = por %p555, %p556
      %p558 = scmp.ne.s32.totalorder %s549, %s550
      %p559 = scmp.eq.s32.totalorder %s52, 0
      %p560 = por %p558, %p559
      %p561 = scmp.ne.s32.totalorder %s549, %s550
      %p562 = scmp.eq.s32.totalorder %s53, 1
      %p563 = por %p561, %p562
      %p565 = scmp.ne.s32.totalorder %s550, %s564
      %p566 = scmp.eq.s32.totalorder %s53, 0
      %p567 = por %p565, %p566
      %s569 = sadd.s32 %s568, 1
      %p572 = scmp.eq.s32.totalorder %s47, 1
      %p573 = scmp.ne.s32.totalorder %s568, %s570
      %p574 = scmp.eq.s32.totalorder %s47, 0
      %p575 = por %p573, %p574
      %p576 = scmp.ne.s32.totalorder %s568, %s570
      %p577 = scmp.eq.s32.totalorder %s52, 1
      %p578 = por %p576, %p577
      %p579 = scmp.ne.s32.totalorder %s570, %s571
      %p580 = scmp.eq.s32.totalorder %s52, 0
      %p581 = por %p579, %p580
      %p582 = scmp.ne.s32.totalorder %s570, %s571
      %p583 = scmp.eq.s32.totalorder %s53, 1
      %p584 = por %p582, %p583
      %p586 = scmp.ne.s32.totalorder %s571, %s585
      %p587 = scmp.eq.s32.totalorder %s53, 0
      %p588 = por %p586, %p587
      %s590 = sadd.s32 %s589, 1
      %p593 = scmp.eq.s32.totalorder %s47, 1
      %p594 = scmp.ne.s32.totalorder %s589, %s591
      %p595 = scmp.eq.s32.totalorder %s47, 0
      %p596 = por %p594, %p595
      %p597 = scmp.ne.s32.totalorder %s589, %s591
      %p598 = scmp.eq.s32.totalorder %s52, 1
      %p599 = por %p597, %p598
      %p600 = scmp.ne.s32.totalorder %s591, %s592
      %p601 = scmp.eq.s32.totalorder %s52, 0
      %p602 = por %p600, %p601
      %p603 = scmp.ne.s32.totalorder %s591, %s592
      %p604 = scmp.eq.s32.totalorder %s53, 1
      %p605 = por %p603, %p604
      %p607 = scmp.ne.s32.totalorder %s592, %s606
      %p608 = scmp.eq.s32.totalorder %s53, 0
      %p609 = por %p607, %p608
      %s611 = sadd.s32 %s610, 1
      %p614 = scmp.eq.s32.totalorder %s47, 1
      %p615 = scmp.ne.s32.totalorder %s610, %s612
      %p616 = scmp.eq.s32.totalorder %s47, 0
      %p617 = por %p615, %p616
      %p618 = scmp.ne.s32.totalorder %s610, %s612
      %p619 = scmp.eq.s32.totalorder %s52, 1
      %p620 = por %p618, %p619
      %p621 = scmp.ne.s32.totalorder %s612, %s613
      %p622 = scmp.eq.s32.totalorder %s52, 0
      %p623 = por %p621, %p622
      %p624 = scmp.ne.s32.totalorder %s612, %s613
      %p625 = scmp.eq.s32.totalorder %s53, 1
      %p626 = por %p624, %p625
      %p628 = scmp.ne.s32.totalorder %s613, %s627
      %p629 = scmp.eq.s32.totalorder %s53, 0
      %p630 = por %p628, %p629
      %s631 = ssub.s32 %s47, %s54
      %p632 = scmp.eq.s32.totalorder %s631, 0
      %s634 = sadd.s32 %s633, 1
      %s635 = scalar_select %p632, %s633, %s634
      %p638 = pneg %p632
      %p639 = scmp.eq.s32.totalorder %s47, 1
      %p640 = por %p638, %p639
      %p641 = scmp.ne.s32.totalorder %s633, %s636
      %p642 = scmp.eq.s32.totalorder %s47, 0
      %p643 = por %p641, %p642
      %p644 = scmp.ne.s32.totalorder %s633, %s636
      %p645 = scmp.eq.s32.totalorder %s52, 1
      %p646 = por %p644, %p645
      %p647 = scmp.ne.s32.totalorder %s636, %s637
      %p648 = scmp.eq.s32.totalorder %s52, 0
      %p649 = por %p647, %p648
      %p650 = scmp.ne.s32.totalorder %s636, %s637
      %p651 = scmp.eq.s32.totalorder %s53, 1
      %p652 = por %p650, %p651
      %p654 = scmp.ne.s32.totalorder %s637, %s653
      %p655 = scmp.eq.s32.totalorder %s53, 0
      %p656 = por %p654, %p655
      %p657 = scmp.le.s32.totalorder 1, %s47
      %p658 = scmp.lt.s32.totalorder %s47, 3
      %p659 = pnand %p657, %p658
      %p660 = pneg %p659
      // Predicated region
      $region9: #{tpu_custom_call.1} parent=5 // pred_check
        _
      $region10: #{tpu_custom_call.1} parent=5 // pred_check_branch
        %662 = sbr.rel (%p659) target = $region12
      $region11: #{tpu_custom_call.1} parent=5 // pred_region
        %s663 = ssub.s32 %s47, 1
        // Predicated region
        $region13: #{tpu_custom_call.1} parent=11 // pred_check
          %p664 = pneg %p224
        $region14: #{tpu_custom_call.1} parent=11 // pred_check_branch
          %666 = sbr.rel (%p664) target = $region16
        $region15: #{tpu_custom_call.1} parent=11 // pred_region
          _
        $region16: #{tpu_custom_call.1} parent=11 // pred_fallthru
          _
        // Predicated region
        $region17: #{tpu_custom_call.1} parent=11 // pred_check
          %p667 = pneg %p245
        $region18: #{tpu_custom_call.1} parent=11 // pred_check_branch
          %669 = sbr.rel (%p667) target = $region20
        $region19: #{tpu_custom_call.1} parent=11 // pred_region
          _
        $region20: #{tpu_custom_call.1} parent=11 // pred_fallthru
          _
        // Predicated region
        $region21: #{tpu_custom_call.1} parent=11 // pred_check
          %p670 = pneg %p266
        $region22: #{tpu_custom_call.1} parent=11 // pred_check_branch
          %672 = sbr.rel (%p670) target = $region24
        $region23: #{tpu_custom_call.1} parent=11 // pred_region
          _
        $region24: #{tpu_custom_call.1} parent=11 // pred_fallthru
          _
        // Predicated region
        $region25: #{tpu_custom_call.1} parent=11 // pred_check
          %p673 = pneg %p287
        $region26: #{tpu_custom_call.1} parent=11 // pred_check_branch
          %675 = sbr.rel (%p673) target = $region28
        $region27: #{tpu_custom_call.1} parent=11 // pred_region
          _
        $region28: #{tpu_custom_call.1} parent=11 // pred_fallthru
          _
        // Predicated region
        $region29: #{tpu_custom_call.1} parent=11 // pred_check
          %p676 = pneg %p308
        $region30: #{tpu_custom_call.1} parent=11 // pred_check_branch
          %678 = sbr.rel (%p676) target = $region32
        $region31: #{tpu_custom_call.1} parent=11 // pred_region
          %680 = vsyncadd [#allocation9], 0
          %s682 = sshll.u32 %s10, 4
          %s683 = int_to_ptr.hbm [resolvable:$true] %s682
          %s684 = sshll.u32 [#allocation10], 4
          %s685 = int_to_ptr.vmem [resolvable:$true] %s684
          %687 = dma.hbm_to_vmem [thread:$0]  %s683, 16, %s685, [#allocation9]
        $region32: #{tpu_custom_call.1} parent=11 // pred_fallthru
          _
        // Predicated region
        $region33: #{tpu_custom_call.1} parent=11 // pred_check
          %p688 = pneg %p329
        $region34: #{tpu_custom_call.1} parent=11 // pred_check_branch
          %690 = sbr.rel (%p688) target = $region36
        $region35: #{tpu_custom_call.1} parent=11 // pred_region
          %692 = vsyncadd [#allocation12], 0
          %s694 = sshll.u32 %s11, 4
          %s695 = int_to_ptr.hbm [resolvable:$true] %s694
          %s696 = sshll.u32 [#allocation11], 4
          %s697 = int_to_ptr.vmem [resolvable:$true] %s696
          %699 = dma.hbm_to_vmem [thread:$0]  %s695, 16, %s697, [#allocation12]
        $region36: #{tpu_custom_call.1} parent=11 // pred_fallthru
          _
        // Predicated region
        $region37: #{tpu_custom_call.1} parent=11 // pred_check
          %p700 = pneg %p350
        $region38: #{tpu_custom_call.1} parent=11 // pred_check_branch
          %702 = sbr.rel (%p700) target = $region40
        $region39: #{tpu_custom_call.1} parent=11 // pred_region
          %704 = vsyncadd [#allocation12], 0
          %s706 = sshll.u32 %s12, 4
          %s707 = int_to_ptr.hbm [resolvable:$true] %s706
          %s708 = sshll.u32 [#allocation13], 4
          %s709 = int_to_ptr.vmem [resolvable:$true] %s708
          %711 = dma.hbm_to_vmem [thread:$0]  %s707, 16, %s709, [#allocation12]
        $region40: #{tpu_custom_call.1} parent=11 // pred_fallthru
          _
        // Predicated region
        $region41: #{tpu_custom_call.1} parent=11 // pred_check
          %p712 = pneg %p371
        $region42: #{tpu_custom_call.1} parent=11 // pred_check_branch
          %714 = sbr.rel (%p712) target = $region44
        $region43: #{tpu_custom_call.1} parent=11 // pred_region
          _
        $region44: #{tpu_custom_call.1} parent=11 // pred_fallthru
          _
        // Predicated region
        $region45: #{tpu_custom_call.1} parent=11 // pred_check
          %p715 = pneg %p392
        $region46: #{tpu_custom_call.1} parent=11 // pred_check_branch
          %717 = sbr.rel (%p715) target = $region48
        $region47: #{tpu_custom_call.1} parent=11 // pred_region
          %719 = vsyncadd [#allocation15], 0
          %s720 = sshll.u32 %s14, 4
          %s721 = int_to_ptr.hbm [resolvable:$true] %s720
          %s722 = sshll.u32 [#allocation14], 4
          %s723 = int_to_ptr.vmem [resolvable:$true] %s722
          %728 = dma.hbm_to_vmem [thread:$0]  %s721, 256, %s723, [#allocation15], 64, 64, 4
        $region48: #{tpu_custom_call.1} parent=11 // pred_fallthru
          _
        // Predicated region
        $region49: #{tpu_custom_call.1} parent=11 // pred_check
          %p729 = pneg %p413
        $region50: #{tpu_custom_call.1} parent=11 // pred_check_branch
          %731 = sbr.rel (%p729) target = $region52
        $region51: #{tpu_custom_call.1} parent=11 // pred_region
          %733 = vsyncadd [#allocation15], 0
          %s734 = sshll.u32 %s15, 4
          %s735 = int_to_ptr.hbm [resolvable:$true] %s734
          %s736 = sshll.u32 [#allocation16], 4
          %s737 = int_to_ptr.vmem [resolvable:$true] %s736
          %742 = dma.hbm_to_vmem [thread:$0]  %s735, 256, %s737, [#allocation15], 64, 64, 4
        $region52: #{tpu_custom_call.1} parent=11 // pred_fallthru
          _
        // Predicated region
        $region53: #{tpu_custom_call.1} parent=11 // pred_check
          %p743 = pneg %p434
        $region54: #{tpu_custom_call.1} parent=11 // pred_check_branch
          %745 = sbr.rel (%p743) target = $region56
        $region55: #{tpu_custom_call.1} parent=11 // pred_region
          %747 = vsyncadd [#allocation18], 0
          %s748 = sshll.u32 %s16, 4
          %s749 = int_to_ptr.hbm [resolvable:$true] %s748
          %s750 = sshll.u32 [#allocation17], 4
          %s751 = int_to_ptr.vmem [resolvable:$true] %s750
          %756 = dma.hbm_to_vmem [thread:$0]  %s749, 256, %s751, [#allocation18], 64, 64, 4
        $region56: #{tpu_custom_call.1} parent=11 // pred_fallthru
          _
        // Predicated region
        $region57: #{tpu_custom_call.1} parent=11 // pred_check
          %p757 = pneg %p455
        $region58: #{tpu_custom_call.1} parent=11 // pred_check_branch
          %759 = sbr.rel (%p757) target = $region60
        $region59: #{tpu_custom_call.1} parent=11 // pred_region
          _
        $region60: #{tpu_custom_call.1} parent=11 // pred_fallthru
          _
        // Predicated region
        $region61: #{tpu_custom_call.1} parent=11 // pred_check
          %p760 = pneg %p476
        $region62: #{tpu_custom_call.1} parent=11 // pred_check_branch
          %762 = sbr.rel (%p760) target = $region64
        $region63: #{tpu_custom_call.1} parent=11 // pred_region
          _
        $region64: #{tpu_custom_call.1} parent=11 // pred_fallthru
          _
        // Predicated region
        $region65: #{tpu_custom_call.1} parent=11 // pred_check
          %p763 = pneg %p497
        $region66: #{tpu_custom_call.1} parent=11 // pred_check_branch
          %765 = sbr.rel (%p763) target = $region68
        $region67: #{tpu_custom_call.1} parent=11 // pred_region
          _
        $region68: #{tpu_custom_call.1} parent=11 // pred_fallthru
          _
        // Predicated region
        $region69: #{tpu_custom_call.1} parent=11 // pred_check
          %p766 = pneg %p518
        $region70: #{tpu_custom_call.1} parent=11 // pred_check_branch
          %768 = sbr.rel (%p766) target = $region72
        $region71: #{tpu_custom_call.1} parent=11 // pred_region
          %770 = vsyncadd [#allocation18], 0
          %s771 = sshll.u32 %s20, 4
          %s772 = int_to_ptr.hbm [resolvable:$true] %s771
          %s773 = sshll.u32 [#allocation19], 4
          %s774 = int_to_ptr.vmem [resolvable:$true] %s773
          %779 = dma.hbm_to_vmem [thread:$0]  %s772, 256, %s774, [#allocation18], 64, 64, 4
        $region72: #{tpu_custom_call.1} parent=11 // pred_fallthru
          _
        // Predicated region
        $region73: #{tpu_custom_call.1} parent=11 // pred_check
          %p780 = pneg %p539
        $region74: #{tpu_custom_call.1} parent=11 // pred_check_branch
          %782 = sbr.rel (%p780) target = $region76
        $region75: #{tpu_custom_call.1} parent=11 // pred_region
          _
        $region76: #{tpu_custom_call.1} parent=11 // pred_fallthru
          _
        // Predicated region
        $region77: #{tpu_custom_call.1} parent=11 // pred_check
          %p783 = pneg %p560
        $region78: #{tpu_custom_call.1} parent=11 // pred_check_branch
          %785 = sbr.rel (%p783) target = $region80
        $region79: #{tpu_custom_call.1} parent=11 // pred_region
          _
        $region80: #{tpu_custom_call.1} parent=11 // pred_fallthru
          _
        // Predicated region
        $region81: #{tpu_custom_call.1} parent=11 // pred_check
          %p786 = pneg %p581
        $region82: #{tpu_custom_call.1} parent=11 // pred_check_branch
          %788 = sbr.rel (%p786) target = $region84
        $region83: #{tpu_custom_call.1} parent=11 // pred_region
          _
        $region84: #{tpu_custom_call.1} parent=11 // pred_fallthru
          _
        // Predicated region
        $region85: #{tpu_custom_call.1} parent=11 // pred_check
          %p789 = pneg %p602
        $region86: #{tpu_custom_call.1} parent=11 // pred_check_branch
          %791 = sbr.rel (%p789) target = $region88
        $region87: #{tpu_custom_call.1} parent=11 // pred_region
          _
        $region88: #{tpu_custom_call.1} parent=11 // pred_fallthru
          _
        // Predicated region
        $region89: #{tpu_custom_call.1} parent=11 // pred_check
          %p792 = pneg %p623
        $region90: #{tpu_custom_call.1} parent=11 // pred_check_branch
          %794 = sbr.rel (%p792) target = $region92
        $region91: #{tpu_custom_call.1} parent=11 // pred_region
          _
        $region92: #{tpu_custom_call.1} parent=11 // pred_fallthru
          _
      $region12: #{tpu_custom_call.1} parent=5 // pred_fallthru
        _
      %p795 = scmp.lt.s32.totalorder %s47, 2
      // Predicated region
      $region93: #{tpu_custom_call.1} parent=5 // pred_check
        %p796 = pneg %p795
      $region94: #{tpu_custom_call.1} parent=5 // pred_check_branch
        %798 = sbr.rel (%p796) target = $region96
      $region95: #{tpu_custom_call.1} parent=5 // pred_region
        // Predicated region
        $region97: #{tpu_custom_call.1} parent=95 // pred_check
          %p799 = pneg %p67
        $region98: #{tpu_custom_call.1} parent=95 // pred_check_branch
          %801 = sbr.rel (%p799) target = $region100
        $region99: #{tpu_custom_call.1} parent=95 // pred_region
          %s802 = sand.u32 %s57, 1
          %s803 = scalar_lea.sflag [#allocation3], %s802
          %s804 = sand.u32 %s57, 1
          %s805 = smul.addr %s804, 4
          %s806 = scalar_lea.vmem [#allocation2], %s805
          %808 = vsyncadd %s803, 0
          %s809 = smul.addr %s47, 4
          %s810 = scalar_lea.hbm %s0, %s809
          %s812 = sshll.u32 %s810, 4
          %s813 = int_to_ptr.hbm [resolvable:$true] %s812
          %s814 = sshll.u32 %s806, 4
          %s815 = int_to_ptr.vmem [resolvable:$true] %s814
          %817 = dma.hbm_to_vmem [thread:$0]  %s813, 64, %s815, %s803
        $region100: #{tpu_custom_call.1} parent=95 // pred_fallthru
          _
        // Predicated region
        $region101: #{tpu_custom_call.1} parent=95 // pred_check
          %p818 = pneg %p93
        $region102: #{tpu_custom_call.1} parent=95 // pred_check_branch
          %820 = sbr.rel (%p818) target = $region104
        $region103: #{tpu_custom_call.1} parent=95 // pred_region
          %s821 = sand.u32 %s47, 1
          %s822 = scalar_lea.sflag [#allocation6], %s821
          %s823 = sand.u32 %s83, 1
          %s824 = smul.addr %s823, 4
          %s825 = scalar_lea.vmem [#allocation5], %s824
          %827 = vsyncadd %s822, 0
          %s828 = smul.addr %s47, 4
          %s829 = scalar_lea.hbm %s1, %s828
          %s831 = sshll.u32 %s829, 4
          %s832 = int_to_ptr.hbm [resolvable:$true] %s831
          %s833 = sshll.u32 %s825, 4
          %s834 = int_to_ptr.vmem [resolvable:$true] %s833
          %836 = dma.hbm_to_vmem [thread:$0]  %s832, 64, %s834, %s822
        $region104: #{tpu_custom_call.1} parent=95 // pred_fallthru
          _
        // Predicated region
        $region105: #{tpu_custom_call.1} parent=95 // pred_check
          %p837 = pneg %p119
        $region106: #{tpu_custom_call.1} parent=95 // pred_check_branch
          %839 = sbr.rel (%p837) target = $region108
        $region107: #{tpu_custom_call.1} parent=95 // pred_region
          %p840 = scmp.lt.s32.totalorder %s47, 1
          %s841 = scalar_select %p840, %s47, 1
          %s842 = smul.addr %s841, 8
          %s843 = scalar_lea.vmem %s2, %s842
        $region108: #{tpu_custom_call.1} parent=95 // pred_fallthru
          _
        // Predicated region
        $region109: #{tpu_custom_call.1} parent=95 // pred_check
          %p844 = pneg %p145
        $region110: #{tpu_custom_call.1} parent=95 // pred_check_branch
          %846 = sbr.rel (%p844) target = $region112
        $region111: #{tpu_custom_call.1} parent=95 // pred_region
          %s847 = sand.u32 %s47, 1
          %s848 = scalar_lea.sflag [#allocation6], %s847
          %s849 = sand.u32 %s135, 1
          %s850 = scalar_lea.vmem [#allocation7], %s849
          %852 = vsyncadd %s848, 0
          %s853 = scalar_lea.hbm %s3, %s47
          %s855 = sshll.u32 %s853, 4
          %s856 = int_to_ptr.hbm [resolvable:$true] %s855
          %s857 = sshll.u32 %s850, 4
          %s858 = int_to_ptr.vmem [resolvable:$true] %s857
          %860 = dma.hbm_to_vmem [thread:$0]  %s856, 16, %s858, %s848
        $region112: #{tpu_custom_call.1} parent=95 // pred_fallthru
          _
        // Predicated region
        $region113: #{tpu_custom_call.1} parent=95 // pred_check
          %p861 = pneg %p171
        $region114: #{tpu_custom_call.1} parent=95 // pred_check_branch
          %863 = sbr.rel (%p861) target = $region116
        $region115: #{tpu_custom_call.1} parent=95 // pred_region
          %s864 = sand.u32 %s47, 1
          %s865 = scalar_lea.sflag [#allocation9], %s864
          %s866 = sand.u32 %s161, 1
          %s867 = scalar_lea.vmem [#allocation8], %s866
          %869 = vsyncadd %s865, 0
          %s870 = scalar_lea.hbm %s4, %s47
          %s872 = sshll.u32 %s870, 4
          %s873 = int_to_ptr.hbm [resolvable:$true] %s872
          %s874 = sshll.u32 %s867, 4
          %s875 = int_to_ptr.vmem [resolvable:$true] %s874
          %877 = dma.hbm_to_vmem [thread:$0]  %s873, 16, %s875, %s865
        $region116: #{tpu_custom_call.1} parent=95 // pred_fallthru
          _
        // Predicated region
        $region117: #{tpu_custom_call.1} parent=95 // pred_check
          %p878 = pneg %p197
        $region118: #{tpu_custom_call.1} parent=95 // pred_check_branch
          %880 = sbr.rel (%p878) target = $region120
        $region119: #{tpu_custom_call.1} parent=95 // pred_region
          %p881 = scmp.lt.s32.totalorder %s47, 1
          %s882 = scalar_select %p881, %s47, 1
          %s883 = smul.addr %s882, 8
          %s884 = scalar_lea.vmem %s5, %s883
        $region120: #{tpu_custom_call.1} parent=95 // pred_fallthru
          _
      $region96: #{tpu_custom_call.1} parent=5 // pred_fallthru
        _
      %p885 = scmp.le.s32.totalorder 1, %s47
      %p886 = scmp.lt.s32.totalorder %s47, 3
      %p887 = pnand %p885, %p886
      %p888 = pneg %p887
      // Predicated region
      $region121: #{tpu_custom_call.1} parent=5 // pred_check
        _
      $region122: #{tpu_custom_call.1} parent=5 // pred_check_branch
        %890 = sbr.rel (%p887) target = $region124
      $region123: #{tpu_custom_call.1} parent=5 // pred_region
        %s891 = ssub.s32 %s47, 1
        %s892 = sand.u32 %s60, 1
        %s893 = scalar_lea.sflag [#allocation3], %s892
        %s894 = sand.u32 %s60, 1
        %s895 = smul.addr %s894, 4
        %s896 = scalar_lea.vmem [#allocation2], %s895
        // Predicated region
        $region125: #{tpu_custom_call.1} parent=123 // pred_check
          %p897 = pneg %p73
        $region126: #{tpu_custom_call.1} parent=123 // pred_check_branch
          %899 = sbr.rel (%p897) target = $region128
        $region127: #{tpu_custom_call.1} parent=123 // pred_region
          %901 = dma.done %s893, 64
        $region128: #{tpu_custom_call.1} parent=123 // pred_fallthru
          _
        %s902 = sand.u32 %s52, 1
        %s903 = scalar_lea.sflag [#allocation6], %s902
        %s904 = sand.u32 %s86, 1
        %s905 = smul.addr %s904, 4
        %s906 = scalar_lea.vmem [#allocation5], %s905
        // Predicated region
        $region129: #{tpu_custom_call.1} parent=123 // pred_check
          %p907 = pneg %p99
        $region130: #{tpu_custom_call.1} parent=123 // pred_check_branch
          %909 = sbr.rel (%p907) target = $region132
        $region131: #{tpu_custom_call.1} parent=123 // pred_region
          %911 = dma.done %s903, 64
        $region132: #{tpu_custom_call.1} parent=123 // pred_fallthru
          _
        %s912 = sand.u32 %s52, 1
        %s913 = scalar_lea.sflag [#allocation6], %s912
        %s914 = sand.u32 %s138, 1
        %s915 = scalar_lea.vmem [#allocation7], %s914
        // Predicated region
        $region133: #{tpu_custom_call.1} parent=123 // pred_check
          %p916 = pneg %p151
        $region134: #{tpu_custom_call.1} parent=123 // pred_check_branch
          %918 = sbr.rel (%p916) target = $region136
        $region135: #{tpu_custom_call.1} parent=123 // pred_region
          %920 = dma.done %s913, 16
        $region136: #{tpu_custom_call.1} parent=123 // pred_fallthru
          _
        %s921 = sand.u32 %s52, 1
        %s922 = scalar_lea.sflag [#allocation9], %s921
        %s923 = sand.u32 %s164, 1
        %s924 = scalar_lea.vmem [#allocation8], %s923
        // Predicated region
        $region137: #{tpu_custom_call.1} parent=123 // pred_check
          %p925 = pneg %p177
        $region138: #{tpu_custom_call.1} parent=123 // pred_check_branch
          %927 = sbr.rel (%p925) target = $region140
        $region139: #{tpu_custom_call.1} parent=123 // pred_region
          %929 = dma.done %s922, 16
        $region140: #{tpu_custom_call.1} parent=123 // pred_fallthru
          _
        // Predicated region
        $region141: #{tpu_custom_call.1} parent=123 // pred_check
          %p930 = pneg %p308
        $region142: #{tpu_custom_call.1} parent=123 // pred_check_branch
          %932 = sbr.rel (%p930) target = $region144
        $region143: #{tpu_custom_call.1} parent=123 // pred_region
          %934 = dma.done [#allocation9], 16
        $region144: #{tpu_custom_call.1} parent=123 // pred_fallthru
          _
        // Predicated region
        $region145: #{tpu_custom_call.1} parent=123 // pred_check
          %p935 = pneg %p329
        $region146: #{tpu_custom_call.1} parent=123 // pred_check_branch
          %937 = sbr.rel (%p935) target = $region148
        $region147: #{tpu_custom_call.1} parent=123 // pred_region
          %939 = dma.done [#allocation12], 16
        $region148: #{tpu_custom_call.1} parent=123 // pred_fallthru
          _
        // Predicated region
        $region149: #{tpu_custom_call.1} parent=123 // pred_check
          %p940 = pneg %p350
        $region150: #{tpu_custom_call.1} parent=123 // pred_check_branch
          %942 = sbr.rel (%p940) target = $region152
        $region151: #{tpu_custom_call.1} parent=123 // pred_region
          %944 = dma.done [#allocation12], 16
        $region152: #{tpu_custom_call.1} parent=123 // pred_fallthru
          _
        // Predicated region
        $region153: #{tpu_custom_call.1} parent=123 // pred_check
          %p945 = pneg %p392
        $region154: #{tpu_custom_call.1} parent=123 // pred_check_branch
          %947 = sbr.rel (%p945) target = $region156
        $region155: #{tpu_custom_call.1} parent=123 // pred_region
          %949 = dma.done [#allocation15], 256
        $region156: #{tpu_custom_call.1} parent=123 // pred_fallthru
          _
        // Predicated region
        $region157: #{tpu_custom_call.1} parent=123 // pred_check
          %p950 = pneg %p413
        $region158: #{tpu_custom_call.1} parent=123 // pred_check_branch
          %952 = sbr.rel (%p950) target = $region160
        $region159: #{tpu_custom_call.1} parent=123 // pred_region
          %954 = dma.done [#allocation15], 256
        $region160: #{tpu_custom_call.1} parent=123 // pred_fallthru
          _
        // Predicated region
        $region161: #{tpu_custom_call.1} parent=123 // pred_check
          %p955 = pneg %p434
        $region162: #{tpu_custom_call.1} parent=123 // pred_check_branch
          %957 = sbr.rel (%p955) target = $region164
        $region163: #{tpu_custom_call.1} parent=123 // pred_region
          %959 = dma.done [#allocation18], 256
        $region164: #{tpu_custom_call.1} parent=123 // pred_fallthru
          _
        // Predicated region
        $region165: #{tpu_custom_call.1} parent=123 // pred_check
          %p960 = pneg %p518
        $region166: #{tpu_custom_call.1} parent=123 // pred_check_branch
          %962 = sbr.rel (%p960) target = $region168
        $region167: #{tpu_custom_call.1} parent=123 // pred_region
          %964 = dma.done [#allocation18], 256
        $region168: #{tpu_custom_call.1} parent=123 // pred_fallthru
          _
        %s965 = sand.u32 %s60, 1
        %s966 = scalar_lea.sflag [#allocation3], %s965
        %s967 = sand.u32 %s60, 1
        %s968 = smul.addr %s967, 4
        %s969 = scalar_lea.vmem [#allocation2], %s968
        %p970 = pneg %p73
        %p971 = pneg %p70
        %s972 = sand.u32 %s52, 1
        %s973 = scalar_lea.sflag [#allocation6], %s972
        %s974 = sand.u32 %s86, 1
        %s975 = smul.addr %s974, 4
        %s976 = scalar_lea.vmem [#allocation5], %s975
        %p977 = pneg %p99
        %p978 = pneg %p96
        %p979 = scmp.lt.s32.totalorder %s52, 1
        %s980 = scalar_select %p979, %s52, 1
        %s981 = smul.addr %s980, 8
        %s982 = scalar_lea.vmem %s2, %s981
        %p983 = pneg %p125
        %p984 = pneg %p122
        %s985 = sand.u32 %s52, 1
        %s986 = scalar_lea.sflag [#allocation6], %s985
        %s987 = sand.u32 %s138, 1
        %s988 = scalar_lea.vmem [#allocation7], %s987
        %p989 = pneg %p151
        %p990 = pneg %p148
        %s991 = sand.u32 %s52, 1
        %s992 = scalar_lea.sflag [#allocation9], %s991
        %s993 = sand.u32 %s164, 1
        %s994 = scalar_lea.vmem [#allocation8], %s993
        %p995 = pneg %p177
        %p996 = pneg %p174
        %p997 = scmp.lt.s32.totalorder %s52, 1
        %s998 = scalar_select %p997, %s52, 1
        %s999 = smul.addr %s998, 8
        %s1000 = scalar_lea.vmem %s5, %s999
        %p1001 = pneg %p203
        %p1002 = pneg %p200
        %p1003 = pneg %p224
        %p1004 = pneg %p221
        %p1005 = pneg %p245
        %p1006 = pneg %p242
        %p1007 = pneg %p266
        %p1008 = pneg %p263
        %p1009 = pneg %p287
        %p1010 = pneg %p284
        %p1011 = pneg %p308
        %p1012 = pneg %p305
        %p1013 = pneg %p329
        %p1014 = pneg %p326
        %p1015 = pneg %p350
        %p1016 = pneg %p347
        %p1017 = pneg %p371
        %p1018 = pneg %p368
        %p1019 = pneg %p392
        %p1020 = pneg %p389
        %p1021 = pneg %p413
        %p1022 = pneg %p410
        %p1023 = pneg %p434
        %p1024 = pneg %p431
        %p1025 = pneg %p455
        %p1026 = pneg %p452
        %p1027 = pneg %p476
        %p1028 = pneg %p473
        %p1029 = pneg %p497
        %p1030 = pneg %p494
        %p1031 = pneg %p518
        %p1032 = pneg %p515
        %p1033 = pneg %p539
        %p1034 = pneg %p536
        %p1035 = pneg %p560
        %p1036 = pneg %p557
        %p1037 = pneg %p581
        %p1038 = pneg %p578
        %p1039 = pneg %p602
        %p1040 = pneg %p599
        %p1041 = pneg %p623
        %p1042 = pneg %p620
        %p1043 = pneg %p649
        %p1044 = pneg %p646
        %s1045 = sand.u32 %s636, 1
        %s1046 = scalar_lea.sflag [#allocation4], %s1045
        %s1047 = sand.u32 %s636, 1
        %s1048 = smul.addr %s1047, 8
        %s1049 = scalar_lea.vmem [#allocation20], %s1048
        %p1050 = scmp.lt.s32.totalorder %s52, 1
        %s1051 = scalar_select %p1050, %s52, 1
        %s1052 = smul.addr %s1051, 8
        %s1053 = scalar_lea.vmem %s2, %s1052
        %p1054 = scmp.lt.s32.totalorder %s52, 1
        %s1055 = scalar_select %p1054, %s52, 1
        %s1056 = smul.addr %s1055, 8
        %s1057 = scalar_lea.vmem %s5, %s1056
        %v1059 = vld [vmem:[%s6] sm:$0xf]
        %v1060 = vld [vmem:[%s6 + $0x4] sm:$0xf]
        %v1061 = vld [vmem:[%s6 + $0x8] sm:$0xf]
        %v1062 = vld [vmem:[%s6 + $0xc] sm:$0xf]
        %v1063 = vld [vmem:[%s7] sm:$0xf]
        %v1064 = vld [vmem:[%s7 + $0x4] sm:$0xf]
        %v1065 = vld [vmem:[%s7 + $0x8] sm:$0xf]
        %v1066 = vld [vmem:[%s7 + $0xc] sm:$0xf]
        %v1067 = vld [vmem:[%s8] sm:$0xf]
        %v1068 = vld [vmem:[%s8 + $0x4] sm:$0xf]
        %v1069 = vld [vmem:[%s8 + $0x8] sm:$0xf]
        %v1070 = vld [vmem:[%s8 + $0xc] sm:$0xf]
        %v1071 = vld [vmem:[%s9] sm:$0xf]
        %v1072 = vld [vmem:[%s9 + $0x4] sm:$0xf]
        %v1073 = vld [vmem:[%s9 + $0x8] sm:$0xf]
        %v1074 = vld [vmem:[%s9 + $0xc] sm:$0xf]
        %v1075 = vld [vmem:[#allocation10] sm:$0x1]
        %v1076 = vld [vmem:[#allocation11] sm:$0x1]
        %v1077 = vld [vmem:[#allocation13] sm:$0x1]
        %v1078 = vld [vmem:[%s13] sm:$0xf]
        %v1079 = vld [vmem:[%s13 + $0x4] sm:$0xf]
        %v1080 = vld [vmem:[%s13 + $0x8] sm:$0xf]
        %v1081 = vld [vmem:[%s13 + $0xc] sm:$0xf]
        %v1082 = vld [vmem:[#allocation14] sm:$0xf]
        %v1083 = vld [vmem:[#allocation14 + $0x4] sm:$0xf]
        %v1084 = vld [vmem:[#allocation14 + $0x8] sm:$0xf]
        %v1085 = vld [vmem:[#allocation14 + $0xc] sm:$0xf]
        %v1086 = vld [vmem:[#allocation16] sm:$0xf]
        %v1087 = vld [vmem:[#allocation16 + $0x4] sm:$0xf]
        %v1088 = vld [vmem:[#allocation16 + $0x8] sm:$0xf]
        %v1089 = vld [vmem:[#allocation16 + $0xc] sm:$0xf]
        %v1090 = vld [vmem:[#allocation17] sm:$0xf]
        %v1091 = vld [vmem:[#allocation17 + $0x4] sm:$0xf]
        %v1092 = vld [vmem:[#allocation17 + $0x8] sm:$0xf]
        %v1093 = vld [vmem:[#allocation17 + $0xc] sm:$0xf]
        %v1094 = vld [vmem:[%s17] sm:$0x1]
        %v1095 = vld [vmem:[%s18] sm:$0x1]
        %v1096 = vld [vmem:[%s19] sm:$0x1]
        %v1097 = vld [vmem:[#allocation19] sm:$0xf]
        %v1098 = vld [vmem:[#allocation19 + $0x4] sm:$0xf]
        %v1099 = vld [vmem:[#allocation19 + $0x8] sm:$0xf]
        %v1100 = vld [vmem:[#allocation19 + $0xc] sm:$0xf]
        %v1101 = vld [vmem:[%s21] sm:$0x1]
        %v1102 = vld [vmem:[%s22] sm:$0xf]
        %v1103 = vld [vmem:[%s22 + $0x4] sm:$0xf]
        %v1104 = vld [vmem:[%s22 + $0x8] sm:$0xf]
        %v1105 = vld [vmem:[%s22 + $0xc] sm:$0xf]
        %v1106 = vld [vmem:[%s22 + $0x10] sm:$0xf]
        %v1107 = vld [vmem:[%s22 + $0x14] sm:$0xf]
        %v1108 = vld [vmem:[%s22 + $0x18] sm:$0xf]
        %v1109 = vld [vmem:[%s22 + $0x1c] sm:$0xf]
        %v1110 = vld [vmem:[%s22 + $0x20] sm:$0xf]
        %v1111 = vld [vmem:[%s22 + $0x24] sm:$0xf]
        %v1112 = vld [vmem:[%s22 + $0x28] sm:$0xf]
        %v1113 = vld [vmem:[%s22 + $0x2c] sm:$0xf]
        %v1114 = vld [vmem:[%s22 + $0x30] sm:$0xf]
        %v1115 = vld [vmem:[%s22 + $0x34] sm:$0xf]
        %v1116 = vld [vmem:[%s22 + $0x38] sm:$0xf]
        %v1117 = vld [vmem:[%s22 + $0x3c] sm:$0xf]
        %v1118 = vld [vmem:[%s23] sm:$0x1]
        %v1119 = vld [vmem:[%s24] sm:$0x1]
        %v1120 = vld [vmem:[%s25] sm:$0x1]
        %v1121 = vld [vmem:[%s1053] sm:$0xff]
        %v1122 = vld [vmem:[%s896] sm:$0xf]
        %v1123 = vld [vmem:[%s906] sm:$0xf]
        %v1124 = vld [vmem:[%s915] sm:$0x1]
        %v1125 = vld [vmem:[%s924] sm:$0x1]
        %v1126 = vld [vmem:[%s1057] sm:$0xff]
        %v1127 = vpack.c.bf16 %v1121, %v1121
        %v1132 = vunpack.c.l.b16 %v1059
        %v1133 = vunpack.c.l.b16 %v1060
        %v1134 = vunpack.c.l.b16 %v1061
        %v1135 = vunpack.c.l.b16 %v1062
        %v1136 = vpack.c.b16 %v1133, %v1132
        %v1137 = vpack.c.b16 %v1135, %v1134
        %vm1140 = vcmask 261120
        %v1142 = vsel %vm1140, %v1127, 0
        %1144 = vmatpush.bf16.msra.mxu0 0
        %1145 = vmatpush.bf16.msra.mxu0 0
        %1146 = vmatpush.bf16.msra.mxu0 0
        %1147 = vmatpush.bf16.msra.mxu0 0
        %1148 = vmatpush.bf16.msra.mxu0 0
        %1149 = vmatpush.bf16.msra.mxu0 0
        %1150 = vmatpush.bf16.msra.mxu0 %v1137
        %1151 = vmatpush.bf16.msra.mxu0 %v1136
        %1152 = vmatmul.bf16.gmra.mxu0 %v1142
        %v1153 = vpop.f32.mrf.mxu0
        %v1154 = vadd.f32 0.0, %v1153
        %v1155 = vpop.f32.mrf.mxu0
        %1156 = vdwg.mxu0
        %v1161 = vunpack.c.l.b16 %v1063
        %v1162 = vunpack.c.l.b16 %v1064
        %v1163 = vunpack.c.l.b16 %v1065
        %v1164 = vunpack.c.l.b16 %v1066
        %v1165 = vpack.c.b16 %v1162, %v1161
        %v1166 = vpack.c.b16 %v1164, %v1163
        %v1170 = vsel %vm1140, %v1123, 0
        %1172 = vmatpush.bf16.msra.mxu0 0
        %1173 = vmatpush.bf16.msra.mxu0 0
        %1174 = vmatpush.bf16.msra.mxu0 0
        %1175 = vmatpush.bf16.msra.mxu0 0
        %1176 = vmatpush.bf16.msra.mxu0 0
        %1177 = vmatpush.bf16.msra.mxu0 0
        %1178 = vmatpush.bf16.msra.mxu0 %v1166
        %1179 = vmatpush.bf16.msra.mxu0 %v1165
        %1180 = vmatmul.bf16.gmra.mxu0 %v1170
        %v1181 = vpop.f32.mrf.mxu0
        %v1182 = vadd.f32 0.0, %v1181
        %v1183 = vpop.f32.mrf.mxu0
        %1184 = vdwg.mxu0
        %v1189 = vunpack.c.l.b16 %v1067
        %v1190 = vunpack.c.l.b16 %v1068
        %v1191 = vunpack.c.l.b16 %v1069
        %v1192 = vunpack.c.l.b16 %v1070
        %v1193 = vpack.c.b16 %v1190, %v1189
        %v1194 = vpack.c.b16 %v1192, %v1191
        %v1198 = vsel %vm1140, %v1122, 0
        %1200 = vmatpush.bf16.msra.mxu0 0
        %1201 = vmatpush.bf16.msra.mxu0 0
        %1202 = vmatpush.bf16.msra.mxu0 0
        %1203 = vmatpush.bf16.msra.mxu0 0
        %1204 = vmatpush.bf16.msra.mxu0 0
        %1205 = vmatpush.bf16.msra.mxu0 0
        %1206 = vmatpush.bf16.msra.mxu0 %v1194
        %1207 = vmatpush.bf16.msra.mxu0 %v1193
        %1208 = vmatmul.bf16.gmra.mxu0 %v1198
        %v1209 = vpop.f32.mrf.mxu0
        %v1210 = vadd.f32 0.0, %v1209
        %v1211 = vpop.f32.mrf.mxu0
        %1212 = vdwg.mxu0
        %v1213 = vpack.c.bf16 %v1154, %v1154
        %1215 = vrot.lane.b32.xlu0 %v1213, 120
        %v1216 = vpop.permute.xlu0 %1215
        %1217 = vrot.lane.b32.xlu0 %v1213, 112
        %v1218 = vpop.permute.xlu0 %1217
        %1219 = vrot.lane.b32.xlu0 %v1213, 104
        %v1220 = vpop.permute.xlu0 %1219
        %v1221 = vpack.c.bf16 %v1182, %v1182
        %1223 = vrot.lane.b32.xlu0 %v1221, 120
        %v1224 = vpop.permute.xlu0 %1223
        %1225 = vrot.lane.b32.xlu0 %v1221, 112
        %v1226 = vpop.permute.xlu0 %1225
        %1227 = vrot.lane.b32.xlu0 %v1221, 104
        %v1228 = vpop.permute.xlu0 %1227
        %v1229 = vpack.c.bf16 %v1210, %v1210
        %1231 = vrot.lane.b32.xlu0 %v1229, 120
        %v1232 = vpop.permute.xlu0 %1231
        %1233 = vrot.lane.b32.xlu0 %v1229, 112
        %v1234 = vpop.permute.xlu0 %1233
        %1235 = vrot.lane.b32.xlu0 %v1229, 104
        %v1236 = vpop.permute.xlu0 %1235
        %v1238 = vperm.slane %v1125, 0
        %vm1240 = vcmask 64512
        %v1242 = vsel %vm1240, %v1213, 0
        %v1245 = vsel %vm1240, %v1221, 0
        %1247 = vmatpush.bf16.xpose.msra.mxu0 0
        %1248 = vmatpush.bf16.xpose.msra.mxu0 0
        %1249 = vmatpush.bf16.xpose.msra.mxu0 0
        %1250 = vmatpush.bf16.xpose.msra.mxu0 0
        %1251 = vmatpush.bf16.xpose.msra.mxu0 0
        %1252 = vmatpush.bf16.xpose.msra.mxu0 0
        %1253 = vmatpush.bf16.xpose.msra.mxu0 0
        %1254 = vmatpush.bf16.xpose.msra.mxu0 %v1245
        %1255 = vmatmul.bf16.gmra.mxu0 %v1242
        %v1256 = vpop.f32.mrf.mxu0
        %v1257 = vadd.f32 %v1238, %v1256
        %v1258 = vpop.f32.mrf.mxu0
        %1259 = vdwg.mxu0
        %v1261 = vsel %vm1240, %v1216, 0
        %v1264 = vsel %vm1240, %v1224, 0
        %1266 = vmatpush.bf16.xpose.msra.mxu0 0
        %1267 = vmatpush.bf16.xpose.msra.mxu0 0
        %1268 = vmatpush.bf16.xpose.msra.mxu0 0
        %1269 = vmatpush.bf16.xpose.msra.mxu0 0
        %1270 = vmatpush.bf16.xpose.msra.mxu0 0
        %1271 = vmatpush.bf16.xpose.msra.mxu0 0
        %1272 = vmatpush.bf16.xpose.msra.mxu0 0
        %1273 = vmatpush.bf16.xpose.msra.mxu0 %v1264
        %1274 = vmatmul.bf16.gmra.mxu0 %v1261
        %v1275 = vpop.f32.mrf.mxu0
        %v1276 = vadd.f32 %v1238, %v1275
        %v1277 = vpop.f32.mrf.mxu0
        %1278 = vdwg.mxu0
        %v1280 = vsel %vm1240, %v1218, 0
        %v1283 = vsel %vm1240, %v1226, 0
        %1285 = vmatpush.bf16.xpose.msra.mxu0 0
        %1286 = vmatpush.bf16.xpose.msra.mxu0 0
        %1287 = vmatpush.bf16.xpose.msra.mxu0 0
        %1288 = vmatpush.bf16.xpose.msra.mxu0 0
        %1289 = vmatpush.bf16.xpose.msra.mxu0 0
        %1290 = vmatpush.bf16.xpose.msra.mxu0 0
        %1291 = vmatpush.bf16.xpose.msra.mxu0 0
        %1292 = vmatpush.bf16.xpose.msra.mxu0 %v1283
        %1293 = vmatmul.bf16.gmra.mxu0 %v1280
        %v1294 = vpop.f32.mrf.mxu0
        %v1295 = vadd.f32 %v1238, %v1294
        %v1296 = vpop.f32.mrf.mxu0
        %1297 = vdwg.mxu0
        %v1299 = vsel %vm1240, %v1220, 0
        %v1302 = vsel %vm1240, %v1228, 0
        %1304 = vmatpush.bf16.xpose.msra.mxu0 0
        %1305 = vmatpush.bf16.xpose.msra.mxu0 0
        %1306 = vmatpush.bf16.xpose.msra.mxu0 0
        %1307 = vmatpush.bf16.xpose.msra.mxu0 0
        %1308 = vmatpush.bf16.xpose.msra.mxu0 0
        %1309 = vmatpush.bf16.xpose.msra.mxu0 0
        %1310 = vmatpush.bf16.xpose.msra.mxu0 0
        %1311 = vmatpush.bf16.xpose.msra.mxu0 %v1302
        %1312 = vmatmul.bf16.gmra.mxu0 %v1299
        %v1313 = vpop.f32.mrf.mxu0
        %v1314 = vadd.f32 %v1238, %v1313
        %v1315 = vpop.f32.mrf.mxu0
        %1316 = vdwg.mxu0
        %v1317 = vsel %vm1240, %v1257, -inf
        %1318 = vmax.xlane.f32.xlu0 %v1317
        %v1319 = vpop.xlane.xlu0 %1318
        %v1320 = vsel %vm1240, %v1276, -inf
        %1321 = vmax.xlane.f32.xlu0 %v1320
        %v1322 = vpop.xlane.xlu0 %1321
        %v1323 = vsel %vm1240, %v1295, -inf
        %1324 = vmax.xlane.f32.xlu0 %v1323
        %v1325 = vpop.xlane.xlu0 %1324
        %v1326 = vsel %vm1240, %v1314, -inf
        %1327 = vmax.xlane.f32.xlu0 %v1326
        %v1328 = vpop.xlane.xlu0 %1327
        %v1329 = vsub.f32 %v1257, %v1319
        %v1330 = vsub.f32 %v1276, %v1322
        %v1331 = vsub.f32 %v1295, %v1325
        %v1332 = vsub.f32 %v1314, %v1328
        %v1333 = vmul.f32 %v1329, 1.442695
        %v1334 = vpow.pop %v1333
        %v1335 = vmul.f32 %v1330, 1.442695
        %v1336 = vpow.pop %v1335
        %v1337 = vmul.f32 %v1331, 1.442695
        %v1338 = vpow.pop %v1337
        %v1339 = vmul.f32 %v1332, 1.442695
        %v1340 = vpow.pop %v1339
        %v1341 = vsel %vm1240, %v1334, 0.0
        %1342 = vadd.xlane.f32.xlu0 %v1341
        %v1343 = vpop.xlane.xlu0 %1342
        %v1344 = vsel %vm1240, %v1336, 0.0
        %1345 = vadd.xlane.f32.xlu0 %v1344
        %v1346 = vpop.xlane.xlu0 %1345
        %v1347 = vsel %vm1240, %v1338, 0.0
        %1348 = vadd.xlane.f32.xlu0 %v1347
        %v1349 = vpop.xlane.xlu0 %1348
        %v1350 = vsel %vm1240, %v1340, 0.0
        %1351 = vadd.xlane.f32.xlu0 %v1350
        %v1352 = vpop.xlane.xlu0 %1351
        %v1353 = vrcp.pop %v1343
        %v1354 = vrcp.pop %v1346
        %v1355 = vrcp.pop %v1349
        %v1356 = vrcp.pop %v1352
        %v1357 = vmul.f32 %v1334, %v1353
        %v1358 = vmul.f32 %v1336, %v1354
        %v1359 = vmul.f32 %v1338, %v1355
        %v1360 = vmul.f32 %v1340, %v1356
        %v1361 = vpack.c.bf16 %v1357, %v1357
        %v1362 = vpack.c.bf16 %v1358, %v1358
        %v1363 = vpack.c.bf16 %v1359, %v1359
        %v1364 = vpack.c.bf16 %v1360, %v1360
        %v1366 = vsel %vm1240, %v1361, 0
        %vm1368 = vcmask 1043456
        %v1370 = vsel %vm1368, %v1229, 0
        %1372 = vmatpush.bf16.msra.mxu0 0
        %1373 = vmatpush.bf16.msra.mxu0 0
        %1374 = vmatpush.bf16.msra.mxu0 0
        %1375 = vmatpush.bf16.msra.mxu0 0
        %1376 = vmatpush.bf16.msra.mxu0 0
        %1377 = vmatpush.bf16.msra.mxu0 0
        %1378 = vmatpush.bf16.msra.mxu0 0
        %1379 = vmatpush.bf16.msra.mxu0 %v1370
        %1380 = vmatmul.bf16.gmra.mxu0 %v1366
        %v1381 = vpop.f32.mrf.mxu0
        %v1382 = vadd.f32 0.0, %v1381
        %v1383 = vpop.f32.mrf.mxu0
        %1384 = vdwg.mxu0
        %v1386 = vsel %vm1240, %v1362, 0
        %v1389 = vsel %vm1368, %v1232, 0
        %1391 = vmatpush.bf16.msra.mxu0 0
        %1392 = vmatpush.bf16.msra.mxu0 0
        %1393 = vmatpush.bf16.msra.mxu0 0
        %1394 = vmatpush.bf16.msra.mxu0 0
        %1395 = vmatpush.bf16.msra.mxu0 0
        %1396 = vmatpush.bf16.msra.mxu0 0
        %1397 = vmatpush.bf16.msra.mxu0 0
        %1398 = vmatpush.bf16.msra.mxu0 %v1389
        %1399 = vmatmul.bf16.gmra.mxu0 %v1386
        %v1400 = vpop.f32.mrf.mxu0
        %v1401 = vadd.f32 0.0, %v1400
        %v1402 = vpop.f32.mrf.mxu0
        %1403 = vdwg.mxu0
        %v1405 = vsel %vm1240, %v1363, 0
        %v1408 = vsel %vm1368, %v1234, 0
        %1410 = vmatpush.bf16.msra.mxu0 0
        %1411 = vmatpush.bf16.msra.mxu0 0
        %1412 = vmatpush.bf16.msra.mxu0 0
        %1413 = vmatpush.bf16.msra.mxu0 0
        %1414 = vmatpush.bf16.msra.mxu0 0
        %1415 = vmatpush.bf16.msra.mxu0 0
        %1416 = vmatpush.bf16.msra.mxu0 0
        %1417 = vmatpush.bf16.msra.mxu0 %v1408
        %1418 = vmatmul.bf16.gmra.mxu0 %v1405
        %v1419 = vpop.f32.mrf.mxu0
        %v1420 = vadd.f32 0.0, %v1419
        %v1421 = vpop.f32.mrf.mxu0
        %1422 = vdwg.mxu0
        %v1424 = vsel %vm1240, %v1364, 0
        %v1427 = vsel %vm1368, %v1236, 0
        %1429 = vmatpush.bf16.msra.mxu0 0
        %1430 = vmatpush.bf16.msra.mxu0 0
        %1431 = vmatpush.bf16.msra.mxu0 0
        %1432 = vmatpush.bf16.msra.mxu0 0
        %1433 = vmatpush.bf16.msra.mxu0 0
        %1434 = vmatpush.bf16.msra.mxu0 0
        %1435 = vmatpush.bf16.msra.mxu0 0
        %1436 = vmatpush.bf16.msra.mxu0 %v1427
        %1437 = vmatmul.bf16.gmra.mxu0 %v1424
        %v1438 = vpop.f32.mrf.mxu0
        %v1439 = vadd.f32 0.0, %v1438
        %v1440 = vpop.f32.mrf.mxu0
        %1441 = vdwg.mxu0
        %v1442 = vpack.c.bf16 %v1382, %v1382
        %v1443 = vpack.c.bf16 %v1401, %v1401
        %v1444 = vpack.c.bf16 %v1420, %v1420
        %v1445 = vpack.c.bf16 %v1439, %v1439
        %v1447 = vunpack.c.l.b16 %v1443
        %v1448 = vpack.c.b16 %v1447, %v1447
        %1449 = vrot.lane.b32.xlu0 %v1448, 8
        %v1450 = vpop.permute.xlu0 %1449
        %v1452 = vunpack.c.l.b16 %v1444
        %v1453 = vpack.c.b16 %v1452, %v1452
        %1454 = vrot.lane.b32.xlu0 %v1453, 16
        %v1455 = vpop.permute.xlu0 %1454
        %v1457 = vunpack.c.l.b16 %v1445
        %v1458 = vpack.c.b16 %v1457, %v1457
        %1459 = vrot.lane.b32.xlu0 %v1458, 24
        %v1460 = vpop.permute.xlu0 %1459
        %v1463 = vsel %vm1240, %v1442, %v1450
        %vm1464 = vcmask 130048
        %v1466 = vsel %vm1464, %v1463, %v1455
        %vm1467 = vcmask 195584
        %v1469 = vsel %vm1467, %v1466, %v1460
        %v1471 = vperm.slane %v1075, 0
        %v1477 = vunpack.c.l.b16 %v1071
        %v1478 = vunpack.c.l.b16 %v1072
        %v1479 = vunpack.c.l.b16 %v1073
        %v1480 = vunpack.c.l.b16 %v1074
        %v1481 = vpack.c.b16 %v1478, %v1477
        %v1482 = vpack.c.b16 %v1480, %v1479
        %v1485 = vsel %vm1140, %v1469, 0
        %1487 = vmatpush.bf16.msra.mxu0 0
        %1488 = vmatpush.bf16.msra.mxu0 0
        %1489 = vmatpush.bf16.msra.mxu0 0
        %1490 = vmatpush.bf16.msra.mxu0 0
        %1491 = vmatpush.bf16.msra.mxu0 0
        %1492 = vmatpush.bf16.msra.mxu0 0
        %1493 = vmatpush.bf16.msra.mxu0 %v1482
        %1494 = vmatpush.bf16.msra.mxu0 %v1481
        %1495 = vmatmul.bf16.gmra.mxu0 %v1485
        %v1496 = vpop.f32.mrf.mxu0
        %v1497 = vadd.f32 %v1471, %v1496
        %v1498 = vpop.f32.mrf.mxu0
        %1499 = vdwg.mxu0
        %v1500 = vadd.f32 %v1497, %v1121
        %v1501 = vsel %vm1140, %v1500, 0.0
        %1502 = vadd.xlane.f32.xlu0 %v1501
        %v1503 = vpop.xlane.xlu0 %1502
        %v1504 = vrcp.pop 32.0
        %v1505 = vmul.f32 32.0, %v1504
        %v1506 = vsub.f32 1.0, %v1505
        %v1507 = vmul.f32 %v1504, %v1506
        %v1508 = vadd.f32 %v1504, %v1507
        %vm1509 = vweird.f32 %v1504
        %v1510 = vsel %vm1509, %v1504, %v1508
        %v1511 = vmul.f32 %v1503, %v1510
        %v1512 = vsub.f32 %v1500, %v1511
        %v1513 = vmul.f32 %v1512, %v1512
        %v1514 = vsel %vm1140, %v1513, 0.0
        %1515 = vadd.xlane.f32.xlu0 %v1514
        %v1516 = vpop.xlane.xlu0 %1515
        %v1517 = vmul.f32 %v1516, %v1510
        %v1518 = vadd.f32 %v1517, 1e-05
        %v1519 = vrsqrt.pop %v1518
        %v1520 = vmul.f32 %v1519, %v1518
        %v1521 = vmul.f32 %v1520, %v1519
        %v1522 = vmul.f32 0.5, %v1521
        %v1523 = vsub.f32 1.5, %v1522
        %v1524 = vmul.f32 %v1519, %v1523
        %vm1525 = vweird.f32 %v1518
        %vm1526 = vweird.f32 %v1519
        %vm1527 = vmor %vm1525, %vm1526
        %v1528 = vsel %vm1527, %v1519, %v1524
        %v1529 = vmul.f32 %v1512, %v1528
        %v1531 = vperm.slane %v1076, 0
        %v1533 = vmul.f32 %v1529, %v1531
        %v1535 = vperm.slane %v1077, 0
        %v1537 = vadd.f32 %v1533, %v1535
        %v1538 = vpack.c.bf16 %v1537, %v1537
        %v1543 = vunpack.c.l.b16 %v1078
        %v1544 = vunpack.c.l.b16 %v1079
        %v1545 = vunpack.c.l.b16 %v1080
        %v1546 = vunpack.c.l.b16 %v1081
        %v1547 = vpack.c.b16 %v1544, %v1543
        %v1548 = vpack.c.b16 %v1546, %v1545
        %v1552 = vsel %vm1140, %v1538, 0
        %1554 = vmatpush.bf16.msra.mxu0 0
        %1555 = vmatpush.bf16.msra.mxu0 0
        %1556 = vmatpush.bf16.msra.mxu0 0
        %1557 = vmatpush.bf16.msra.mxu0 0
        %1558 = vmatpush.bf16.msra.mxu0 0
        %1559 = vmatpush.bf16.msra.mxu0 0
        %1560 = vmatpush.bf16.msra.mxu0 %v1548
        %1561 = vmatpush.bf16.msra.mxu0 %v1547
        %1562 = vmatmul.bf16.gmra.mxu0 %v1552
        %v1563 = vpop.f32.mrf.mxu0
        %v1564 = vadd.f32 0.0, %v1563
        %v1565 = vpop.f32.mrf.mxu0
        %1566 = vdwg.mxu0
        %v1571 = vunpack.c.l.b16 %v1082
        %v1572 = vunpack.c.l.b16 %v1083
        %v1573 = vunpack.c.l.b16 %v1084
        %v1574 = vunpack.c.l.b16 %v1085
        %v1575 = vpack.c.b16 %v1572, %v1571
        %v1576 = vpack.c.b16 %v1574, %v1573
        %v1580 = vsel %vm1140, %v1124, 0
        %1582 = vmatpush.bf16.msra.mxu0 0
        %1583 = vmatpush.bf16.msra.mxu0 0
        %1584 = vmatpush.bf16.msra.mxu0 0
        %1585 = vmatpush.bf16.msra.mxu0 0
        %1586 = vmatpush.bf16.msra.mxu0 0
        %1587 = vmatpush.bf16.msra.mxu0 0
        %1588 = vmatpush.bf16.msra.mxu0 %v1576
        %1589 = vmatpush.bf16.msra.mxu0 %v1575
        %1590 = vmatmul.bf16.gmra.mxu0 %v1580
        %v1591 = vpop.f32.mrf.mxu0
        %v1592 = vadd.f32 0.0, %v1591
        %v1593 = vpop.f32.mrf.mxu0
        %1594 = vdwg.mxu0
        %v1599 = vunpack.c.l.b16 %v1086
        %v1600 = vunpack.c.l.b16 %v1087
        %v1601 = vunpack.c.l.b16 %v1088
        %v1602 = vunpack.c.l.b16 %v1089
        %v1603 = vpack.c.b16 %v1600, %v1599
        %v1604 = vpack.c.b16 %v1602, %v1601
        %1607 = vmatpush.bf16.msra.mxu0 0
        %1608 = vmatpush.bf16.msra.mxu0 0
        %1609 = vmatpush.bf16.msra.mxu0 0
        %1610 = vmatpush.bf16.msra.mxu0 0
        %1611 = vmatpush.bf16.msra.mxu0 0
        %1612 = vmatpush.bf16.msra.mxu0 0
        %1613 = vmatpush.bf16.msra.mxu0 %v1604
        %1614 = vmatpush.bf16.msra.mxu0 %v1603
        %1615 = vmatmul.bf16.gmra.mxu0 %v1580
        %v1616 = vpop.f32.mrf.mxu0
        %v1617 = vadd.f32 0.0, %v1616
        %v1618 = vpop.f32.mrf.mxu0
        %1619 = vdwg.mxu0
        %v1620 = vpack.c.bf16 %v1564, %v1564
        %1622 = vrot.lane.b32.xlu0 %v1620, 112
        %v1623 = vpop.permute.xlu0 %1622
        %v1624 = vpack.c.bf16 %v1592, %v1592
        %1626 = vrot.lane.b32.xlu0 %v1624, 112
        %v1627 = vpop.permute.xlu0 %1626
        %v1628 = vpack.c.bf16 %v1617, %v1617
        %1630 = vrot.lane.b32.xlu0 %v1628, 112
        %v1631 = vpop.permute.xlu0 %1630
        %v1633 = vsel %vm1464, %v1620, 0
        %v1636 = vsel %vm1464, %v1624, 0
        %1638 = vmatpush.bf16.xpose.msra.mxu0 0
        %1639 = vmatpush.bf16.xpose.msra.mxu0 0
        %1640 = vmatpush.bf16.xpose.msra.mxu0 0
        %1641 = vmatpush.bf16.xpose.msra.mxu0 0
        %1642 = vmatpush.bf16.xpose.msra.mxu0 0
        %1643 = vmatpush.bf16.xpose.msra.mxu0 0
        %1644 = vmatpush.bf16.xpose.msra.mxu0 0
        %1645 = vmatpush.bf16.xpose.msra.mxu0 %v1636
        %1646 = vmatmul.bf16.gmra.mxu0 %v1633
        %v1647 = vpop.f32.mrf.mxu0
        %v1648 = vadd.f32 0.0, %v1647
        %v1649 = vpop.f32.mrf.mxu0
        %1650 = vdwg.mxu0
        %v1652 = vsel %vm1464, %v1623, 0
        %v1655 = vsel %vm1464, %v1627, 0
        %1657 = vmatpush.bf16.xpose.msra.mxu0 0
        %1658 = vmatpush.bf16.xpose.msra.mxu0 0
        %1659 = vmatpush.bf16.xpose.msra.mxu0 0
        %1660 = vmatpush.bf16.xpose.msra.mxu0 0
        %1661 = vmatpush.bf16.xpose.msra.mxu0 0
        %1662 = vmatpush.bf16.xpose.msra.mxu0 0
        %1663 = vmatpush.bf16.xpose.msra.mxu0 0
        %1664 = vmatpush.bf16.xpose.msra.mxu0 %v1655
        %1665 = vmatmul.bf16.gmra.mxu0 %v1652
        %v1666 = vpop.f32.mrf.mxu0
        %v1667 = vadd.f32 0.0, %v1666
        %v1668 = vpop.f32.mrf.mxu0
        %1669 = vdwg.mxu0
        %vm1670 = vcmp.eq.f32.partialorder %v1126, 0.0
        %v1671 = vsel %vm1670, 1, 0
        %1672 = vset.pattern.permute.xlu0 0
        %1673 = vperm.xlu0 %1672, %v1671
        %v1674 = vpop.permute.xlu0 %1673
        %vm1675 = vcmp.eq.s32.totalorder %v1674, 1
        %v1676 = vsel %vm1675, -1e+20, %v1648
        %v1677 = vsel %vm1675, -1e+20, %v1667
        %vm1678 = vcmask 15360
        %v1679 = vsel %vm1678, %v1676, -inf
        %1680 = vmax.xlane.f32.xlu0 %v1679
        %v1681 = vpop.xlane.xlu0 %1680
        %v1682 = vsel %vm1678, %v1677, -inf
        %1683 = vmax.xlane.f32.xlu0 %v1682
        %v1684 = vpop.xlane.xlu0 %1683
        %v1685 = vsub.f32 %v1676, %v1681
        %v1686 = vsub.f32 %v1677, %v1684
        %v1687 = vmul.f32 %v1685, 1.442695
        %v1688 = vpow.pop %v1687
        %v1689 = vmul.f32 %v1686, 1.442695
        %v1690 = vpow.pop %v1689
        %v1691 = vsel %vm1678, %v1688, 0.0
        %1692 = vadd.xlane.f32.xlu0 %v1691
        %v1693 = vpop.xlane.xlu0 %1692
        %v1694 = vsel %vm1678, %v1690, 0.0
        %1695 = vadd.xlane.f32.xlu0 %v1694
        %v1696 = vpop.xlane.xlu0 %1695
        %v1697 = vrcp.pop %v1693
        %v1698 = vrcp.pop %v1696
        %v1699 = vmul.f32 %v1688, %v1697
        %v1700 = vmul.f32 %v1690, %v1698
        %v1701 = vpack.c.bf16 %v1699, %v1699
        %v1702 = vpack.c.bf16 %v1700, %v1700
        %v1704 = vsel %vm1678, %v1701, 0
        %vm1706 = vcmask 1040384
        %v1708 = vsel %vm1706, %v1628, 0
        %1710 = vmatpush.bf16.msra.mxu0 0
        %1711 = vmatpush.bf16.msra.mxu0 0
        %1712 = vmatpush.bf16.msra.mxu0 0
        %1713 = vmatpush.bf16.msra.mxu0 0
        %1714 = vmatpush.bf16.msra.mxu0 0
        %1715 = vmatpush.bf16.msra.mxu0 0
        %1716 = vmatpush.bf16.msra.mxu0 0
        %1717 = vmatpush.bf16.msra.mxu0 %v1708
        %1718 = vmatmul.bf16.gmra.mxu0 %v1704
        %v1719 = vpop.f32.mrf.mxu0
        %v1720 = vadd.f32 0.0, %v1719
        %v1721 = vpop.f32.mrf.mxu0
        %1722 = vdwg.mxu0
        %v1724 = vsel %vm1678, %v1702, 0
        %v1727 = vsel %vm1706, %v1631, 0
        %1729 = vmatpush.bf16.msra.mxu0 0
        %1730 = vmatpush.bf16.msra.mxu0 0
        %1731 = vmatpush.bf16.msra.mxu0 0
        %1732 = vmatpush.bf16.msra.mxu0 0
        %1733 = vmatpush.bf16.msra.mxu0 0
        %1734 = vmatpush.bf16.msra.mxu0 0
        %1735 = vmatpush.bf16.msra.mxu0 0
        %1736 = vmatpush.bf16.msra.mxu0 %v1727
        %1737 = vmatmul.bf16.gmra.mxu0 %v1724
        %v1738 = vpop.f32.mrf.mxu0
        %v1739 = vadd.f32 0.0, %v1738
        %v1740 = vpop.f32.mrf.mxu0
        %1741 = vdwg.mxu0
        %v1742 = vpack.c.bf16 %v1720, %v1720
        %v1743 = vpack.c.bf16 %v1739, %v1739
        %v1745 = vunpack.c.l.b16 %v1743
        %v1746 = vpack.c.b16 %v1745, %v1745
        %1747 = vrot.lane.b32.xlu0 %v1746, 16
        %v1748 = vpop.permute.xlu0 %1747
        %v1751 = vsel %vm1464, %v1742, %v1748
        %v1753 = vperm.slane %v1094, 0
        %v1759 = vunpack.c.l.b16 %v1090
        %v1760 = vunpack.c.l.b16 %v1091
        %v1761 = vunpack.c.l.b16 %v1092
        %v1762 = vunpack.c.l.b16 %v1093
        %v1763 = vpack.c.b16 %v1760, %v1759
        %v1764 = vpack.c.b16 %v1762, %v1761
        %v1767 = vsel %vm1140, %v1751, 0
        %1769 = vmatpush.bf16.msra.mxu0 0
        %1770 = vmatpush.bf16.msra.mxu0 0
        %1771 = vmatpush.bf16.msra.mxu0 0
        %1772 = vmatpush.bf16.msra.mxu0 0
        %1773 = vmatpush.bf16.msra.mxu0 0
        %1774 = vmatpush.bf16.msra.mxu0 0
        %1775 = vmatpush.bf16.msra.mxu0 %v1764
        %1776 = vmatpush.bf16.msra.mxu0 %v1763
        %1777 = vmatmul.bf16.gmra.mxu0 %v1767
        %v1778 = vpop.f32.mrf.mxu0
        %v1779 = vadd.f32 %v1753, %v1778
        %v1780 = vpop.f32.mrf.mxu0
        %1781 = vdwg.mxu0
        %v1782 = vadd.f32 %v1537, %v1779
        %v1783 = vsel %vm1140, %v1782, 0.0
        %1784 = vadd.xlane.f32.xlu0 %v1783
        %v1785 = vpop.xlane.xlu0 %1784
        %v1786 = vmul.f32 %v1785, %v1510
        %v1787 = vsub.f32 %v1782, %v1786
        %v1788 = vmul.f32 %v1787, %v1787
        %v1789 = vsel %vm1140, %v1788, 0.0
        %1790 = vadd.xlane.f32.xlu0 %v1789
        %v1791 = vpop.xlane.xlu0 %1790
        %v1792 = vmul.f32 %v1791, %v1510
        %v1793 = vadd.f32 %v1792, 1e-05
        %v1794 = vrsqrt.pop %v1793
        %v1795 = vmul.f32 %v1794, %v1793
        %v1796 = vmul.f32 %v1795, %v1794
        %v1797 = vmul.f32 0.5, %v1796
        %v1798 = vsub.f32 1.5, %v1797
        %v1799 = vmul.f32 %v1794, %v1798
        %vm1800 = vweird.f32 %v1793
        %vm1801 = vweird.f32 %v1794
        %vm1802 = vmor %vm1800, %vm1801
        %v1803 = vsel %vm1802, %v1794, %v1799
        %v1804 = vmul.f32 %v1787, %v1803
        %v1806 = vperm.slane %v1095, 0
        %v1808 = vmul.f32 %v1804, %v1806
        %v1810 = vperm.slane %v1096, 0
        %v1812 = vadd.f32 %v1808, %v1810
        %v1813 = vpack.c.bf16 %v1812, %v1812
        %v1815 = vperm.slane %v1101, 0
        %v1821 = vunpack.c.l.b16 %v1097
        %v1822 = vunpack.c.l.b16 %v1098
        %v1823 = vunpack.c.l.b16 %v1099
        %v1824 = vunpack.c.l.b16 %v1100
        %v1825 = vpack.c.b16 %v1822, %v1821
        %v1826 = vpack.c.b16 %v1824, %v1823
        %v1830 = vsel %vm1140, %v1813, 0
        %1832 = vmatpush.bf16.msra.mxu0 0
        %1833 = vmatpush.bf16.msra.mxu0 0
        %1834 = vmatpush.bf16.msra.mxu0 0
        %1835 = vmatpush.bf16.msra.mxu0 0
        %1836 = vmatpush.bf16.msra.mxu0 0
        %1837 = vmatpush.bf16.msra.mxu0 0
        %1838 = vmatpush.bf16.msra.mxu0 %v1826
        %1839 = vmatpush.bf16.msra.mxu0 %v1825
        %1840 = vmatmul.bf16.gmra.mxu0 %v1830
        %v1841 = vpop.f32.mrf.mxu0
        %v1842 = vadd.f32 %v1815, %v1841
        %v1843 = vpop.f32.mrf.mxu0
        %1844 = vdwg.mxu0
        %v1845 = vmax.f32 %v1842, 0.0
        %v1846 = vpack.c.bf16 %v1845, %v1845
        %v1848 = vperm.slane %v1118, 0
        %v1866 = vunpack.c.l.b16 %v1102
        %v1867 = vunpack.c.l.b16 %v1103
        %v1868 = vunpack.c.l.b16 %v1104
        %v1869 = vunpack.c.l.b16 %v1105
        %v1870 = vunpack.c.l.b16 %v1106
        %v1871 = vunpack.c.l.b16 %v1107
        %v1872 = vunpack.c.l.b16 %v1108
        %v1873 = vunpack.c.l.b16 %v1109
        %v1874 = vunpack.c.l.b16 %v1110
        %v1875 = vunpack.c.l.b16 %v1111
        %v1876 = vunpack.c.l.b16 %v1112
        %v1877 = vunpack.c.l.b16 %v1113
        %v1878 = vunpack.c.l.b16 %v1114
        %v1879 = vunpack.c.l.b16 %v1115
        %v1880 = vunpack.c.l.b16 %v1116
        %v1881 = vunpack.c.l.b16 %v1117
        %v1882 = vpack.c.b16 %v1867, %v1866
        %v1883 = vpack.c.b16 %v1869, %v1868
        %v1884 = vpack.c.b16 %v1871, %v1870
        %v1885 = vpack.c.b16 %v1873, %v1872
        %v1886 = vpack.c.b16 %v1875, %v1874
        %v1887 = vpack.c.b16 %v1877, %v1876
        %v1888 = vpack.c.b16 %v1879, %v1878
        %v1889 = vpack.c.b16 %v1881, %v1880
        %1898 = vmatpush.bf16.msra.mxu0 %v1889
        %1899 = vmatpush.bf16.msra.mxu0 %v1888
        %1900 = vmatpush.bf16.msra.mxu0 %v1887
        %1901 = vmatpush.bf16.msra.mxu0 %v1886
        %1902 = vmatpush.bf16.msra.mxu0 %v1885
        %1903 = vmatpush.bf16.msra.mxu0 %v1884
        %1904 = vmatpush.bf16.msra.mxu0 %v1883
        %1905 = vmatpush.bf16.msra.mxu0 %v1882
        %1906 = vmatmul.bf16.gmra.mxu0 %v1846
        %v1907 = vpop.f32.mrf.mxu0
        %v1908 = vadd.f32 %v1848, %v1907
        %v1909 = vpop.f32.mrf.mxu0
        %1910 = vdwg.mxu0
        %v1911 = vadd.f32 %v1908, %v1812
        %v1912 = vsel %vm1140, %v1911, 0.0
        %1913 = vadd.xlane.f32.xlu0 %v1912
        %v1914 = vpop.xlane.xlu0 %1913
        %v1915 = vmul.f32 %v1914, %v1510
        %v1916 = vsub.f32 %v1911, %v1915
        %v1917 = vmul.f32 %v1916, %v1916
        %v1918 = vsel %vm1140, %v1917, 0.0
        %1919 = vadd.xlane.f32.xlu0 %v1918
        %v1920 = vpop.xlane.xlu0 %1919
        %v1921 = vmul.f32 %v1920, %v1510
        %v1922 = vadd.f32 %v1921, 1e-05
        %v1923 = vrsqrt.pop %v1922
        %v1924 = vmul.f32 %v1923, %v1922
        %v1925 = vmul.f32 %v1924, %v1923
        %v1926 = vmul.f32 0.5, %v1925
        %v1927 = vsub.f32 1.5, %v1926
        %v1928 = vmul.f32 %v1923, %v1927
        %vm1929 = vweird.f32 %v1922
        %vm1930 = vweird.f32 %v1923
        %vm1931 = vmor %vm1929, %vm1930
        %v1932 = vsel %vm1931, %v1923, %v1928
        %v1933 = vmul.f32 %v1916, %v1932
        %v1935 = vperm.slane %v1119, 0
        %v1937 = vmul.f32 %v1933, %v1935
        %v1939 = vperm.slane %v1120, 0
        %v1941 = vadd.f32 %v1937, %v1939
        %1942 = vst.msk [vmem:[%s1049] sm:$0xff] %vm1140, %v1941
        %s1943 = sand.u32 %s636, 1
        %s1944 = scalar_lea.sflag [#allocation4], %s1943
        %s1945 = sand.u32 %s636, 1
        %s1946 = smul.addr %s1945, 8
        %s1947 = scalar_lea.vmem [#allocation20], %s1946
        // Predicated region
        $region169: #{tpu_custom_call.1} parent=123 // pred_check
          %p1948 = pneg %p646
        $region170: #{tpu_custom_call.1} parent=123 // pred_check_branch
          %1950 = sbr.rel (%p1948) target = $region172
        $region171: #{tpu_custom_call.1} parent=123 // pred_region
          %1952 = vsyncadd %s1944, 0
          %s1953 = smul.addr %s52, 8
          %s1954 = scalar_lea.hbm %s26, %s1953
          %s1956 = sshll.u32 %s1947, 4
          %s1957 = int_to_ptr.vmem [resolvable:$true] %s1956
          %s1958 = sshll.u32 %s1954, 4
          %s1959 = int_to_ptr.hbm [resolvable:$true] %s1958
          %1961 = dma.vmem_to_hbm [thread:$0]  %s1957, 128, %s1959, %s1944
        $region172: #{tpu_custom_call.1} parent=123 // pred_fallthru
          _
      $region124: #{tpu_custom_call.1} parent=5 // pred_fallthru
        _
      %p1962 = scmp.le.s32.totalorder 2, %s47
      // Predicated region
      $region173: #{tpu_custom_call.1} parent=5 // pred_check
        %p1963 = pneg %p1962
      $region174: #{tpu_custom_call.1} parent=5 // pred_check_branch
        %1965 = sbr.rel (%p1963) target = $region176
      $region175: #{tpu_custom_call.1} parent=5 // pred_region
        %s1966 = ssub.s32 %s47, 2
        // Predicated region
        $region177: #{tpu_custom_call.1} parent=175 // pred_check
          %p1967 = pneg %p652
        $region178: #{tpu_custom_call.1} parent=175 // pred_check_branch
          %1969 = sbr.rel (%p1967) target = $region180
        $region179: #{tpu_custom_call.1} parent=175 // pred_region
          %s1970 = sand.u32 %s637, 1
          %s1971 = scalar_lea.sflag [#allocation4], %s1970
          %s1972 = sand.u32 %s637, 1
          %s1973 = smul.addr %s1972, 8
          %s1974 = scalar_lea.vmem [#allocation20], %s1973
          %1976 = dma.done %s1971, 128
        $region180: #{tpu_custom_call.1} parent=175 // pred_fallthru
          _
      $region176: #{tpu_custom_call.1} parent=5 // pred_fallthru
        _
    $region6: #{tpu_custom_call.1} parent=1 // loop_footer
      %s51 = sadd.s32 1, %s47
    $region7: #{tpu_custom_call.1} parent=1 // loop_footer_branch
      %46 = sbr.rel target = $region3
    $region8: #{tpu_custom_call.1} parent=1 // loop_exit
      _
    %1977 = vsyncpa [#allocation3], 1
    %s1978 = scalar_lea.sflag [#allocation3], 1
    %1979 = vsyncpa %s1978, 1
    %1980 = vsyncpa [#allocation6], 1
    %s1981 = scalar_lea.sflag [#allocation6], 1
    %1982 = vsyncpa %s1981, 1
    %1983 = vsyncpa [#allocation9], 1
    %s1984 = scalar_lea.sflag [#allocation9], 1
    %1985 = vsyncpa %s1984, 1
    %1986 = vsyncpa [#allocation12], 1
    %1987 = vsyncpa [#allocation15], 1
    %1988 = vsyncpa [#allocation18], 1
    %1989 = vsyncpa [#allocation4], 1
    %s1990 = scalar_lea.sflag [#allocation4], 1
    %1991 = vsyncpa %s1990, 1

</llo_original>
